<compile_context>
chip_gen: v5e
topology: v5e:2x2
jax: 0.10.0
libtpu: 0.0.40
codegen_flags: <defaults>
</compile_context>

<pallas_src>
import jax
import jax.numpy as jnp
from jax.experimental import pallas as pl
from jax.experimental.pallas import tpu as pltpu


def _make_kernel(H, W):
    """Kernel closure over the static spatial geometry (H, W of one image)."""

    def kernel(x_ref, w1_ref, b1_ref, w2_ref, b2_ref, w3_ref, b3_ref, m_ref,
               out_ref, v1_ref, v2_ref, v3_ref, h1_ref):
        # Membrane potentials persist across the sequential time axis; re-init at the start of
        # each batch shard's time sequence (grid = (batch parallel, time arbitrary)).
        @pl.when(pl.program_id(1) == 0)
        def _init():
            v1_ref[...] = jnp.zeros_like(v1_ref)
            v2_ref[...] = jnp.zeros_like(v2_ref)
            v3_ref[...] = jnp.zeros_like(v3_ref)

        TT, NB, Cin = x_ref.shape          # time steps per grid step, rows per shard, channels
        W1 = w1_ref.shape[1]
        Cout = w3_ref.shape[1]

        # ---- conv1 (1x1) + BN1, hoisted over the whole time block: one fat MXU job ----
        h1_all = jnp.dot(x_ref[...].reshape(TT * NB, Cin), w1_ref[...],
                         preferred_element_type=jnp.float32) + b1_ref[...]
        h1_ref[...] = h1_all               # stash in VMEM -> tt loop keeps small live ranges

        # Hoisted bias broadcasts (JAX does not CSE broadcast_in_dim inside the unrolled loop).
        b2b = jnp.broadcast_to(b2_ref[...], (NB, W1))
        b3b = jnp.broadcast_to(b3_ref[...], (NB, Cout))

        for tt in range(TT):               # short static trip count -> full unroll
            # ---- IF neuron 1 ----
            h1 = h1_ref[pl.ds(tt * NB, NB), :]
            v1 = v1_ref[...] + h1
            s1 = v1 >= 1.0
            v1_ref[...] = jnp.where(s1, 0.0, v1)       # integrate-and-fire, hard reset
            spk1 = s1.astype(jnp.bfloat16)             # single bf16 cast of the spike map

            # ---- conv2 (3x3, stride 1, pad 1) + BN2 ----
            # One (NB, W1)@(W1, 9*W1) matmul; each tap slice is row-rolled by its spatial offset
            # and multiplied by a precomputed 0/1 boundary mask (zero-padding semantics).
            y = jnp.dot(spk1, w2_ref[...], preferred_element_type=jnp.float32)  # (NB, 9*W1)
            acc = y[:, 4 * W1:5 * W1] + b2b            # centre tap: no shift, no mask
            for k in (0, 1, 2, 3, 5, 6, 7, 8):
                dy, dx = k // 3, k % 3
                shift = ((1 - dy) * W + (1 - dx)) % NB   # static, rows = flattened (y, x)
                yk = pltpu.roll(y[:, k * W1:(k + 1) * W1], shift=shift, axis=0)
                acc = acc + yk * m_ref[k]
            v2 = v2_ref[...] + acc
            s2 = v2 >= 1.0
            v2_ref[...] = jnp.where(s2, 0.0, v2)
            spk2 = s2.astype(jnp.bfloat16)

            # ---- conv3 (1x1) + BN3 ----
            h3 = jnp.dot(spk2, w3_ref[...], preferred_element_type=jnp.float32) + b3b
            v3 = v3_ref[...] + h3
            s3 = v3 >= 1.0
            v3_ref[...] = jnp.where(s3, 0.0, v3)

            # ---- SEW function, connect_f == 'ADD', identity = x (downsample is None) ----
            # bf16 add/store is exact for spike-valued inputs (out in {0,1,2}); lane-dense store.
            out_ref[tt] = x_ref[tt] + s3.astype(jnp.bfloat16)

    return kernel


def _conv2_boundary_masks(H, W, W1):
    """(9, H*W, W1) 0/1 masks: mask[k, r, :]=1 iff tap k reads an in-bounds pixel for output r."""
    yy = jnp.repeat(jnp.arange(H), W)      # flattened row index  (y)
    xx = jnp.tile(jnp.arange(W), H)        # flattened col index  (x)
    ms = []
    for k in range(9):
        dy, dx = k // 3, k % 3
        sy, sx = 1 - dy, 1 - dx
        valid = (yy - sy >= 0) & (yy - sy < H) & (xx - sx >= 0) & (xx - sx < W)
        ms.append(valid)
    m = jnp.stack(ms).astype(jnp.float32)                              # (9, H*W)
    return jnp.broadcast_to(m[:, :, None], (9, H * W, W1)).astype(jnp.float32)


def sew_bottleneck(x, w1, b1, w2, b2, w3, b3, *, time_block=4):
    """x: (T, B, H, W, Cin). Returns (T, B, H, W, Cout) bf16 (exact for spike-valued x)."""
    T, B, H, W, Cin = x.shape
    W1 = w1.shape[1]
    Cout = w3.shape[1]
    assert Cin == Cout, "identity ADD requires inplanes == planes*expansion (downsample is None)"
    HW = H * W
    assert HW % 8 == 0 and Cin % 128 == 0 and Cout % 128 == 0, "lane/sublane alignment"

    tb = max(1, min(time_block, T))
    while T % tb:
        tb -= 1

    # Lane-dense bf16 I/O slabs (halved HBM/DMA/VMEM traffic; exact for binary spike inputs).
    x2 = x.reshape(T, B * HW, Cin).astype(jnp.bfloat16)

    # conv2 taps flattened for the single fat matmul: w2_flat[c, k*W1 + d] = w2[k, c, d].
    w2_flat = jnp.transpose(w2, (1, 0, 2)).reshape(W1, 9 * W1)

    masks = _conv2_boundary_masks(H, W, W1)          # batch shard = 1 image

    # VMEM per grid step (demo shapes): ~64 KiB x2 in + ~64 KiB x2 out (double-buffered) +
    # ~150 KiB scratch/masks/weights — far under the 32/64 MiB budgets on all generations.
    grid_spec = pltpu.PrefetchScalarGridSpec(
        num_scalar_prefetch=0,
        grid=(B, T // tb),                            # (parallel batch shards, sequential time)
        in_specs=[
            pl.BlockSpec((tb, HW, Cin), lambda b, i: (i, b, 0)),
            pl.BlockSpec((Cin, W1), lambda b, i: (0, 0)),        # bf16, BN1 scale folded in
            pl.BlockSpec((1, W1), lambda b, i: (0, 0)),          # BN1 shift
            pl.BlockSpec((W1, 9 * W1), lambda b, i: (0, 0)),     # bf16 flattened 3x3 taps
            pl.BlockSpec((1, W1), lambda b, i: (0, 0)),          # BN2 shift
            pl.BlockSpec((W1, Cout), lambda b, i: (0, 0)),       # bf16, BN3 scale folded in
            pl.BlockSpec((1, Cout), lambda b, i: (0, 0)),        # BN3 shift
            pl.BlockSpec((9, HW, W1), lambda b, i: (0, 0, 0)),   # conv2 boundary masks
        ],
        out_specs=pl.BlockSpec((tb, HW, Cout), lambda b, i: (i, b, 0)),
        scratch_shapes=[
            pltpu.VMEM((HW, W1), jnp.float32),        # v1 membrane potential (per batch shard)
            pltpu.VMEM((HW, W1), jnp.float32),        # v2
            pltpu.VMEM((HW, Cout), jnp.float32),      # v3
            pltpu.VMEM((tb * HW, W1), jnp.float32),   # hoisted conv1 pre-activations
        ],
    )
    out2 = pl.pallas_call(
        _make_kernel(H, W),
        out_shape=jax.ShapeDtypeStruct((T, B * HW, Cout), jnp.bfloat16),
        grid_spec=grid_spec,
        compiler_params=pltpu.CompilerParams(
            dimension_semantics=("parallel", "arbitrary")),
    )(x2, w1, b1, w2_flat, b2, w3, b3, masks)
    return out2.reshape(T, B, H, W, Cout)


# ----------------------- parameter construction (deterministic) -----------------------
def make_params(key, inplanes, planes, base_width=64, groups=1, eps=1e-5):
    width = int(planes * (base_width / 64.0)) * groups
    cout = planes * 4                     # Bottleneck.expansion = 4
    ks = jax.random.split(key, 6)

    # torch-layout conv weights: conv1x1 (out, in); conv3x3 (out, in, kh, kw)
    w1_t = jax.random.normal(ks[0], (width, inplanes)) * (2.0 / inplanes) ** 0.5
    w2_t = jax.random.normal(ks[1], (width, width, 3, 3)) * (2.0 / (9 * width)) ** 0.5
    w3_t = jax.random.normal(ks[2], (cout, width)) * (2.0 / width) ** 0.5

    def bn(k, c):
        k1, k2, k3, k4 = jax.random.split(k, 4)
        gamma = jax.random.uniform(k1, (c,), minval=0.8, maxval=1.2)
        beta = 0.1 * jax.random.normal(k2, (c,))
        mean = 0.1 * jax.random.normal(k3, (c,))
        var = jax.random.uniform(k4, (c,), minval=0.5, maxval=1.5)
        scale = gamma / jnp.sqrt(var + eps)
        shift = beta - mean * scale
        return scale, shift

    s1, b1 = bn(ks[3], width)
    s2, b2 = bn(ks[4], width)
    s3, b3 = bn(ks[5], cout)

    # Quantize the folded test parameters to multiples of 1/64 so every product / partial sum in
    # both the kernel (bf16 MXU operands, f32 accumulation) and the f32 reference is exactly
    # representable -> bitwise-identical spike trains regardless of summation order. This only
    # affects the example parameters, not the kernel.
    def q(a, lim=2.0):
        return jnp.clip(jnp.round(a * 64.0) / 64.0, -lim, lim).astype(jnp.float32)

    # Fold eval-mode BN scale into the conv weights; channels-last matmul layout; bf16 weights.
    w1 = q((w1_t * s1[:, None]).T).astype(jnp.bfloat16)                        # (Cin, W1)
    w2 = q(jnp.transpose(w2_t * s2[:, None, None, None], (2, 3, 1, 0)))        # (ky, kx, in, out)
    w2 = w2.reshape(9, width, width).astype(jnp.bfloat16)                      # (9, W1, W1)
    w3 = q((w3_t * s3[:, None]).T).astype(jnp.bfloat16)                        # (W1, Cout)
    b1 = q(b1, 1.0).reshape(1, -1)
    b2 = q(b2, 1.0).reshape(1, -1)
    b3 = q(b3, 1.0).reshape(1, -1)
    return w1, b1, w2, b2, w3, b3


# ----------------------- pure-JAX reference (for verification) -----------------------
def reference(x, w1, b1, w2, b2, w3, b3):
    T, B, H, W, _ = x.shape
    hi = jax.lax.Precision.HIGHEST
    w1f = w1.astype(jnp.float32)
    w2f = w2.astype(jnp.float32)
    w3f = w3.astype(jnp.float32)
    W1 = w1f.shape[1]
    Cout = w3f.shape[1]

    def if_step(v, h):
        v = v + h
        s = (v >= 1.0).astype(jnp.float32)
        return v * (1.0 - s), s

    v1 = jnp.zeros((B, H, W, W1), jnp.float32)
    v2 = jnp.zeros((B, H, W, W1), jnp.float32)
    v3 = jnp.zeros((B, H, W, Cout), jnp.float32)
    outs = []
    for t in range(T):
        xt = x[t]
        h1 = jnp.einsum('bhwc,cd->bhwd', xt, w1f, precision=hi) + b1[0]
        v1, sp1 = if_step(v1, h1)
        pdd = jnp.pad(sp1, ((0, 0), (1, 1), (1, 1), (0, 0)))
        h2 = jnp.zeros_like(h1)
        for k in range(9):
            dy, dx = k // 3, k % 3
            h2 = h2 + jnp.einsum('bhwc,cd->bhwd',
                                 pdd[:, dy:dy + H, dx:dx + W, :], w2f[k], precision=hi)
        h2 = h2 + b2[0]
        v2, sp2 = if_step(v2, h2)
        h3 = jnp.einsum('bhwc,cd->bhwd', sp2, w3f, precision=hi) + b3[0]
        v3, sp3 = if_step(v3, h3)
        outs.append(xt + sp3)
    return jnp.stack(outs)


if __name__ == "__main__":
    # Small shapes consistent with the module: 8 time steps, batch 2, 8x8 spatial. Channels chosen
    # so the residual ADD is valid without a downsample (inplanes = planes*4) and the I/O channel
    # dim fills the 128-lane vreg (lane-dense loads/stores).
    T, B, H, W = 8, 2, 8, 8
    planes = 32
    inplanes = planes * 4   # 128

    key = jax.random.PRNGKey(0)
    kp, kx = jax.random.split(key)
    params = make_params(kp, inplanes, planes)
    # Spike-like binary input, as fed to an SNN block (exact in bf16).
    x = jax.random.bernoulli(kx, 0.5, (T, B, H, W, inplanes)).astype(jnp.float32)

    out = jax.jit(sew_bottleneck)(x, *params)
    out = jax.block_until_ready(out)

    assert out.shape == (T, B, H, W, planes * 4)
    out_f32 = out.astype(jnp.float32)
    assert bool(jnp.all(jnp.isfinite(out_f32)))

    ref = reference(x, *params)
    max_diff = float(jnp.max(jnp.abs(out_f32 - ref)))
    assert max_diff < 1e-3, f"max diff {max_diff}"

    print("KERNEL_OK")
</pallas_src>

<mosaic_0001>
module attributes {stable_mosaic.version = 11 : i64} {
  func.func @kernel(%arg0: i32, %arg1: i32, %arg2: memref<4x64x128xbf16, #tpu.memory_space<vmem>>, %arg3: memref<128x32xbf16, #tpu.memory_space<vmem>>, %arg4: memref<1x32xf32, #tpu.memory_space<vmem>>, %arg5: memref<32x288xbf16, #tpu.memory_space<vmem>>, %arg6: memref<1x32xf32, #tpu.memory_space<vmem>>, %arg7: memref<32x128xbf16, #tpu.memory_space<vmem>>, %arg8: memref<1x128xf32, #tpu.memory_space<vmem>>, %arg9: memref<9x64x32xf32, #tpu.memory_space<vmem>>, %arg10: memref<4x64x128xbf16, #tpu.memory_space<vmem>>, %arg11: memref<64x32xf32, #tpu.memory_space<vmem>>, %arg12: memref<64x32xf32, #tpu.memory_space<vmem>>, %arg13: memref<64x128xf32, #tpu.memory_space<vmem>>, %arg14: memref<256x32xf32, #tpu.memory_space<vmem>>) attributes {dimension_semantics = [#tpu.dimension_semantics<parallel>, #tpu.dimension_semantics<arbitrary>], iteration_bounds = array<i64: 2, 2>, scalar_prefetch = 0 : i64, scratch_operands = 4 : i64, tpu.core_type = #tpu.core_type<tc>, window_params = [{transform_indices = @transform_0, window_bounds = array<i64: 4, 64, 128>}, {pipeline_mode = #tpu.pipeline_mode<synchronous>, transform_indices = @transform_1, window_bounds = array<i64: 128, 32>}, {pipeline_mode = #tpu.pipeline_mode<synchronous>, transform_indices = @transform_2, window_bounds = array<i64: 1, 32>}, {pipeline_mode = #tpu.pipeline_mode<synchronous>, transform_indices = @transform_3, window_bounds = array<i64: 32, 288>}, {pipeline_mode = #tpu.pipeline_mode<synchronous>, transform_indices = @transform_4, window_bounds = array<i64: 1, 32>}, {pipeline_mode = #tpu.pipeline_mode<synchronous>, transform_indices = @transform_5, window_bounds = array<i64: 32, 128>}, {pipeline_mode = #tpu.pipeline_mode<synchronous>, transform_indices = @transform_6, window_bounds = array<i64: 1, 128>}, {pipeline_mode = #tpu.pipeline_mode<synchronous>, transform_indices = @transform_7, window_bounds = array<i64: 9, 64, 32>}, {transform_indices = @transform_8, window_bounds = array<i64: 4, 64, 128>}]} {
    %c0_i32 = arith.constant 0 : i32
    %0 = arith.cmpi eq, %arg1, %c0_i32 : i32
    %1 = arith.extui %0 : i1 to i32
    %c0_i32_0 = arith.constant 0 : i32
    %2 = arith.cmpi ne, %1, %c0_i32_0 : i32
    scf.if %2 {
      %cst_251 = arith.constant 0.000000e+00 : f32
      %385 = vector.broadcast %cst_251 : f32 to vector<64x32xf32>
      %c0_252 = arith.constant 0 : index
      %c0_253 = arith.constant 0 : index
      %386 = vector.load %arg11[%c0_252, %c0_253] : memref<64x32xf32, #tpu.memory_space<vmem>>, vector<64x32xf32>
      tpu.vector_store %arg11[%c0_252, %c0_253], %385 {strides = array<i32>} : memref<64x32xf32, #tpu.memory_space<vmem>>, vector<64x32xf32>,
      %cst_254 = arith.constant 0.000000e+00 : f32
      %387 = vector.broadcast %cst_254 : f32 to vector<64x32xf32>
      %c0_255 = arith.constant 0 : index
      %c0_256 = arith.constant 0 : index
      %388 = vector.load %arg12[%c0_255, %c0_256] : memref<64x32xf32, #tpu.memory_space<vmem>>, vector<64x32xf32>
      tpu.vector_store %arg12[%c0_255, %c0_256], %387 {strides = array<i32>} : memref<64x32xf32, #tpu.memory_space<vmem>>, vector<64x32xf32>,
      %cst_257 = arith.constant 0.000000e+00 : f32
      %389 = vector.broadcast %cst_257 : f32 to vector<64x128xf32>
      %c0_258 = arith.constant 0 : index
      %c0_259 = arith.constant 0 : index
      %390 = vector.load %arg13[%c0_258, %c0_259] : memref<64x128xf32, #tpu.memory_space<vmem>>, vector<64x128xf32>
      tpu.vector_store %arg13[%c0_258, %c0_259], %389 {strides = array<i32>} : memref<64x128xf32, #tpu.memory_space<vmem>>, vector<64x128xf32>,
    } else {
    }
    %c0 = arith.constant 0 : index
    %c0_1 = arith.constant 0 : index
    %c0_2 = arith.constant 0 : index
    %3 = vector.load %arg2[%c0, %c0_1, %c0_2] : memref<4x64x128xbf16, #tpu.memory_space<vmem>>, vector<4x64x128xbf16>
    %4 = vector.shape_cast %3 : vector<4x64x128xbf16> to vector<256x128xbf16>
    %c0_3 = arith.constant 0 : index
    %c0_4 = arith.constant 0 : index
    %5 = vector.load %arg3[%c0_3, %c0_4] : memref<128x32xbf16, #tpu.memory_space<vmem>>, vector<128x32xbf16>
    %cst = arith.constant dense<0.000000e+00> : vector<256x32xf32>
    %6 = tpu.matmul %4, %5, %cst {dimension_numbers = #tpu.dot_dimension_numbers<[1], [0], [0], [1], [0, 0, 1, 1], [], []>} : vector<256x128xbf16>, vector<128x32xbf16>, vector<256x32xf32> -> vector<256x32xf32>
    %c0_5 = arith.constant 0 : index
    %c0_6 = arith.constant 0 : index
    %7 = vector.load %arg4[%c0_5, %c0_6] : memref<1x32xf32, #tpu.memory_space<vmem>>, vector<1x32xf32>
    %8 = vector.broadcast %7 : vector<1x32xf32> to vector<256x32xf32>
    %9 = arith.addf %6, %8 : vector<256x32xf32>
    %c0_7 = arith.constant 0 : index
    %c0_8 = arith.constant 0 : index
    %10 = vector.load %arg14[%c0_7, %c0_8] : memref<256x32xf32, #tpu.memory_space<vmem>>, vector<256x32xf32>
    tpu.vector_store %arg14[%c0_7, %c0_8], %9 {strides = array<i32>} : memref<256x32xf32, #tpu.memory_space<vmem>>, vector<256x32xf32>,
    %c0_9 = arith.constant 0 : index
    %c0_10 = arith.constant 0 : index
    %11 = vector.load %arg6[%c0_9, %c0_10] : memref<1x32xf32, #tpu.memory_space<vmem>>, vector<1x32xf32>
    %12 = vector.shape_cast %11 : vector<1x32xf32> to vector<1x32xf32>
    %13 = vector.broadcast %12 : vector<1x32xf32> to vector<64x32xf32>
    %c0_11 = arith.constant 0 : index
    %c0_12 = arith.constant 0 : index
    %14 = vector.load %arg8[%c0_11, %c0_12] : memref<1x128xf32, #tpu.memory_space<vmem>>, vector<1x128xf32>
    %15 = vector.shape_cast %14 : vector<1x128xf32> to vector<1x128xf32>
    %16 = vector.broadcast %15 : vector<1x128xf32> to vector<64x128xf32>
    %c0_13 = arith.constant 0 : index
    %c0_14 = arith.constant 0 : index
    %17 = vector.load %arg14[%c0_13, %c0_14] : memref<256x32xf32, #tpu.memory_space<vmem>>, vector<64x32xf32>
    %c0_15 = arith.constant 0 : index
    %c0_16 = arith.constant 0 : index
    %18 = vector.load %arg11[%c0_15, %c0_16] : memref<64x32xf32, #tpu.memory_space<vmem>>, vector<64x32xf32>
    %19 = arith.addf %18, %17 : vector<64x32xf32>
    %cst_17 = arith.constant 1.000000e+00 : f32
    %20 = vector.broadcast %cst_17 : f32 to vector<64x32xf32>
    %21 = arith.cmpf oge, %19, %20 : vector<64x32xf32>
    %cst_18 = arith.constant 0.000000e+00 : f32
    %22 = vector.broadcast %cst_18 : f32 to vector<64x32xf32>
    %23 = arith.select %21, %22, %19 : vector<64x32xi1>, vector<64x32xf32>
    %c0_19 = arith.constant 0 : index
    %c0_20 = arith.constant 0 : index
    %24 = vector.load %arg11[%c0_19, %c0_20] : memref<64x32xf32, #tpu.memory_space<vmem>>, vector<64x32xf32>
    tpu.vector_store %arg11[%c0_19, %c0_20], %23 {strides = array<i32>} : memref<64x32xf32, #tpu.memory_space<vmem>>, vector<64x32xf32>,
    %25 = arith.extui %21 : vector<64x32xi1> to vector<64x32xi32>
    %26 = arith.sitofp %25 : vector<64x32xi32> to vector<64x32xf32>
    %27 = arith.truncf %26 : vector<64x32xf32> to vector<64x32xbf16>
    %c0_21 = arith.constant 0 : index
    %c0_22 = arith.constant 0 : index
    %28 = vector.load %arg5[%c0_21, %c0_22] : memref<32x288xbf16, #tpu.memory_space<vmem>>, vector<32x288xbf16>
    %cst_23 = arith.constant dense<0.000000e+00> : vector<64x288xf32>
    %29 = tpu.matmul %27, %28, %cst_23 {dimension_numbers = #tpu.dot_dimension_numbers<[1], [0], [0], [1], [0, 0, 1, 1], [], []>} : vector<64x32xbf16>, vector<32x288xbf16>, vector<64x288xf32> -> vector<64x288xf32>
    %30 = vector.extract_strided_slice %29 {offsets = [0, 128], sizes = [64, 32], strides = [1, 1]} : vector<64x288xf32> to vector<64x32xf32>
    %31 = arith.addf %30, %13 : vector<64x32xf32>
    %32 = vector.extract_strided_slice %29 {offsets = [0, 0], sizes = [64, 32], strides = [1, 1]} : vector<64x288xf32> to vector<64x32xf32>
    %c9_i32 = arith.constant 9 : i32
    %33 = tpu.dynamic_rotate %32 by %c9_i32 dim 0 : vector<64x32xf32>, i32 -> vector<64x32xf32>
    %c0_24 = arith.constant 0 : index
    %c0_25 = arith.constant 0 : index
    %c0_26 = arith.constant 0 : index
    %34 = vector.load %arg9[%c0_24, %c0_25, %c0_26] : memref<9x64x32xf32, #tpu.memory_space<vmem>>, vector<1x64x32xf32>
    %35 = vector.shape_cast %34 : vector<1x64x32xf32> to vector<64x32xf32>
    %36 = arith.mulf %33, %35 : vector<64x32xf32>
    %37 = arith.addf %31, %36 : vector<64x32xf32>
    %38 = vector.extract_strided_slice %29 {offsets = [0, 32], sizes = [64, 32], strides = [1, 1]} : vector<64x288xf32> to vector<64x32xf32>
    %c8_i32 = arith.constant 8 : i32
    %39 = tpu.dynamic_rotate %38 by %c8_i32 dim 0 : vector<64x32xf32>, i32 -> vector<64x32xf32>
    %c1 = arith.constant 1 : index
    %c0_27 = arith.constant 0 : index
    %c0_28 = arith.constant 0 : index
    %40 = vector.load %arg9[%c1, %c0_27, %c0_28] : memref<9x64x32xf32, #tpu.memory_space<vmem>>, vector<1x64x32xf32>
    %41 = vector.shape_cast %40 : vector<1x64x32xf32> to vector<64x32xf32>
    %42 = arith.mulf %39, %41 : vector<64x32xf32>
    %43 = arith.addf %37, %42 : vector<64x32xf32>
    %44 = vector.extract_strided_slice %29 {offsets = [0, 64], sizes = [64, 32], strides = [1, 1]} : vector<64x288xf32> to vector<64x32xf32>
    %c7_i32 = arith.constant 7 : i32
    %45 = tpu.dynamic_rotate %44 by %c7_i32 dim 0 : vector<64x32xf32>, i32 -> vector<64x32xf32>
    %c2 = arith.constant 2 : index
    %c0_29 = arith.constant 0 : index
    %c0_30 = arith.constant 0 : index
    %46 = vector.load %arg9[%c2, %c0_29, %c0_30] : memref<9x64x32xf32, #tpu.memory_space<vmem>>, vector<1x64x32xf32>
    %47 = vector.shape_cast %46 : vector<1x64x32xf32> to vector<64x32xf32>
    %48 = arith.mulf %45, %47 : vector<64x32xf32>
    %49 = arith.addf %43, %48 : vector<64x32xf32>
    %50 = vector.extract_strided_slice %29 {offsets = [0, 96], sizes = [64, 32], strides = [1, 1]} : vector<64x288xf32> to vector<64x32xf32>
    %c1_i32 = arith.constant 1 : i32
    %51 = tpu.dynamic_rotate %50 by %c1_i32 dim 0 : vector<64x32xf32>, i32 -> vector<64x32xf32>
    %c3 = arith.constant 3 : index
    %c0_31 = arith.constant 0 : index
    %c0_32 = arith.constant 0 : index
    %52 = vector.load %arg9[%c3, %c0_31, %c0_32] : memref<9x64x32xf32, #tpu.memory_space<vmem>>, vector<1x64x32xf32>
    %53 = vector.shape_cast %52 : vector<1x64x32xf32> to vector<64x32xf32>
    %54 = arith.mulf %51, %53 : vector<64x32xf32>
    %55 = arith.addf %49, %54 : vector<64x32xf32>
    %56 = vector.extract_strided_slice %29 {offsets = [0, 160], sizes = [64, 32], strides = [1, 1]} : vector<64x288xf32> to vector<64x32xf32>
    %c63_i32 = arith.constant 63 : i32
    %57 = tpu.dynamic_rotate %56 by %c63_i32 dim 0 : vector<64x32xf32>, i32 -> vector<64x32xf32>
    %c5 = arith.constant 5 : index
    %c0_33 = arith.constant 0 : index
    %c0_34 = arith.constant 0 : index
    %58 = vector.load %arg9[%c5, %c0_33, %c0_34] : memref<9x64x32xf32, #tpu.memory_space<vmem>>, vector<1x64x32xf32>
    %59 = vector.shape_cast %58 : vector<1x64x32xf32> to vector<64x32xf32>
    %60 = arith.mulf %57, %59 : vector<64x32xf32>
    %61 = arith.addf %55, %60 : vector<64x32xf32>
    %62 = vector.extract_strided_slice %29 {offsets = [0, 192], sizes = [64, 32], strides = [1, 1]} : vector<64x288xf32> to vector<64x32xf32>
    %c57_i32 = arith.constant 57 : i32
    %63 = tpu.dynamic_rotate %62 by %c57_i32 dim 0 : vector<64x32xf32>, i32 -> vector<64x32xf32>
    %c6 = arith.constant 6 : index
    %c0_35 = arith.constant 0 : index
    %c0_36 = arith.constant 0 : index
    %64 = vector.load %arg9[%c6, %c0_35, %c0_36] : memref<9x64x32xf32, #tpu.memory_space<vmem>>, vector<1x64x32xf32>
    %65 = vector.shape_cast %64 : vector<1x64x32xf32> to vector<64x32xf32>
    %66 = arith.mulf %63, %65 : vector<64x32xf32>
    %67 = arith.addf %61, %66 : vector<64x32xf32>
    %68 = vector.extract_strided_slice %29 {offsets = [0, 224], sizes = [64, 32], strides = [1, 1]} : vector<64x288xf32> to vector<64x32xf32>
    %c56_i32 = arith.constant 56 : i32
    %69 = tpu.dynamic_rotate %68 by %c56_i32 dim 0 : vector<64x32xf32>, i32 -> vector<64x32xf32>
    %c7 = arith.constant 7 : index
    %c0_37 = arith.constant 0 : index
    %c0_38 = arith.constant 0 : index
    %70 = vector.load %arg9[%c7, %c0_37, %c0_38] : memref<9x64x32xf32, #tpu.memory_space<vmem>>, vector<1x64x32xf32>
    %71 = vector.shape_cast %70 : vector<1x64x32xf32> to vector<64x32xf32>
    %72 = arith.mulf %69, %71 : vector<64x32xf32>
    %73 = arith.addf %67, %72 : vector<64x32xf32>
    %74 = vector.extract_strided_slice %29 {offsets = [0, 256], sizes = [64, 32], strides = [1, 1]} : vector<64x288xf32> to vector<64x32xf32>
    %c55_i32 = arith.constant 55 : i32
    %75 = tpu.dynamic_rotate %74 by %c55_i32 dim 0 : vector<64x32xf32>, i32 -> vector<64x32xf32>
    %c8 = arith.constant 8 : index
    %c0_39 = arith.constant 0 : index
    %c0_40 = arith.constant 0 : index
    %76 = vector.load %arg9[%c8, %c0_39, %c0_40] : memref<9x64x32xf32, #tpu.memory_space<vmem>>, vector<1x64x32xf32>
    %77 = vector.shape_cast %76 : vector<1x64x32xf32> to vector<64x32xf32>
    %78 = arith.mulf %75, %77 : vector<64x32xf32>
    %79 = arith.addf %73, %78 : vector<64x32xf32>
    %c0_41 = arith.constant 0 : index
    %c0_42 = arith.constant 0 : index
    %80 = vector.load %arg12[%c0_41, %c0_42] : memref<64x32xf32, #tpu.memory_space<vmem>>, vector<64x32xf32>
    %81 = arith.addf %80, %79 : vector<64x32xf32>
    %cst_43 = arith.constant 1.000000e+00 : f32
    %82 = vector.broadcast %cst_43 : f32 to vector<64x32xf32>
    %83 = arith.cmpf oge, %81, %82 : vector<64x32xf32>
    %cst_44 = arith.constant 0.000000e+00 : f32
    %84 = vector.broadcast %cst_44 : f32 to vector<64x32xf32>
    %85 = arith.select %83, %84, %81 : vector<64x32xi1>, vector<64x32xf32>
    %c0_45 = arith.constant 0 : index
    %c0_46 = arith.constant 0 : index
    %86 = vector.load %arg12[%c0_45, %c0_46] : memref<64x32xf32, #tpu.memory_space<vmem>>, vector<64x32xf32>
    tpu.vector_store %arg12[%c0_45, %c0_46], %85 {strides = array<i32>} : memref<64x32xf32, #tpu.memory_space<vmem>>, vector<64x32xf32>,
    %87 = arith.extui %83 : vector<64x32xi1> to vector<64x32xi32>
    %88 = arith.sitofp %87 : vector<64x32xi32> to vector<64x32xf32>
    %89 = arith.truncf %88 : vector<64x32xf32> to vector<64x32xbf16>
    %c0_47 = arith.constant 0 : index
    %c0_48 = arith.constant 0 : index
    %90 = vector.load %arg7[%c0_47, %c0_48] : memref<32x128xbf16, #tpu.memory_space<vmem>>, vector<32x128xbf16>
    %cst_49 = arith.constant dense<0.000000e+00> : vector<64x128xf32>
    %91 = tpu.matmul %89, %90, %cst_49 {dimension_numbers = #tpu.dot_dimension_numbers<[1], [0], [0], [1], [0, 0, 1, 1], [], []>} : vector<64x32xbf16>, vector<32x128xbf16>, vector<64x128xf32> -> vector<64x128xf32>
    %92 = arith.addf %91, %16 : vector<64x128xf32>
    %c0_50 = arith.constant 0 : index
    %c0_51 = arith.constant 0 : index
    %93 = vector.load %arg13[%c0_50, %c0_51] : memref<64x128xf32, #tpu.memory_space<vmem>>, vector<64x128xf32>
    %94 = arith.addf %93, %92 : vector<64x128xf32>
    %cst_52 = arith.constant 1.000000e+00 : f32
    %95 = vector.broadcast %cst_52 : f32 to vector<64x128xf32>
    %96 = arith.cmpf oge, %94, %95 : vector<64x128xf32>
    %cst_53 = arith.constant 0.000000e+00 : f32
    %97 = vector.broadcast %cst_53 : f32 to vector<64x128xf32>
    %98 = arith.select %96, %97, %94 : vector<64x128xi1>, vector<64x128xf32>
    %c0_54 = arith.constant 0 : index
    %c0_55 = arith.constant 0 : index
    %99 = vector.load %arg13[%c0_54, %c0_55] : memref<64x128xf32, #tpu.memory_space<vmem>>, vector<64x128xf32>
    tpu.vector_store %arg13[%c0_54, %c0_55], %98 {strides = array<i32>} : memref<64x128xf32, #tpu.memory_space<vmem>>, vector<64x128xf32>,
    %c0_56 = arith.constant 0 : index
    %c0_57 = arith.constant 0 : index
    %c0_58 = arith.constant 0 : index
    %100 = vector.load %arg2[%c0_56, %c0_57, %c0_58] : memref<4x64x128xbf16, #tpu.memory_space<vmem>>, vector<1x64x128xbf16>
    %101 = vector.shape_cast %100 : vector<1x64x128xbf16> to vector<64x128xbf16>
    %102 = arith.extui %96 : vector<64x128xi1> to vector<64x128xi32>
    %103 = arith.sitofp %102 : vector<64x128xi32> to vector<64x128xf32>
    %104 = arith.truncf %103 : vector<64x128xf32> to vector<64x128xbf16>
    %105 = arith.addf %101, %104 : vector<64x128xbf16>
    %c0_59 = arith.constant 0 : index
    %c0_60 = arith.constant 0 : index
    %c0_61 = arith.constant 0 : index
    %106 = vector.load %arg10[%c0_59, %c0_60, %c0_61] : memref<4x64x128xbf16, #tpu.memory_space<vmem>>, vector<1x64x128xbf16>
    %107 = vector.shape_cast %106 : vector<1x64x128xbf16> to vector<64x128xbf16>
    %108 = vector.shape_cast %105 : vector<64x128xbf16> to vector<1x64x128xbf16>
    tpu.vector_store %arg10[%c0_59, %c0_60, %c0_61], %108 {strides = array<i32>} : memref<4x64x128xbf16, #tpu.memory_space<vmem>>, vector<1x64x128xbf16>,
    %c64 = arith.constant 64 : index
    %c0_62 = arith.constant 0 : index
    %109 = vector.load %arg14[%c64, %c0_62] : memref<256x32xf32, #tpu.memory_space<vmem>>, vector<64x32xf32>
    %c0_63 = arith.constant 0 : index
    %c0_64 = arith.constant 0 : index
    %110 = vector.load %arg11[%c0_63, %c0_64] : memref<64x32xf32, #tpu.memory_space<vmem>>, vector<64x32xf32>
    %111 = arith.addf %110, %109 : vector<64x32xf32>
    %cst_65 = arith.constant 1.000000e+00 : f32
    %112 = vector.broadcast %cst_65 : f32 to vector<64x32xf32>
    %113 = arith.cmpf oge, %111, %112 : vector<64x32xf32>
    %cst_66 = arith.constant 0.000000e+00 : f32
    %114 = vector.broadcast %cst_66 : f32 to vector<64x32xf32>
    %115 = arith.select %113, %114, %111 : vector<64x32xi1>, vector<64x32xf32>
    %c0_67 = arith.constant 0 : index
    %c0_68 = arith.constant 0 : index
    %116 = vector.load %arg11[%c0_67, %c0_68] : memref<64x32xf32, #tpu.memory_space<vmem>>, vector<64x32xf32>
    tpu.vector_store %arg11[%c0_67, %c0_68], %115 {strides = array<i32>} : memref<64x32xf32, #tpu.memory_space<vmem>>, vector<64x32xf32>,
    %117 = arith.extui %113 : vector<64x32xi1> to vector<64x32xi32>
    %118 = arith.sitofp %117 : vector<64x32xi32> to vector<64x32xf32>
    %119 = arith.truncf %118 : vector<64x32xf32> to vector<64x32xbf16>
    %c0_69 = arith.constant 0 : index
    %c0_70 = arith.constant 0 : index
    %120 = vector.load %arg5[%c0_69, %c0_70] : memref<32x288xbf16, #tpu.memory_space<vmem>>, vector<32x288xbf16>
    %cst_71 = arith.constant dense<0.000000e+00> : vector<64x288xf32>
    %121 = tpu.matmul %119, %120, %cst_71 {dimension_numbers = #tpu.dot_dimension_numbers<[1], [0], [0], [1], [0, 0, 1, 1], [], []>} : vector<64x32xbf16>, vector<32x288xbf16>, vector<64x288xf32> -> vector<64x288xf32>
    %122 = vector.extract_strided_slice %121 {offsets = [0, 128], sizes = [64, 32], strides = [1, 1]} : vector<64x288xf32> to vector<64x32xf32>
    %123 = arith.addf %122, %13 : vector<64x32xf32>
    %124 = vector.extract_strided_slice %121 {offsets = [0, 0], sizes = [64, 32], strides = [1, 1]} : vector<64x288xf32> to vector<64x32xf32>
    %c9_i32_72 = arith.constant 9 : i32
    %125 = tpu.dynamic_rotate %124 by %c9_i32_72 dim 0 : vector<64x32xf32>, i32 -> vector<64x32xf32>
    %c0_73 = arith.constant 0 : index
    %c0_74 = arith.constant 0 : index
    %c0_75 = arith.constant 0 : index
    %126 = vector.load %arg9[%c0_73, %c0_74, %c0_75] : memref<9x64x32xf32, #tpu.memory_space<vmem>>, vector<1x64x32xf32>
    %127 = vector.shape_cast %126 : vector<1x64x32xf32> to vector<64x32xf32>
    %128 = arith.mulf %125, %127 : vector<64x32xf32>
    %129 = arith.addf %123, %128 : vector<64x32xf32>
    %130 = vector.extract_strided_slice %121 {offsets = [0, 32], sizes = [64, 32], strides = [1, 1]} : vector<64x288xf32> to vector<64x32xf32>
    %c8_i32_76 = arith.constant 8 : i32
    %131 = tpu.dynamic_rotate %130 by %c8_i32_76 dim 0 : vector<64x32xf32>, i32 -> vector<64x32xf32>
    %c1_77 = arith.constant 1 : index
    %c0_78 = arith.constant 0 : index
    %c0_79 = arith.constant 0 : index
    %132 = vector.load %arg9[%c1_77, %c0_78, %c0_79] : memref<9x64x32xf32, #tpu.memory_space<vmem>>, vector<1x64x32xf32>
    %133 = vector.shape_cast %132 : vector<1x64x32xf32> to vector<64x32xf32>
    %134 = arith.mulf %131, %133 : vector<64x32xf32>
    %135 = arith.addf %129, %134 : vector<64x32xf32>
    %136 = vector.extract_strided_slice %121 {offsets = [0, 64], sizes = [64, 32], strides = [1, 1]} : vector<64x288xf32> to vector<64x32xf32>
    %c7_i32_80 = arith.constant 7 : i32
    %137 = tpu.dynamic_rotate %136 by %c7_i32_80 dim 0 : vector<64x32xf32>, i32 -> vector<64x32xf32>
    %c2_81 = arith.constant 2 : index
    %c0_82 = arith.constant 0 : index
    %c0_83 = arith.constant 0 : index
    %138 = vector.load %arg9[%c2_81, %c0_82, %c0_83] : memref<9x64x32xf32, #tpu.memory_space<vmem>>, vector<1x64x32xf32>
    %139 = vector.shape_cast %138 : vector<1x64x32xf32> to vector<64x32xf32>
    %140 = arith.mulf %137, %139 : vector<64x32xf32>
    %141 = arith.addf %135, %140 : vector<64x32xf32>
    %142 = vector.extract_strided_slice %121 {offsets = [0, 96], sizes = [64, 32], strides = [1, 1]} : vector<64x288xf32> to vector<64x32xf32>
    %c1_i32_84 = arith.constant 1 : i32
    %143 = tpu.dynamic_rotate %142 by %c1_i32_84 dim 0 : vector<64x32xf32>, i32 -> vector<64x32xf32>
    %c3_85 = arith.constant 3 : index
    %c0_86 = arith.constant 0 : index
    %c0_87 = arith.constant 0 : index
    %144 = vector.load %arg9[%c3_85, %c0_86, %c0_87] : memref<9x64x32xf32, #tpu.memory_space<vmem>>, vector<1x64x32xf32>
    %145 = vector.shape_cast %144 : vector<1x64x32xf32> to vector<64x32xf32>
    %146 = arith.mulf %143, %145 : vector<64x32xf32>
    %147 = arith.addf %141, %146 : vector<64x32xf32>
    %148 = vector.extract_strided_slice %121 {offsets = [0, 160], sizes = [64, 32], strides = [1, 1]} : vector<64x288xf32> to vector<64x32xf32>
    %c63_i32_88 = arith.constant 63 : i32
    %149 = tpu.dynamic_rotate %148 by %c63_i32_88 dim 0 : vector<64x32xf32>, i32 -> vector<64x32xf32>
    %c5_89 = arith.constant 5 : index
    %c0_90 = arith.constant 0 : index
    %c0_91 = arith.constant 0 : index
    %150 = vector.load %arg9[%c5_89, %c0_90, %c0_91] : memref<9x64x32xf32, #tpu.memory_space<vmem>>, vector<1x64x32xf32>
    %151 = vector.shape_cast %150 : vector<1x64x32xf32> to vector<64x32xf32>
    %152 = arith.mulf %149, %151 : vector<64x32xf32>
    %153 = arith.addf %147, %152 : vector<64x32xf32>
    %154 = vector.extract_strided_slice %121 {offsets = [0, 192], sizes = [64, 32], strides = [1, 1]} : vector<64x288xf32> to vector<64x32xf32>
    %c57_i32_92 = arith.constant 57 : i32
    %155 = tpu.dynamic_rotate %154 by %c57_i32_92 dim 0 : vector<64x32xf32>, i32 -> vector<64x32xf32>
    %c6_93 = arith.constant 6 : index
    %c0_94 = arith.constant 0 : index
    %c0_95 = arith.constant 0 : index
    %156 = vector.load %arg9[%c6_93, %c0_94, %c0_95] : memref<9x64x32xf32, #tpu.memory_space<vmem>>, vector<1x64x32xf32>
    %157 = vector.shape_cast %156 : vector<1x64x32xf32> to vector<64x32xf32>
    %158 = arith.mulf %155, %157 : vector<64x32xf32>
    %159 = arith.addf %153, %158 : vector<64x32xf32>
    %160 = vector.extract_strided_slice %121 {offsets = [0, 224], sizes = [64, 32], strides = [1, 1]} : vector<64x288xf32> to vector<64x32xf32>
    %c56_i32_96 = arith.constant 56 : i32
    %161 = tpu.dynamic_rotate %160 by %c56_i32_96 dim 0 : vector<64x32xf32>, i32 -> vector<64x32xf32>
    %c7_97 = arith.constant 7 : index
    %c0_98 = arith.constant 0 : index
    %c0_99 = arith.constant 0 : index
    %162 = vector.load %arg9[%c7_97, %c0_98, %c0_99] : memref<9x64x32xf32, #tpu.memory_space<vmem>>, vector<1x64x32xf32>
    %163 = vector.shape_cast %162 : vector<1x64x32xf32> to vector<64x32xf32>
    %164 = arith.mulf %161, %163 : vector<64x32xf32>
    %165 = arith.addf %159, %164 : vector<64x32xf32>
    %166 = vector.extract_strided_slice %121 {offsets = [0, 256], sizes = [64, 32], strides = [1, 1]} : vector<64x288xf32> to vector<64x32xf32>
    %c55_i32_100 = arith.constant 55 : i32
    %167 = tpu.dynamic_rotate %166 by %c55_i32_100 dim 0 : vector<64x32xf32>, i32 -> vector<64x32xf32>
    %c8_101 = arith.constant 8 : index
    %c0_102 = arith.constant 0 : index
    %c0_103 = arith.constant 0 : index
    %168 = vector.load %arg9[%c8_101, %c0_102, %c0_103] : memref<9x64x32xf32, #tpu.memory_space<vmem>>, vector<1x64x32xf32>
    %169 = vector.shape_cast %168 : vector<1x64x32xf32> to vector<64x32xf32>
    %170 = arith.mulf %167, %169 : vector<64x32xf32>
    %171 = arith.addf %165, %170 : vector<64x32xf32>
    %c0_104 = arith.constant 0 : index
    %c0_105 = arith.constant 0 : index
    %172 = vector.load %arg12[%c0_104, %c0_105] : memref<64x32xf32, #tpu.memory_space<vmem>>, vector<64x32xf32>
    %173 = arith.addf %172, %171 : vector<64x32xf32>
    %cst_106 = arith.constant 1.000000e+00 : f32
    %174 = vector.broadcast %cst_106 : f32 to vector<64x32xf32>
    %175 = arith.cmpf oge, %173, %174 : vector<64x32xf32>
    %cst_107 = arith.constant 0.000000e+00 : f32
    %176 = vector.broadcast %cst_107 : f32 to vector<64x32xf32>
    %177 = arith.select %175, %176, %173 : vector<64x32xi1>, vector<64x32xf32>
    %c0_108 = arith.constant 0 : index
    %c0_109 = arith.constant 0 : index
    %178 = vector.load %arg12[%c0_108, %c0_109] : memref<64x32xf32, #tpu.memory_space<vmem>>, vector<64x32xf32>
    tpu.vector_store %arg12[%c0_108, %c0_109], %177 {strides = array<i32>} : memref<64x32xf32, #tpu.memory_space<vmem>>, vector<64x32xf32>,
    %179 = arith.extui %175 : vector<64x32xi1> to vector<64x32xi32>
    %180 = arith.sitofp %179 : vector<64x32xi32> to vector<64x32xf32>
    %181 = arith.truncf %180 : vector<64x32xf32> to vector<64x32xbf16>
    %c0_110 = arith.constant 0 : index
    %c0_111 = arith.constant 0 : index
    %182 = vector.load %arg7[%c0_110, %c0_111] : memref<32x128xbf16, #tpu.memory_space<vmem>>, vector<32x128xbf16>
    %cst_112 = arith.constant dense<0.000000e+00> : vector<64x128xf32>
    %183 = tpu.matmul %181, %182, %cst_112 {dimension_numbers = #tpu.dot_dimension_numbers<[1], [0], [0], [1], [0, 0, 1, 1], [], []>} : vector<64x32xbf16>, vector<32x128xbf16>, vector<64x128xf32> -> vector<64x128xf32>
    %184 = arith.addf %183, %16 : vector<64x128xf32>
    %c0_113 = arith.constant 0 : index
    %c0_114 = arith.constant 0 : index
    %185 = vector.load %arg13[%c0_113, %c0_114] : memref<64x128xf32, #tpu.memory_space<vmem>>, vector<64x128xf32>
    %186 = arith.addf %185, %184 : vector<64x128xf32>
    %cst_115 = arith.constant 1.000000e+00 : f32
    %187 = vector.broadcast %cst_115 : f32 to vector<64x128xf32>
    %188 = arith.cmpf oge, %186, %187 : vector<64x128xf32>
    %cst_116 = arith.constant 0.000000e+00 : f32
    %189 = vector.broadcast %cst_116 : f32 to vector<64x128xf32>
    %190 = arith.select %188, %189, %186 : vector<64x128xi1>, vector<64x128xf32>
    %c0_117 = arith.constant 0 : index
    %c0_118 = arith.constant 0 : index
    %191 = vector.load %arg13[%c0_117, %c0_118] : memref<64x128xf32, #tpu.memory_space<vmem>>, vector<64x128xf32>
    tpu.vector_store %arg13[%c0_117, %c0_118], %190 {strides = array<i32>} : memref<64x128xf32, #tpu.memory_space<vmem>>, vector<64x128xf32>,
    %c1_119 = arith.constant 1 : index
    %c0_120 = arith.constant 0 : index
    %c0_121 = arith.constant 0 : index
    %192 = vector.load %arg2[%c1_119, %c0_120, %c0_121] : memref<4x64x128xbf16, #tpu.memory_space<vmem>>, vector<1x64x128xbf16>
    %193 = vector.shape_cast %192 : vector<1x64x128xbf16> to vector<64x128xbf16>
    %194 = arith.extui %188 : vector<64x128xi1> to vector<64x128xi32>
    %195 = arith.sitofp %194 : vector<64x128xi32> to vector<64x128xf32>
    %196 = arith.truncf %195 : vector<64x128xf32> to vector<64x128xbf16>
    %197 = arith.addf %193, %196 : vector<64x128xbf16>
    %c1_122 = arith.constant 1 : index
    %c0_123 = arith.constant 0 : index
    %c0_124 = arith.constant 0 : index
    %198 = vector.load %arg10[%c1_122, %c0_123, %c0_124] : memref<4x64x128xbf16, #tpu.memory_space<vmem>>, vector<1x64x128xbf16>
    %199 = vector.shape_cast %198 : vector<1x64x128xbf16> to vector<64x128xbf16>
    %200 = vector.shape_cast %197 : vector<64x128xbf16> to vector<1x64x128xbf16>
    tpu.vector_store %arg10[%c1_122, %c0_123, %c0_124], %200 {strides = array<i32>} : memref<4x64x128xbf16, #tpu.memory_space<vmem>>, vector<1x64x128xbf16>,
    %c128 = arith.constant 128 : index
    %c0_125 = arith.constant 0 : index
    %201 = vector.load %arg14[%c128, %c0_125] : memref<256x32xf32, #tpu.memory_space<vmem>>, vector<64x32xf32>
    %c0_126 = arith.constant 0 : index
    %c0_127 = arith.constant 0 : index
    %202 = vector.load %arg11[%c0_126, %c0_127] : memref<64x32xf32, #tpu.memory_space<vmem>>, vector<64x32xf32>
    %203 = arith.addf %202, %201 : vector<64x32xf32>
    %cst_128 = arith.constant 1.000000e+00 : f32
    %204 = vector.broadcast %cst_128 : f32 to vector<64x32xf32>
    %205 = arith.cmpf oge, %203, %204 : vector<64x32xf32>
    %cst_129 = arith.constant 0.000000e+00 : f32
    %206 = vector.broadcast %cst_129 : f32 to vector<64x32xf32>
    %207 = arith.select %205, %206, %203 : vector<64x32xi1>, vector<64x32xf32>
    %c0_130 = arith.constant 0 : index
    %c0_131 = arith.constant 0 : index
    %208 = vector.load %arg11[%c0_130, %c0_131] : memref<64x32xf32, #tpu.memory_space<vmem>>, vector<64x32xf32>
    tpu.vector_store %arg11[%c0_130, %c0_131], %207 {strides = array<i32>} : memref<64x32xf32, #tpu.memory_space<vmem>>, vector<64x32xf32>,
    %209 = arith.extui %205 : vector<64x32xi1> to vector<64x32xi32>
    %210 = arith.sitofp %209 : vector<64x32xi32> to vector<64x32xf32>
    %211 = arith.truncf %210 : vector<64x32xf32> to vector<64x32xbf16>
    %c0_132 = arith.constant 0 : index
    %c0_133 = arith.constant 0 : index
    %212 = vector.load %arg5[%c0_132, %c0_133] : memref<32x288xbf16, #tpu.memory_space<vmem>>, vector<32x288xbf16>
    %cst_134 = arith.constant dense<0.000000e+00> : vector<64x288xf32>
    %213 = tpu.matmul %211, %212, %cst_134 {dimension_numbers = #tpu.dot_dimension_numbers<[1], [0], [0], [1], [0, 0, 1, 1], [], []>} : vector<64x32xbf16>, vector<32x288xbf16>, vector<64x288xf32> -> vector<64x288xf32>
    %214 = vector.extract_strided_slice %213 {offsets = [0, 128], sizes = [64, 32], strides = [1, 1]} : vector<64x288xf32> to vector<64x32xf32>
    %215 = arith.addf %214, %13 : vector<64x32xf32>
    %216 = vector.extract_strided_slice %213 {offsets = [0, 0], sizes = [64, 32], strides = [1, 1]} : vector<64x288xf32> to vector<64x32xf32>
    %c9_i32_135 = arith.constant 9 : i32
    %217 = tpu.dynamic_rotate %216 by %c9_i32_135 dim 0 : vector<64x32xf32>, i32 -> vector<64x32xf32>
    %c0_136 = arith.constant 0 : index
    %c0_137 = arith.constant 0 : index
    %c0_138 = arith.constant 0 : index
    %218 = vector.load %arg9[%c0_136, %c0_137, %c0_138] : memref<9x64x32xf32, #tpu.memory_space<vmem>>, vector<1x64x32xf32>
    %219 = vector.shape_cast %218 : vector<1x64x32xf32> to vector<64x32xf32>
    %220 = arith.mulf %217, %219 : vector<64x32xf32>
    %221 = arith.addf %215, %220 : vector<64x32xf32>
    %222 = vector.extract_strided_slice %213 {offsets = [0, 32], sizes = [64, 32], strides = [1, 1]} : vector<64x288xf32> to vector<64x32xf32>
    %c8_i32_139 = arith.constant 8 : i32
    %223 = tpu.dynamic_rotate %222 by %c8_i32_139 dim 0 : vector<64x32xf32>, i32 -> vector<64x32xf32>
    %c1_140 = arith.constant 1 : index
    %c0_141 = arith.constant 0 : index
    %c0_142 = arith.constant 0 : index
    %224 = vector.load %arg9[%c1_140, %c0_141, %c0_142] : memref<9x64x32xf32, #tpu.memory_space<vmem>>, vector<1x64x32xf32>
    %225 = vector.shape_cast %224 : vector<1x64x32xf32> to vector<64x32xf32>
    %226 = arith.mulf %223, %225 : vector<64x32xf32>
    %227 = arith.addf %221, %226 : vector<64x32xf32>
    %228 = vector.extract_strided_slice %213 {offsets = [0, 64], sizes = [64, 32], strides = [1, 1]} : vector<64x288xf32> to vector<64x32xf32>
    %c7_i32_143 = arith.constant 7 : i32
    %229 = tpu.dynamic_rotate %228 by %c7_i32_143 dim 0 : vector<64x32xf32>, i32 -> vector<64x32xf32>
    %c2_144 = arith.constant 2 : index
    %c0_145 = arith.constant 0 : index
    %c0_146 = arith.constant 0 : index
    %230 = vector.load %arg9[%c2_144, %c0_145, %c0_146] : memref<9x64x32xf32, #tpu.memory_space<vmem>>, vector<1x64x32xf32>
    %231 = vector.shape_cast %230 : vector<1x64x32xf32> to vector<64x32xf32>
    %232 = arith.mulf %229, %231 : vector<64x32xf32>
    %233 = arith.addf %227, %232 : vector<64x32xf32>
    %234 = vector.extract_strided_slice %213 {offsets = [0, 96], sizes = [64, 32], strides = [1, 1]} : vector<64x288xf32> to vector<64x32xf32>
    %c1_i32_147 = arith.constant 1 : i32
    %235 = tpu.dynamic_rotate %234 by %c1_i32_147 dim 0 : vector<64x32xf32>, i32 -> vector<64x32xf32>
    %c3_148 = arith.constant 3 : index
    %c0_149 = arith.constant 0 : index
    %c0_150 = arith.constant 0 : index
    %236 = vector.load %arg9[%c3_148, %c0_149, %c0_150] : memref<9x64x32xf32, #tpu.memory_space<vmem>>, vector<1x64x32xf32>
    %237 = vector.shape_cast %236 : vector<1x64x32xf32> to vector<64x32xf32>
    %238 = arith.mulf %235, %237 : vector<64x32xf32>
    %239 = arith.addf %233, %238 : vector<64x32xf32>
    %240 = vector.extract_strided_slice %213 {offsets = [0, 160], sizes = [64, 32], strides = [1, 1]} : vector<64x288xf32> to vector<64x32xf32>
    %c63_i32_151 = arith.constant 63 : i32
    %241 = tpu.dynamic_rotate %240 by %c63_i32_151 dim 0 : vector<64x32xf32>, i32 -> vector<64x32xf32>
    %c5_152 = arith.constant 5 : index
    %c0_153 = arith.constant 0 : index
    %c0_154 = arith.constant 0 : index
    %242 = vector.load %arg9[%c5_152, %c0_153, %c0_154] : memref<9x64x32xf32, #tpu.memory_space<vmem>>, vector<1x64x32xf32>
    %243 = vector.shape_cast %242 : vector<1x64x32xf32> to vector<64x32xf32>
    %244 = arith.mulf %241, %243 : vector<64x32xf32>
    %245 = arith.addf %239, %244 : vector<64x32xf32>
    %246 = vector.extract_strided_slice %213 {offsets = [0, 192], sizes = [64, 32], strides = [1, 1]} : vector<64x288xf32> to vector<64x32xf32>
    %c57_i32_155 = arith.constant 57 : i32
    %247 = tpu.dynamic_rotate %246 by %c57_i32_155 dim 0 : vector<64x32xf32>, i32 -> vector<64x32xf32>
    %c6_156 = arith.constant 6 : index
    %c0_157 = arith.constant 0 : index
    %c0_158 = arith.constant 0 : index
    %248 = vector.load %arg9[%c6_156, %c0_157, %c0_158] : memref<9x64x32xf32, #tpu.memory_space<vmem>>, vector<1x64x32xf32>
    %249 = vector.shape_cast %248 : vector<1x64x32xf32> to vector<64x32xf32>
    %250 = arith.mulf %247, %249 : vector<64x32xf32>
    %251 = arith.addf %245, %250 : vector<64x32xf32>
    %252 = vector.extract_strided_slice %213 {offsets = [0, 224], sizes = [64, 32], strides = [1, 1]} : vector<64x288xf32> to vector<64x32xf32>
    %c56_i32_159 = arith.constant 56 : i32
    %253 = tpu.dynamic_rotate %252 by %c56_i32_159 dim 0 : vector<64x32xf32>, i32 -> vector<64x32xf32>
    %c7_160 = arith.constant 7 : index
    %c0_161 = arith.constant 0 : index
    %c0_162 = arith.constant 0 : index
    %254 = vector.load %arg9[%c7_160, %c0_161, %c0_162] : memref<9x64x32xf32, #tpu.memory_space<vmem>>, vector<1x64x32xf32>
    %255 = vector.shape_cast %254 : vector<1x64x32xf32> to vector<64x32xf32>
    %256 = arith.mulf %253, %255 : vector<64x32xf32>
    %257 = arith.addf %251, %256 : vector<64x32xf32>
    %258 = vector.extract_strided_slice %213 {offsets = [0, 256], sizes = [64, 32], strides = [1, 1]} : vector<64x288xf32> to vector<64x32xf32>
    %c55_i32_163 = arith.constant 55 : i32
    %259 = tpu.dynamic_rotate %258 by %c55_i32_163 dim 0 : vector<64x32xf32>, i32 -> vector<64x32xf32>
    %c8_164 = arith.constant 8 : index
    %c0_165 = arith.constant 0 : index
    %c0_166 = arith.constant 0 : index
    %260 = vector.load %arg9[%c8_164, %c0_165, %c0_166] : memref<9x64x32xf32, #tpu.memory_space<vmem>>, vector<1x64x32xf32>
    %261 = vector.shape_cast %260 : vector<1x64x32xf32> to vector<64x32xf32>
    %262 = arith.mulf %259, %261 : vector<64x32xf32>
    %263 = arith.addf %257, %262 : vector<64x32xf32>
    %c0_167 = arith.constant 0 : index
    %c0_168 = arith.constant 0 : index
    %264 = vector.load %arg12[%c0_167, %c0_168] : memref<64x32xf32, #tpu.memory_space<vmem>>, vector<64x32xf32>
    %265 = arith.addf %264, %263 : vector<64x32xf32>
    %cst_169 = arith.constant 1.000000e+00 : f32
    %266 = vector.broadcast %cst_169 : f32 to vector<64x32xf32>
    %267 = arith.cmpf oge, %265, %266 : vector<64x32xf32>
    %cst_170 = arith.constant 0.000000e+00 : f32
    %268 = vector.broadcast %cst_170 : f32 to vector<64x32xf32>
    %269 = arith.select %267, %268, %265 : vector<64x32xi1>, vector<64x32xf32>
    %c0_171 = arith.constant 0 : index
    %c0_172 = arith.constant 0 : index
    %270 = vector.load %arg12[%c0_171, %c0_172] : memref<64x32xf32, #tpu.memory_space<vmem>>, vector<64x32xf32>
    tpu.vector_store %arg12[%c0_171, %c0_172], %269 {strides = array<i32>} : memref<64x32xf32, #tpu.memory_space<vmem>>, vector<64x32xf32>,
    %271 = arith.extui %267 : vector<64x32xi1> to vector<64x32xi32>
    %272 = arith.sitofp %271 : vector<64x32xi32> to vector<64x32xf32>
    %273 = arith.truncf %272 : vector<64x32xf32> to vector<64x32xbf16>
    %c0_173 = arith.constant 0 : index
    %c0_174 = arith.constant 0 : index
    %274 = vector.load %arg7[%c0_173, %c0_174] : memref<32x128xbf16, #tpu.memory_space<vmem>>, vector<32x128xbf16>
    %cst_175 = arith.constant dense<0.000000e+00> : vector<64x128xf32>
    %275 = tpu.matmul %273, %274, %cst_175 {dimension_numbers = #tpu.dot_dimension_numbers<[1], [0], [0], [1], [0, 0, 1, 1], [], []>} : vector<64x32xbf16>, vector<32x128xbf16>, vector<64x128xf32> -> vector<64x128xf32>
    %276 = arith.addf %275, %16 : vector<64x128xf32>
    %c0_176 = arith.constant 0 : index
    %c0_177 = arith.constant 0 : index
    %277 = vector.load %arg13[%c0_176, %c0_177] : memref<64x128xf32, #tpu.memory_space<vmem>>, vector<64x128xf32>
    %278 = arith.addf %277, %276 : vector<64x128xf32>
    %cst_178 = arith.constant 1.000000e+00 : f32
    %279 = vector.broadcast %cst_178 : f32 to vector<64x128xf32>
    %280 = arith.cmpf oge, %278, %279 : vector<64x128xf32>
    %cst_179 = arith.constant 0.000000e+00 : f32
    %281 = vector.broadcast %cst_179 : f32 to vector<64x128xf32>
    %282 = arith.select %280, %281, %278 : vector<64x128xi1>, vector<64x128xf32>
    %c0_180 = arith.constant 0 : index
    %c0_181 = arith.constant 0 : index
    %283 = vector.load %arg13[%c0_180, %c0_181] : memref<64x128xf32, #tpu.memory_space<vmem>>, vector<64x128xf32>
    tpu.vector_store %arg13[%c0_180, %c0_181], %282 {strides = array<i32>} : memref<64x128xf32, #tpu.memory_space<vmem>>, vector<64x128xf32>,
    %c2_182 = arith.constant 2 : index
    %c0_183 = arith.constant 0 : index
    %c0_184 = arith.constant 0 : index
    %284 = vector.load %arg2[%c2_182, %c0_183, %c0_184] : memref<4x64x128xbf16, #tpu.memory_space<vmem>>, vector<1x64x128xbf16>
    %285 = vector.shape_cast %284 : vector<1x64x128xbf16> to vector<64x128xbf16>
    %286 = arith.extui %280 : vector<64x128xi1> to vector<64x128xi32>
    %287 = arith.sitofp %286 : vector<64x128xi32> to vector<64x128xf32>
    %288 = arith.truncf %287 : vector<64x128xf32> to vector<64x128xbf16>
    %289 = arith.addf %285, %288 : vector<64x128xbf16>
    %c2_185 = arith.constant 2 : index
    %c0_186 = arith.constant 0 : index
    %c0_187 = arith.constant 0 : index
    %290 = vector.load %arg10[%c2_185, %c0_186, %c0_187] : memref<4x64x128xbf16, #tpu.memory_space<vmem>>, vector<1x64x128xbf16>
    %291 = vector.shape_cast %290 : vector<1x64x128xbf16> to vector<64x128xbf16>
    %292 = vector.shape_cast %289 : vector<64x128xbf16> to vector<1x64x128xbf16>
    tpu.vector_store %arg10[%c2_185, %c0_186, %c0_187], %292 {strides = array<i32>} : memref<4x64x128xbf16, #tpu.memory_space<vmem>>, vector<1x64x128xbf16>,
    %c192 = arith.constant 192 : index
    %c0_188 = arith.constant 0 : index
    %293 = vector.load %arg14[%c192, %c0_188] : memref<256x32xf32, #tpu.memory_space<vmem>>, vector<64x32xf32>
    %c0_189 = arith.constant 0 : index
    %c0_190 = arith.constant 0 : index
    %294 = vector.load %arg11[%c0_189, %c0_190] : memref<64x32xf32, #tpu.memory_space<vmem>>, vector<64x32xf32>
    %295 = arith.addf %294, %293 : vector<64x32xf32>
    %cst_191 = arith.constant 1.000000e+00 : f32
    %296 = vector.broadcast %cst_191 : f32 to vector<64x32xf32>
    %297 = arith.cmpf oge, %295, %296 : vector<64x32xf32>
    %cst_192 = arith.constant 0.000000e+00 : f32
    %298 = vector.broadcast %cst_192 : f32 to vector<64x32xf32>
    %299 = arith.select %297, %298, %295 : vector<64x32xi1>, vector<64x32xf32>
    %c0_193 = arith.constant 0 : index
    %c0_194 = arith.constant 0 : index
    %300 = vector.load %arg11[%c0_193, %c0_194] : memref<64x32xf32, #tpu.memory_space<vmem>>, vector<64x32xf32>
    tpu.vector_store %arg11[%c0_193, %c0_194], %299 {strides = array<i32>} : memref<64x32xf32, #tpu.memory_space<vmem>>, vector<64x32xf32>,
    %301 = arith.extui %297 : vector<64x32xi1> to vector<64x32xi32>
    %302 = arith.sitofp %301 : vector<64x32xi32> to vector<64x32xf32>
    %303 = arith.truncf %302 : vector<64x32xf32> to vector<64x32xbf16>
    %c0_195 = arith.constant 0 : index
    %c0_196 = arith.constant 0 : index
    %304 = vector.load %arg5[%c0_195, %c0_196] : memref<32x288xbf16, #tpu.memory_space<vmem>>, vector<32x288xbf16>
    %cst_197 = arith.constant dense<0.000000e+00> : vector<64x288xf32>
    %305 = tpu.matmul %303, %304, %cst_197 {dimension_numbers = #tpu.dot_dimension_numbers<[1], [0], [0], [1], [0, 0, 1, 1], [], []>} : vector<64x32xbf16>, vector<32x288xbf16>, vector<64x288xf32> -> vector<64x288xf32>
    %306 = vector.extract_strided_slice %305 {offsets = [0, 128], sizes = [64, 32], strides = [1, 1]} : vector<64x288xf32> to vector<64x32xf32>
    %307 = arith.addf %306, %13 : vector<64x32xf32>
    %308 = vector.extract_strided_slice %305 {offsets = [0, 0], sizes = [64, 32], strides = [1, 1]} : vector<64x288xf32> to vector<64x32xf32>
    %c9_i32_198 = arith.constant 9 : i32
    %309 = tpu.dynamic_rotate %308 by %c9_i32_198 dim 0 : vector<64x32xf32>, i32 -> vector<64x32xf32>
    %c0_199 = arith.constant 0 : index
    %c0_200 = arith.constant 0 : index
    %c0_201 = arith.constant 0 : index
    %310 = vector.load %arg9[%c0_199, %c0_200, %c0_201] : memref<9x64x32xf32, #tpu.memory_space<vmem>>, vector<1x64x32xf32>
    %311 = vector.shape_cast %310 : vector<1x64x32xf32> to vector<64x32xf32>
    %312 = arith.mulf %309, %311 : vector<64x32xf32>
    %313 = arith.addf %307, %312 : vector<64x32xf32>
    %314 = vector.extract_strided_slice %305 {offsets = [0, 32], sizes = [64, 32], strides = [1, 1]} : vector<64x288xf32> to vector<64x32xf32>
    %c8_i32_202 = arith.constant 8 : i32
    %315 = tpu.dynamic_rotate %314 by %c8_i32_202 dim 0 : vector<64x32xf32>, i32 -> vector<64x32xf32>
    %c1_203 = arith.constant 1 : index
    %c0_204 = arith.constant 0 : index
    %c0_205 = arith.constant 0 : index
    %316 = vector.load %arg9[%c1_203, %c0_204, %c0_205] : memref<9x64x32xf32, #tpu.memory_space<vmem>>, vector<1x64x32xf32>
    %317 = vector.shape_cast %316 : vector<1x64x32xf32> to vector<64x32xf32>
    %318 = arith.mulf %315, %317 : vector<64x32xf32>
    %319 = arith.addf %313, %318 : vector<64x32xf32>
    %320 = vector.extract_strided_slice %305 {offsets = [0, 64], sizes = [64, 32], strides = [1, 1]} : vector<64x288xf32> to vector<64x32xf32>
    %c7_i32_206 = arith.constant 7 : i32
    %321 = tpu.dynamic_rotate %320 by %c7_i32_206 dim 0 : vector<64x32xf32>, i32 -> vector<64x32xf32>
    %c2_207 = arith.constant 2 : index
    %c0_208 = arith.constant 0 : index
    %c0_209 = arith.constant 0 : index
    %322 = vector.load %arg9[%c2_207, %c0_208, %c0_209] : memref<9x64x32xf32, #tpu.memory_space<vmem>>, vector<1x64x32xf32>
    %323 = vector.shape_cast %322 : vector<1x64x32xf32> to vector<64x32xf32>
    %324 = arith.mulf %321, %323 : vector<64x32xf32>
    %325 = arith.addf %319, %324 : vector<64x32xf32>
    %326 = vector.extract_strided_slice %305 {offsets = [0, 96], sizes = [64, 32], strides = [1, 1]} : vector<64x288xf32> to vector<64x32xf32>
    %c1_i32_210 = arith.constant 1 : i32
    %327 = tpu.dynamic_rotate %326 by %c1_i32_210 dim 0 : vector<64x32xf32>, i32 -> vector<64x32xf32>
    %c3_211 = arith.constant 3 : index
    %c0_212 = arith.constant 0 : index
    %c0_213 = arith.constant 0 : index
    %328 = vector.load %arg9[%c3_211, %c0_212, %c0_213] : memref<9x64x32xf32, #tpu.memory_space<vmem>>, vector<1x64x32xf32>
    %329 = vector.shape_cast %328 : vector<1x64x32xf32> to vector<64x32xf32>
    %330 = arith.mulf %327, %329 : vector<64x32xf32>
    %331 = arith.addf %325, %330 : vector<64x32xf32>
    %332 = vector.extract_strided_slice %305 {offsets = [0, 160], sizes = [64, 32], strides = [1, 1]} : vector<64x288xf32> to vector<64x32xf32>
    %c63_i32_214 = arith.constant 63 : i32
    %333 = tpu.dynamic_rotate %332 by %c63_i32_214 dim 0 : vector<64x32xf32>, i32 -> vector<64x32xf32>
    %c5_215 = arith.constant 5 : index
    %c0_216 = arith.constant 0 : index
    %c0_217 = arith.constant 0 : index
    %334 = vector.load %arg9[%c5_215, %c0_216, %c0_217] : memref<9x64x32xf32, #tpu.memory_space<vmem>>, vector<1x64x32xf32>
    %335 = vector.shape_cast %334 : vector<1x64x32xf32> to vector<64x32xf32>
    %336 = arith.mulf %333, %335 : vector<64x32xf32>
    %337 = arith.addf %331, %336 : vector<64x32xf32>
    %338 = vector.extract_strided_slice %305 {offsets = [0, 192], sizes = [64, 32], strides = [1, 1]} : vector<64x288xf32> to vector<64x32xf32>
    %c57_i32_218 = arith.constant 57 : i32
    %339 = tpu.dynamic_rotate %338 by %c57_i32_218 dim 0 : vector<64x32xf32>, i32 -> vector<64x32xf32>
    %c6_219 = arith.constant 6 : index
    %c0_220 = arith.constant 0 : index
    %c0_221 = arith.constant 0 : index
    %340 = vector.load %arg9[%c6_219, %c0_220, %c0_221] : memref<9x64x32xf32, #tpu.memory_space<vmem>>, vector<1x64x32xf32>
    %341 = vector.shape_cast %340 : vector<1x64x32xf32> to vector<64x32xf32>
    %342 = arith.mulf %339, %341 : vector<64x32xf32>
    %343 = arith.addf %337, %342 : vector<64x32xf32>
    %344 = vector.extract_strided_slice %305 {offsets = [0, 224], sizes = [64, 32], strides = [1, 1]} : vector<64x288xf32> to vector<64x32xf32>
    %c56_i32_222 = arith.constant 56 : i32
    %345 = tpu.dynamic_rotate %344 by %c56_i32_222 dim 0 : vector<64x32xf32>, i32 -> vector<64x32xf32>
    %c7_223 = arith.constant 7 : index
    %c0_224 = arith.constant 0 : index
    %c0_225 = arith.constant 0 : index
    %346 = vector.load %arg9[%c7_223, %c0_224, %c0_225] : memref<9x64x32xf32, #tpu.memory_space<vmem>>, vector<1x64x32xf32>
    %347 = vector.shape_cast %346 : vector<1x64x32xf32> to vector<64x32xf32>
    %348 = arith.mulf %345, %347 : vector<64x32xf32>
    %349 = arith.addf %343, %348 : vector<64x32xf32>
    %350 = vector.extract_strided_slice %305 {offsets = [0, 256], sizes = [64, 32], strides = [1, 1]} : vector<64x288xf32> to vector<64x32xf32>
    %c55_i32_226 = arith.constant 55 : i32
    %351 = tpu.dynamic_rotate %350 by %c55_i32_226 dim 0 : vector<64x32xf32>, i32 -> vector<64x32xf32>
    %c8_227 = arith.constant 8 : index
    %c0_228 = arith.constant 0 : index
    %c0_229 = arith.constant 0 : index
    %352 = vector.load %arg9[%c8_227, %c0_228, %c0_229] : memref<9x64x32xf32, #tpu.memory_space<vmem>>, vector<1x64x32xf32>
    %353 = vector.shape_cast %352 : vector<1x64x32xf32> to vector<64x32xf32>
    %354 = arith.mulf %351, %353 : vector<64x32xf32>
    %355 = arith.addf %349, %354 : vector<64x32xf32>
    %c0_230 = arith.constant 0 : index
    %c0_231 = arith.constant 0 : index
    %356 = vector.load %arg12[%c0_230, %c0_231] : memref<64x32xf32, #tpu.memory_space<vmem>>, vector<64x32xf32>
    %357 = arith.addf %356, %355 : vector<64x32xf32>
    %cst_232 = arith.constant 1.000000e+00 : f32
    %358 = vector.broadcast %cst_232 : f32 to vector<64x32xf32>
    %359 = arith.cmpf oge, %357, %358 : vector<64x32xf32>
    %cst_233 = arith.constant 0.000000e+00 : f32
    %360 = vector.broadcast %cst_233 : f32 to vector<64x32xf32>
    %361 = arith.select %359, %360, %357 : vector<64x32xi1>, vector<64x32xf32>
    %c0_234 = arith.constant 0 : index
    %c0_235 = arith.constant 0 : index
    %362 = vector.load %arg12[%c0_234, %c0_235] : memref<64x32xf32, #tpu.memory_space<vmem>>, vector<64x32xf32>
    tpu.vector_store %arg12[%c0_234, %c0_235], %361 {strides = array<i32>} : memref<64x32xf32, #tpu.memory_space<vmem>>, vector<64x32xf32>,
    %363 = arith.extui %359 : vector<64x32xi1> to vector<64x32xi32>
    %364 = arith.sitofp %363 : vector<64x32xi32> to vector<64x32xf32>
    %365 = arith.truncf %364 : vector<64x32xf32> to vector<64x32xbf16>
    %c0_236 = arith.constant 0 : index
    %c0_237 = arith.constant 0 : index
    %366 = vector.load %arg7[%c0_236, %c0_237] : memref<32x128xbf16, #tpu.memory_space<vmem>>, vector<32x128xbf16>
    %cst_238 = arith.constant dense<0.000000e+00> : vector<64x128xf32>
    %367 = tpu.matmul %365, %366, %cst_238 {dimension_numbers = #tpu.dot_dimension_numbers<[1], [0], [0], [1], [0, 0, 1, 1], [], []>} : vector<64x32xbf16>, vector<32x128xbf16>, vector<64x128xf32> -> vector<64x128xf32>
    %368 = arith.addf %367, %16 : vector<64x128xf32>
    %c0_239 = arith.constant 0 : index
    %c0_240 = arith.constant 0 : index
    %369 = vector.load %arg13[%c0_239, %c0_240] : memref<64x128xf32, #tpu.memory_space<vmem>>, vector<64x128xf32>
    %370 = arith.addf %369, %368 : vector<64x128xf32>
    %cst_241 = arith.constant 1.000000e+00 : f32
    %371 = vector.broadcast %cst_241 : f32 to vector<64x128xf32>
    %372 = arith.cmpf oge, %370, %371 : vector<64x128xf32>
    %cst_242 = arith.constant 0.000000e+00 : f32
    %373 = vector.broadcast %cst_242 : f32 to vector<64x128xf32>
    %374 = arith.select %372, %373, %370 : vector<64x128xi1>, vector<64x128xf32>
    %c0_243 = arith.constant 0 : index
    %c0_244 = arith.constant 0 : index
    %375 = vector.load %arg13[%c0_243, %c0_244] : memref<64x128xf32, #tpu.memory_space<vmem>>, vector<64x128xf32>
    tpu.vector_store %arg13[%c0_243, %c0_244], %374 {strides = array<i32>} : memref<64x128xf32, #tpu.memory_space<vmem>>, vector<64x128xf32>,
    %c3_245 = arith.constant 3 : index
    %c0_246 = arith.constant 0 : index
    %c0_247 = arith.constant 0 : index
    %376 = vector.load %arg2[%c3_245, %c0_246, %c0_247] : memref<4x64x128xbf16, #tpu.memory_space<vmem>>, vector<1x64x128xbf16>
    %377 = vector.shape_cast %376 : vector<1x64x128xbf16> to vector<64x128xbf16>
    %378 = arith.extui %372 : vector<64x128xi1> to vector<64x128xi32>
    %379 = arith.sitofp %378 : vector<64x128xi32> to vector<64x128xf32>
    %380 = arith.truncf %379 : vector<64x128xf32> to vector<64x128xbf16>
    %381 = arith.addf %377, %380 : vector<64x128xbf16>
    %c3_248 = arith.constant 3 : index
    %c0_249 = arith.constant 0 : index
    %c0_250 = arith.constant 0 : index
    %382 = vector.load %arg10[%c3_248, %c0_249, %c0_250] : memref<4x64x128xbf16, #tpu.memory_space<vmem>>, vector<1x64x128xbf16>
    %383 = vector.shape_cast %382 : vector<1x64x128xbf16> to vector<64x128xbf16>
    %384 = vector.shape_cast %381 : vector<64x128xbf16> to vector<1x64x128xbf16>
    tpu.vector_store %arg10[%c3_248, %c0_249, %c0_250], %384 {strides = array<i32>} : memref<4x64x128xbf16, #tpu.memory_space<vmem>>, vector<1x64x128xbf16>,
    return
  }
  func.func @transform_0(%arg0: i32, %arg1: i32) -> (i32, i32, i32) {
    %c0_i32 = arith.constant 0 : i32
    %c0_i32_0 = arith.constant 0 : i32
    return %arg1, %arg0, %c0_i32 : i32, i32, i32
  }
  func.func @transform_1(%arg0: i32, %arg1: i32) -> (i32, i32) {
    %c0_i32 = arith.constant 0 : i32
    %c0_i32_0 = arith.constant 0 : i32
    %c0_i32_1 = arith.constant 0 : i32
    return %c0_i32, %c0_i32_0 : i32, i32
  }
  func.func @transform_2(%arg0: i32, %arg1: i32) -> (i32, i32) {
    %c0_i32 = arith.constant 0 : i32
    %c0_i32_0 = arith.constant 0 : i32
    %c0_i32_1 = arith.constant 0 : i32
    return %c0_i32, %c0_i32_0 : i32, i32
  }
  func.func @transform_3(%arg0: i32, %arg1: i32) -> (i32, i32) {
    %c0_i32 = arith.constant 0 : i32
    %c0_i32_0 = arith.constant 0 : i32
    %c0_i32_1 = arith.constant 0 : i32
    return %c0_i32, %c0_i32_0 : i32, i32
  }
  func.func @transform_4(%arg0: i32, %arg1: i32) -> (i32, i32) {
    %c0_i32 = arith.constant 0 : i32
    %c0_i32_0 = arith.constant 0 : i32
    %c0_i32_1 = arith.constant 0 : i32
    return %c0_i32, %c0_i32_0 : i32, i32
  }
  func.func @transform_5(%arg0: i32, %arg1: i32) -> (i32, i32) {
    %c0_i32 = arith.constant 0 : i32
    %c0_i32_0 = arith.constant 0 : i32
    %c0_i32_1 = arith.constant 0 : i32
    return %c0_i32, %c0_i32_0 : i32, i32
  }
  func.func @transform_6(%arg0: i32, %arg1: i32) -> (i32, i32) {
    %c0_i32 = arith.constant 0 : i32
    %c0_i32_0 = arith.constant 0 : i32
    %c0_i32_1 = arith.constant 0 : i32
    return %c0_i32, %c0_i32_0 : i32, i32
  }
  func.func @transform_7(%arg0: i32, %arg1: i32) -> (i32, i32, i32) {
    %c0_i32 = arith.constant 0 : i32
    %c0_i32_0 = arith.constant 0 : i32
    %c0_i32_1 = arith.constant 0 : i32
    %c0_i32_2 = arith.constant 0 : i32
    return %c0_i32, %c0_i32_0, %c0_i32_1 : i32, i32, i32
  }
  func.func @transform_8(%arg0: i32, %arg1: i32) -> (i32, i32, i32) {
    %c0_i32 = arith.constant 0 : i32
    %c0_i32_0 = arith.constant 0 : i32
    return %arg1, %arg0, %c0_i32 : i32, i32, i32
  }
}

</mosaic_0001>

<llo_original>
// kernel: sew_bottleneck.1
$region0: #{sew_bottleneck.1}
  #allocation0 [shape = 'u32[]', space=smem, size = 0x4, offset = 0x4, fixed_abs, tag = 'smem constant byte address 0x4 - core index']
  #allocation1 [shape = 'u32[72,128]{1,0:T(1,128)}', space=vmem, size = 0x9000, scoped, tag = 'internal scratch']
  #allocation2 [shape = 'f32[64,32]{1,0:T(8,128)}', space=vmem, size = 0x8000, scoped, tag = 'scratch operand']
  #allocation3 [shape = 'f32[64,32]{1,0:T(8,128)}', space=vmem, size = 0x8000, scoped, tag = 'scratch operand']
  #allocation4 [shape = 'f32[64,128]{1,0:T(8,128)}', space=vmem, size = 0x8000, scoped, tag = 'scratch operand']
  #allocation5 [shape = 'f32[256,32]{1,0:T(8,128)}', space=vmem, size = 0x20000, scoped, tag = 'scratch operand']
  #allocation9 [shape = 's32[]', space=sflag, size = 0x4, offset = 0, fixed_abs, tag = 'sflag constant byte address 0x0 - dummy sync flag']
  %s0 = inlined_call_operand.vmem [shape: bf16[8,128,128], index: 0, kind: input, shape index: {}]
  %s1 = inlined_call_operand.vmem [shape: bf16[128,32], index: 1, kind: input, shape index: {}]
  %s2 = inlined_call_operand.vmem [shape: f32[1,32], index: 2, kind: input, shape index: {}]
  %s3 = inlined_call_operand.vmem [shape: bf16[32,288], index: 3, kind: input, shape index: {}]
  %s4 = inlined_call_operand.vmem [shape: f32[1,32], index: 4, kind: input, shape index: {}]
  %s5 = inlined_call_operand.vmem [shape: bf16[32,128], index: 5, kind: input, shape index: {}]
  %s6 = inlined_call_operand.vmem [shape: f32[1,128], index: 6, kind: input, shape index: {}]
  %s7 = inlined_call_operand.vmem [shape: f32[9,64,32], index: 7, kind: input, shape index: {}]
  %s8 = inlined_call_operand.hbm [shape: bf16[8,128,128], index: 8, kind: output, shape index: {}]
  %s9 = sld [smem:[#allocation0]]
  $region110: #{sew_bottleneck.1} parent=0
    _
  %s11 = ssub.s32 1, %s9
  %s12 = scalar_select 0, %s11, %s9
  $region1: #{sew_bottleneck.1} parent=0
    #allocation6 [shape = 'u8[131072]{0}', space=vmem, size = 0x20000, scoped, tag = 'input window, operand 0']
    #allocation7 [shape = 'u8[131072]{0}', space=vmem, size = 0x20000, scoped, tag = 'output window, operand 0']
    #allocation8 [shape = 's32[2]{0}', space=sflag, size = 0x8, scoped, tag = 'scoped memory for sew_bottleneck.1']
    %13 = vsyncpa [#allocation8], 0
    %s14 = scalar_lea.sflag [#allocation8], 1
    %15 = vsyncpa %s14, 0
    loop: start=0, step=1, limit=6
    $region2: #{sew_bottleneck.1} parent=1 // loop_pre_header
      _
    $region3: #{sew_bottleneck.1} parent=1 // loop_header
      %s17 = sphi 0, %s21
      %p18 = scmp.ge.s32.totalorder %s17, 6
      %s24 = sphi 0, %s36
      %s25 = sphi 0, %s32
      %s26 = sphi 0, %s24
      %s27 = sphi 0, %s25
      %s28 = sphi 0, %s26
      %s29 = sphi 0, %s27
      %s41 = sphi 0, %s43
      %s44 = sphi 0, %s41
      %s45 = sphi 0, %s44
      %s61 = sphi 0, %s45
      %s65 = sphi 0, %s65
      %s67 = sphi 0, %s65
      %s68 = sphi 0, %s67
      %s82 = sphi 0, %s68
      %s86 = sphi 0, %s86
      %s88 = sphi 0, %s86
      %s89 = sphi 0, %s88
      %s103 = sphi 0, %s89
      %s107 = sphi 0, %s107
      %s109 = sphi 0, %s107
      %s110 = sphi 0, %s109
      %s124 = sphi 0, %s110
      %s128 = sphi 0, %s128
      %s130 = sphi 0, %s128
      %s131 = sphi 0, %s130
      %s145 = sphi 0, %s131
      %s149 = sphi 0, %s149
      %s151 = sphi 0, %s149
      %s152 = sphi 0, %s151
      %s166 = sphi 0, %s152
      %s170 = sphi 0, %s170
      %s172 = sphi 0, %s170
      %s173 = sphi 0, %s172
      %s187 = sphi 0, %s173
      %s191 = sphi 0, %s191
      %s193 = sphi 0, %s191
      %s194 = sphi 0, %s193
      %s208 = sphi 0, %s194
      %s216 = sphi 0, %s218
      %s219 = sphi 0, %s216
      %s220 = sphi 0, %s219
      %s236 = sphi 0, %s220
    $region4: #{sew_bottleneck.1} parent=1 // loop_header_branch
      %20 = sbr.rel (%p18) target = $region8
    $region5: #{sew_bottleneck.1} parent=1 // loop_body
      %s22 = ssub.s32 %s17, 1
      %s23 = ssub.s32 %s17, 2
      %s30 = sadd.s32 1, %s25
      %p31 = scmp.ge.s32.totalorder %s30, 2
      %s32 = scalar_select %p31, 0, %s30
      %s33 = sadd.s32 1, %s24
      %s34 = scalar_select %p31, %s33, %s24
      %p35 = scmp.ge.s32.totalorder %s34, 2
      %s36 = scalar_select %p35, 0, %s34
      %s37 = ssub.s32 %s25, %s32
      %s38 = ssub.s32 %s24, %s36
      %s39 = sor.u32 %s37, %s38
      %p40 = scmp.eq.s32.totalorder %s39, 0
      %s42 = sadd.s32 %s41, 1
      %s43 = scalar_select %p40, %s41, %s42
      %p46 = pneg %p40
      %p47 = scmp.eq.s32.totalorder %s17, 3
      %p48 = por %p46, %p47
      %p49 = scmp.ne.s32.totalorder %s41, %s44
      %p50 = scmp.eq.s32.totalorder %s17, 0
      %p51 = por %p49, %p50
      %p52 = scmp.ne.s32.totalorder %s41, %s44
      %p53 = scmp.eq.s32.totalorder %s22, 3
      %p54 = por %p52, %p53
      %p55 = scmp.ne.s32.totalorder %s44, %s45
      %p56 = scmp.eq.s32.totalorder %s22, 0
      %p57 = por %p55, %p56
      %p58 = scmp.ne.s32.totalorder %s44, %s45
      %p59 = scmp.eq.s32.totalorder %s23, 3
      %p60 = por %p58, %p59
      %p62 = scmp.ne.s32.totalorder %s45, %s61
      %p63 = scmp.eq.s32.totalorder %s23, 0
      %p64 = por %p62, %p63
      %s66 = sadd.s32 %s65, 1
      %p69 = scmp.eq.s32.totalorder %s17, 3
      %p70 = scmp.ne.s32.totalorder %s65, %s67
      %p71 = scmp.eq.s32.totalorder %s17, 0
      %p72 = por %p70, %p71
      %p73 = scmp.ne.s32.totalorder %s65, %s67
      %p74 = scmp.eq.s32.totalorder %s22, 3
      %p75 = por %p73, %p74
      %p76 = scmp.ne.s32.totalorder %s67, %s68
      %p77 = scmp.eq.s32.totalorder %s22, 0
      %p78 = por %p76, %p77
      %p79 = scmp.ne.s32.totalorder %s67, %s68
      %p80 = scmp.eq.s32.totalorder %s23, 3
      %p81 = por %p79, %p80
      %p83 = scmp.ne.s32.totalorder %s68, %s82
      %p84 = scmp.eq.s32.totalorder %s23, 0
      %p85 = por %p83, %p84
      %s87 = sadd.s32 %s86, 1
      %p90 = scmp.eq.s32.totalorder %s17, 3
      %p91 = scmp.ne.s32.totalorder %s86, %s88
      %p92 = scmp.eq.s32.totalorder %s17, 0
      %p93 = por %p91, %p92
      %p94 = scmp.ne.s32.totalorder %s86, %s88
      %p95 = scmp.eq.s32.totalorder %s22, 3
      %p96 = por %p94, %p95
      %p97 = scmp.ne.s32.totalorder %s88, %s89
      %p98 = scmp.eq.s32.totalorder %s22, 0
      %p99 = por %p97, %p98
      %p100 = scmp.ne.s32.totalorder %s88, %s89
      %p101 = scmp.eq.s32.totalorder %s23, 3
      %p102 = por %p100, %p101
      %p104 = scmp.ne.s32.totalorder %s89, %s103
      %p105 = scmp.eq.s32.totalorder %s23, 0
      %p106 = por %p104, %p105
      %s108 = sadd.s32 %s107, 1
      %p111 = scmp.eq.s32.totalorder %s17, 3
      %p112 = scmp.ne.s32.totalorder %s107, %s109
      %p113 = scmp.eq.s32.totalorder %s17, 0
      %p114 = por %p112, %p113
      %p115 = scmp.ne.s32.totalorder %s107, %s109
      %p116 = scmp.eq.s32.totalorder %s22, 3
      %p117 = por %p115, %p116
      %p118 = scmp.ne.s32.totalorder %s109, %s110
      %p119 = scmp.eq.s32.totalorder %s22, 0
      %p120 = por %p118, %p119
      %p121 = scmp.ne.s32.totalorder %s109, %s110
      %p122 = scmp.eq.s32.totalorder %s23, 3
      %p123 = por %p121, %p122
      %p125 = scmp.ne.s32.totalorder %s110, %s124
      %p126 = scmp.eq.s32.totalorder %s23, 0
      %p127 = por %p125, %p126
      %s129 = sadd.s32 %s128, 1
      %p132 = scmp.eq.s32.totalorder %s17, 3
      %p133 = scmp.ne.s32.totalorder %s128, %s130
      %p134 = scmp.eq.s32.totalorder %s17, 0
      %p135 = por %p133, %p134
      %p136 = scmp.ne.s32.totalorder %s128, %s130
      %p137 = scmp.eq.s32.totalorder %s22, 3
      %p138 = por %p136, %p137
      %p139 = scmp.ne.s32.totalorder %s130, %s131
      %p140 = scmp.eq.s32.totalorder %s22, 0
      %p141 = por %p139, %p140
      %p142 = scmp.ne.s32.totalorder %s130, %s131
      %p143 = scmp.eq.s32.totalorder %s23, 3
      %p144 = por %p142, %p143
      %p146 = scmp.ne.s32.totalorder %s131, %s145
      %p147 = scmp.eq.s32.totalorder %s23, 0
      %p148 = por %p146, %p147
      %s150 = sadd.s32 %s149, 1
      %p153 = scmp.eq.s32.totalorder %s17, 3
      %p154 = scmp.ne.s32.totalorder %s149, %s151
      %p155 = scmp.eq.s32.totalorder %s17, 0
      %p156 = por %p154, %p155
      %p157 = scmp.ne.s32.totalorder %s149, %s151
      %p158 = scmp.eq.s32.totalorder %s22, 3
      %p159 = por %p157, %p158
      %p160 = scmp.ne.s32.totalorder %s151, %s152
      %p161 = scmp.eq.s32.totalorder %s22, 0
      %p162 = por %p160, %p161
      %p163 = scmp.ne.s32.totalorder %s151, %s152
      %p164 = scmp.eq.s32.totalorder %s23, 3
      %p165 = por %p163, %p164
      %p167 = scmp.ne.s32.totalorder %s152, %s166
      %p168 = scmp.eq.s32.totalorder %s23, 0
      %p169 = por %p167, %p168
      %s171 = sadd.s32 %s170, 1
      %p174 = scmp.eq.s32.totalorder %s17, 3
      %p175 = scmp.ne.s32.totalorder %s170, %s172
      %p176 = scmp.eq.s32.totalorder %s17, 0
      %p177 = por %p175, %p176
      %p178 = scmp.ne.s32.totalorder %s170, %s172
      %p179 = scmp.eq.s32.totalorder %s22, 3
      %p180 = por %p178, %p179
      %p181 = scmp.ne.s32.totalorder %s172, %s173
      %p182 = scmp.eq.s32.totalorder %s22, 0
      %p183 = por %p181, %p182
      %p184 = scmp.ne.s32.totalorder %s172, %s173
      %p185 = scmp.eq.s32.totalorder %s23, 3
      %p186 = por %p184, %p185
      %p188 = scmp.ne.s32.totalorder %s173, %s187
      %p189 = scmp.eq.s32.totalorder %s23, 0
      %p190 = por %p188, %p189
      %s192 = sadd.s32 %s191, 1
      %p195 = scmp.eq.s32.totalorder %s17, 3
      %p196 = scmp.ne.s32.totalorder %s191, %s193
      %p197 = scmp.eq.s32.totalorder %s17, 0
      %p198 = por %p196, %p197
      %p199 = scmp.ne.s32.totalorder %s191, %s193
      %p200 = scmp.eq.s32.totalorder %s22, 3
      %p201 = por %p199, %p200
      %p202 = scmp.ne.s32.totalorder %s193, %s194
      %p203 = scmp.eq.s32.totalorder %s22, 0
      %p204 = por %p202, %p203
      %p205 = scmp.ne.s32.totalorder %s193, %s194
      %p206 = scmp.eq.s32.totalorder %s23, 3
      %p207 = por %p205, %p206
      %p209 = scmp.ne.s32.totalorder %s194, %s208
      %p210 = scmp.eq.s32.totalorder %s23, 0
      %p211 = por %p209, %p210
      %s212 = ssub.s32 %s25, %s32
      %s213 = ssub.s32 %s24, %s36
      %s214 = sor.u32 %s212, %s213
      %p215 = scmp.eq.s32.totalorder %s214, 0
      %s217 = sadd.s32 %s216, 1
      %s218 = scalar_select %p215, %s216, %s217
      %p221 = pneg %p215
      %p222 = scmp.eq.s32.totalorder %s17, 3
      %p223 = por %p221, %p222
      %p224 = scmp.ne.s32.totalorder %s216, %s219
      %p225 = scmp.eq.s32.totalorder %s17, 0
      %p226 = por %p224, %p225
      %p227 = scmp.ne.s32.totalorder %s216, %s219
      %p228 = scmp.eq.s32.totalorder %s22, 3
      %p229 = por %p227, %p228
      %p230 = scmp.ne.s32.totalorder %s219, %s220
      %p231 = scmp.eq.s32.totalorder %s22, 0
      %p232 = por %p230, %p231
      %p233 = scmp.ne.s32.totalorder %s219, %s220
      %p234 = scmp.eq.s32.totalorder %s23, 3
      %p235 = por %p233, %p234
      %p237 = scmp.ne.s32.totalorder %s220, %s236
      %p238 = scmp.eq.s32.totalorder %s23, 0
      %p239 = por %p237, %p238
      %p240 = scmp.le.s32.totalorder 1, %s17
      %p241 = scmp.lt.s32.totalorder %s17, 5
      %p242 = pnand %p240, %p241
      %p243 = pneg %p242
      // Predicated region
      $region9: #{sew_bottleneck.1} parent=5 // pred_check
        _
      $region10: #{sew_bottleneck.1} parent=5 // pred_check_branch
        %245 = sbr.rel (%p242) target = $region12
      $region11: #{sew_bottleneck.1} parent=5 // pred_region
        %s246 = ssub.s32 %s17, 1
        // Predicated region
        $region13: #{sew_bottleneck.1} parent=11 // pred_check
          %p247 = pneg %p78
        $region14: #{sew_bottleneck.1} parent=11 // pred_check_branch
          %249 = sbr.rel (%p247) target = $region16
        $region15: #{sew_bottleneck.1} parent=11 // pred_region
          _
        $region16: #{sew_bottleneck.1} parent=11 // pred_fallthru
          _
        // Predicated region
        $region17: #{sew_bottleneck.1} parent=11 // pred_check
          %p250 = pneg %p99
        $region18: #{sew_bottleneck.1} parent=11 // pred_check_branch
          %252 = sbr.rel (%p250) target = $region20
        $region19: #{sew_bottleneck.1} parent=11 // pred_region
          _
        $region20: #{sew_bottleneck.1} parent=11 // pred_fallthru
          _
        // Predicated region
        $region21: #{sew_bottleneck.1} parent=11 // pred_check
          %p253 = pneg %p120
        $region22: #{sew_bottleneck.1} parent=11 // pred_check_branch
          %255 = sbr.rel (%p253) target = $region24
        $region23: #{sew_bottleneck.1} parent=11 // pred_region
          _
        $region24: #{sew_bottleneck.1} parent=11 // pred_fallthru
          _
        // Predicated region
        $region25: #{sew_bottleneck.1} parent=11 // pred_check
          %p256 = pneg %p141
        $region26: #{sew_bottleneck.1} parent=11 // pred_check_branch
          %258 = sbr.rel (%p256) target = $region28
        $region27: #{sew_bottleneck.1} parent=11 // pred_region
          _
        $region28: #{sew_bottleneck.1} parent=11 // pred_fallthru
          _
        // Predicated region
        $region29: #{sew_bottleneck.1} parent=11 // pred_check
          %p259 = pneg %p162
        $region30: #{sew_bottleneck.1} parent=11 // pred_check_branch
          %261 = sbr.rel (%p259) target = $region32
        $region31: #{sew_bottleneck.1} parent=11 // pred_region
          _
        $region32: #{sew_bottleneck.1} parent=11 // pred_fallthru
          _
        // Predicated region
        $region33: #{sew_bottleneck.1} parent=11 // pred_check
          %p262 = pneg %p183
        $region34: #{sew_bottleneck.1} parent=11 // pred_check_branch
          %264 = sbr.rel (%p262) target = $region36
        $region35: #{sew_bottleneck.1} parent=11 // pred_region
          _
        $region36: #{sew_bottleneck.1} parent=11 // pred_fallthru
          _
        // Predicated region
        $region37: #{sew_bottleneck.1} parent=11 // pred_check
          %p265 = pneg %p204
        $region38: #{sew_bottleneck.1} parent=11 // pred_check_branch
          %267 = sbr.rel (%p265) target = $region40
        $region39: #{sew_bottleneck.1} parent=11 // pred_region
          _
        $region40: #{sew_bottleneck.1} parent=11 // pred_fallthru
          _
      $region12: #{sew_bottleneck.1} parent=5 // pred_fallthru
        _
      %p268 = scmp.lt.s32.totalorder %s17, 4
      // Predicated region
      $region41: #{sew_bottleneck.1} parent=5 // pred_check
        %p269 = pneg %p268
      $region42: #{sew_bottleneck.1} parent=5 // pred_check_branch
        %271 = sbr.rel (%p269) target = $region44
      $region43: #{sew_bottleneck.1} parent=5 // pred_region
        // Predicated region
        $region45: #{sew_bottleneck.1} parent=43 // pred_check
          %p272 = pneg %p51
        $region46: #{sew_bottleneck.1} parent=43 // pred_check_branch
          %274 = sbr.rel (%p272) target = $region48
        $region47: #{sew_bottleneck.1} parent=43 // pred_region
          %s275 = sand.u32 %s41, 1
          %s276 = sand.u32 %s41, 1
          %s277 = smul.addr %s276, 128
          %s278 = scalar_lea.vmem [#allocation6], %s277
          %s279 = smul.u32 4, %s25
          %s280 = smul.u32 8, %s24
          %s281 = smul.addr %s279, 16
          %s282 = sadd.s32 %s280, %s281
          %s283 = smul.addr %s282, 4
          %s284 = scalar_lea.vmem %s0, %s283
          // Predicated region
          $region49: #{sew_bottleneck.1} parent=47 // pred_check
            _
          $region50: #{sew_bottleneck.1} parent=47 // pred_check_branch
            %286 = sbr.rel (0) target = $region52
          $region51: #{sew_bottleneck.1} parent=47 // pred_region
            // Predicated region
            $region53: #{sew_bottleneck.1} parent=51 // pred_check
              _
            $region54: #{sew_bottleneck.1} parent=51 // pred_check_branch
              %288 = sbr.rel target = $region56
            $region55: #{sew_bottleneck.1} parent=51 // pred_region
              // Predicated region
              $region68: #{sew_bottleneck.1} parent=55 // pred_check
                _
              $region69: #{sew_bottleneck.1} parent=55 // pred_check_branch
                %366 = sbr.rel (0) target = $region71
              $region70: #{sew_bottleneck.1} parent=55 // pred_region
                loop: start=0, step=1, limit=1
                $region72: #{sew_bottleneck.1} parent=70 // loop_pre_header
                  _
                $region73: #{sew_bottleneck.1} parent=70 // loop_header
                  %s368 = sphi 0, %s372
                  %p369 = scmp.ge.s32.totalorder %s368, 1
                  %s373 = sphi %s284, %s284
                  %s374 = sphi %s278, %s278
                $region74: #{sew_bottleneck.1} parent=70 // loop_header_branch
                  %371 = sbr.rel (%p369) target = $region78
                $region75: #{sew_bottleneck.1} parent=70 // loop_body
                  _
                $region76: #{sew_bottleneck.1} parent=70 // loop_footer
                  %s372 = sadd.s32 1, %s368
                $region77: #{sew_bottleneck.1} parent=70 // loop_footer_branch
                  %367 = sbr.rel target = $region73
                $region78: #{sew_bottleneck.1} parent=70 // loop_exit
                  _
                %s376 = ssub.s32 16, 1
                loop: start=0, step=1, limit=1
                $region79: #{sew_bottleneck.1} parent=70 // loop_pre_header
                  _
                $region80: #{sew_bottleneck.1} parent=70 // loop_header
                  %s378 = sphi 0, %s382
                  %p379 = scmp.ge.s32.totalorder %s378, 1
                  %s383 = sphi %s284, %s284
                  %s384 = sphi %s278, %s278
                $region81: #{sew_bottleneck.1} parent=70 // loop_header_branch
                  %381 = sbr.rel (%p379) target = $region85
                $region82: #{sew_bottleneck.1} parent=70 // loop_body
                  %v385 = vld [vmem:[%s383] sm:%s376]
                  %386 = vst [vmem:[%s384] sm:%s376] %v385
                  %v387 = vld [vmem:[%s383 + $0x4] sm:%s376]
                  %388 = vst [vmem:[%s384 + $0x4] sm:%s376] %v387
                  %v389 = vld [vmem:[%s383 + $0x8] sm:%s376]
                  %390 = vst [vmem:[%s384 + $0x8] sm:%s376] %v389
                  %v391 = vld [vmem:[%s383 + $0xc] sm:%s376]
                  %392 = vst [vmem:[%s384 + $0xc] sm:%s376] %v391
                  %v393 = vld [vmem:[%s383 + $0x10] sm:%s376]
                  %394 = vst [vmem:[%s384 + $0x10] sm:%s376] %v393
                  %v395 = vld [vmem:[%s383 + $0x14] sm:%s376]
                  %396 = vst [vmem:[%s384 + $0x14] sm:%s376] %v395
                  %v397 = vld [vmem:[%s383 + $0x18] sm:%s376]
                  %398 = vst [vmem:[%s384 + $0x18] sm:%s376] %v397
                  %v399 = vld [vmem:[%s383 + $0x1c] sm:%s376]
                  %400 = vst [vmem:[%s384 + $0x1c] sm:%s376] %v399
                  %v401 = vld [vmem:[%s383 + $0x40] sm:%s376]
                  %402 = vst [vmem:[%s384 + $0x20] sm:%s376] %v401
                  %v403 = vld [vmem:[%s383 + $0x44] sm:%s376]
                  %404 = vst [vmem:[%s384 + $0x24] sm:%s376] %v403
                  %v405 = vld [vmem:[%s383 + $0x48] sm:%s376]
                  %406 = vst [vmem:[%s384 + $0x28] sm:%s376] %v405
                  %v407 = vld [vmem:[%s383 + $0x4c] sm:%s376]
                  %408 = vst [vmem:[%s384 + $0x2c] sm:%s376] %v407
                  %v409 = vld [vmem:[%s383 + $0x50] sm:%s376]
                  %410 = vst [vmem:[%s384 + $0x30] sm:%s376] %v409
                  %v411 = vld [vmem:[%s383 + $0x54] sm:%s376]
                  %412 = vst [vmem:[%s384 + $0x34] sm:%s376] %v411
                  %v413 = vld [vmem:[%s383 + $0x58] sm:%s376]
                  %414 = vst [vmem:[%s384 + $0x38] sm:%s376] %v413
                  %v415 = vld [vmem:[%s383 + $0x5c] sm:%s376]
                  %416 = vst [vmem:[%s384 + $0x3c] sm:%s376] %v415
                  %v417 = vld [vmem:[%s383 + $0x80] sm:%s376]
                  %418 = vst [vmem:[%s384 + $0x40] sm:%s376] %v417
                  %v419 = vld [vmem:[%s383 + $0x84] sm:%s376]
                  %420 = vst [vmem:[%s384 + $0x44] sm:%s376] %v419
                  %v421 = vld [vmem:[%s383 + $0x88] sm:%s376]
                  %422 = vst [vmem:[%s384 + $0x48] sm:%s376] %v421
                  %v423 = vld [vmem:[%s383 + $0x8c] sm:%s376]
                  %424 = vst [vmem:[%s384 + $0x4c] sm:%s376] %v423
                  %v425 = vld [vmem:[%s383 + $0x90] sm:%s376]
                  %426 = vst [vmem:[%s384 + $0x50] sm:%s376] %v425
                  %v427 = vld [vmem:[%s383 + $0x94] sm:%s376]
                  %428 = vst [vmem:[%s384 + $0x54] sm:%s376] %v427
                  %v429 = vld [vmem:[%s383 + $0x98] sm:%s376]
                  %430 = vst [vmem:[%s384 + $0x58] sm:%s376] %v429
                  %v431 = vld [vmem:[%s383 + $0x9c] sm:%s376]
                  %432 = vst [vmem:[%s384 + $0x5c] sm:%s376] %v431
                  %v433 = vld [vmem:[%s383 + $0xc0] sm:%s376]
                  %434 = vst [vmem:[%s384 + $0x60] sm:%s376] %v433
                  %v435 = vld [vmem:[%s383 + $0xc4] sm:%s376]
                  %436 = vst [vmem:[%s384 + $0x64] sm:%s376] %v435
                  %v437 = vld [vmem:[%s383 + $0xc8] sm:%s376]
                  %438 = vst [vmem:[%s384 + $0x68] sm:%s376] %v437
                  %v439 = vld [vmem:[%s383 + $0xcc] sm:%s376]
                  %440 = vst [vmem:[%s384 + $0x6c] sm:%s376] %v439
                  %v441 = vld [vmem:[%s383 + $0xd0] sm:%s376]
                  %442 = vst [vmem:[%s384 + $0x70] sm:%s376] %v441
                  %v443 = vld [vmem:[%s383 + $0xd4] sm:%s376]
                  %444 = vst [vmem:[%s384 + $0x74] sm:%s376] %v443
                  %v445 = vld [vmem:[%s383 + $0xd8] sm:%s376]
                  %446 = vst [vmem:[%s384 + $0x78] sm:%s376] %v445
                  %v447 = vld [vmem:[%s383 + $0xdc] sm:%s376]
                  %448 = vst [vmem:[%s384 + $0x7c] sm:%s376] %v447
                $region83: #{sew_bottleneck.1} parent=70 // loop_footer
                  %s382 = sadd.s32 1, %s378
                $region84: #{sew_bottleneck.1} parent=70 // loop_footer_branch
                  %377 = sbr.rel target = $region80
                $region85: #{sew_bottleneck.1} parent=70 // loop_exit
                  _
              $region71: #{sew_bottleneck.1} parent=55 // pred_fallthru
                _
            $region56: #{sew_bottleneck.1} parent=51 // pred_fallthru
              _
            // Predicated region
            $region57: #{sew_bottleneck.1} parent=51 // pred_check
              _
            $region58: #{sew_bottleneck.1} parent=51 // pred_check_branch
              %290 = sbr.rel (0) target = $region60
            $region59: #{sew_bottleneck.1} parent=51 // pred_region
              %s292 = ssub.s32 16, 1
              loop: start=0, step=1, limit=1
              $region61: #{sew_bottleneck.1} parent=59 // loop_pre_header
                _
              $region62: #{sew_bottleneck.1} parent=59 // loop_header
                %s294 = sphi 0, %s298
                %p295 = scmp.ge.s32.totalorder %s294, 1
                %s299 = sphi %s284, %s284
                %s300 = sphi %s278, %s278
              $region63: #{sew_bottleneck.1} parent=59 // loop_header_branch
                %297 = sbr.rel (%p295) target = $region67
              $region64: #{sew_bottleneck.1} parent=59 // loop_body
                %v301 = vld [vmem:[%s299] sm:%s292]
                %302 = vst [vmem:[%s300] sm:%s292] %v301
                %v303 = vld [vmem:[%s299 + $0x4] sm:%s292]
                %304 = vst [vmem:[%s300 + $0x4] sm:%s292] %v303
                %v305 = vld [vmem:[%s299 + $0x8] sm:%s292]
                %306 = vst [vmem:[%s300 + $0x8] sm:%s292] %v305
                %v307 = vld [vmem:[%s299 + $0xc] sm:%s292]
                %308 = vst [vmem:[%s300 + $0xc] sm:%s292] %v307
                %v309 = vld [vmem:[%s299 + $0x10] sm:%s292]
                %310 = vst [vmem:[%s300 + $0x10] sm:%s292] %v309
                %v311 = vld [vmem:[%s299 + $0x14] sm:%s292]
                %312 = vst [vmem:[%s300 + $0x14] sm:%s292] %v311
                %v313 = vld [vmem:[%s299 + $0x18] sm:%s292]
                %314 = vst [vmem:[%s300 + $0x18] sm:%s292] %v313
                %v315 = vld [vmem:[%s299 + $0x1c] sm:%s292]
                %316 = vst [vmem:[%s300 + $0x1c] sm:%s292] %v315
                %v317 = vld [vmem:[%s299 + $0x40] sm:%s292]
                %318 = vst [vmem:[%s300 + $0x20] sm:%s292] %v317
                %v319 = vld [vmem:[%s299 + $0x44] sm:%s292]
                %320 = vst [vmem:[%s300 + $0x24] sm:%s292] %v319
                %v321 = vld [vmem:[%s299 + $0x48] sm:%s292]
                %322 = vst [vmem:[%s300 + $0x28] sm:%s292] %v321
                %v323 = vld [vmem:[%s299 + $0x4c] sm:%s292]
                %324 = vst [vmem:[%s300 + $0x2c] sm:%s292] %v323
                %v325 = vld [vmem:[%s299 + $0x50] sm:%s292]
                %326 = vst [vmem:[%s300 + $0x30] sm:%s292] %v325
                %v327 = vld [vmem:[%s299 + $0x54] sm:%s292]
                %328 = vst [vmem:[%s300 + $0x34] sm:%s292] %v327
                %v329 = vld [vmem:[%s299 + $0x58] sm:%s292]
                %330 = vst [vmem:[%s300 + $0x38] sm:%s292] %v329
                %v331 = vld [vmem:[%s299 + $0x5c] sm:%s292]
                %332 = vst [vmem:[%s300 + $0x3c] sm:%s292] %v331
                %v333 = vld [vmem:[%s299 + $0x80] sm:%s292]
                %334 = vst [vmem:[%s300 + $0x40] sm:%s292] %v333
                %v335 = vld [vmem:[%s299 + $0x84] sm:%s292]
                %336 = vst [vmem:[%s300 + $0x44] sm:%s292] %v335
                %v337 = vld [vmem:[%s299 + $0x88] sm:%s292]
                %338 = vst [vmem:[%s300 + $0x48] sm:%s292] %v337
                %v339 = vld [vmem:[%s299 + $0x8c] sm:%s292]
                %340 = vst [vmem:[%s300 + $0x4c] sm:%s292] %v339
                %v341 = vld [vmem:[%s299 + $0x90] sm:%s292]
                %342 = vst [vmem:[%s300 + $0x50] sm:%s292] %v341
                %v343 = vld [vmem:[%s299 + $0x94] sm:%s292]
                %344 = vst [vmem:[%s300 + $0x54] sm:%s292] %v343
                %v345 = vld [vmem:[%s299 + $0x98] sm:%s292]
                %346 = vst [vmem:[%s300 + $0x58] sm:%s292] %v345
                %v347 = vld [vmem:[%s299 + $0x9c] sm:%s292]
                %348 = vst [vmem:[%s300 + $0x5c] sm:%s292] %v347
                %v349 = vld [vmem:[%s299 + $0xc0] sm:%s292]
                %350 = vst [vmem:[%s300 + $0x60] sm:%s292] %v349
                %v351 = vld [vmem:[%s299 + $0xc4] sm:%s292]
                %352 = vst [vmem:[%s300 + $0x64] sm:%s292] %v351
                %v353 = vld [vmem:[%s299 + $0xc8] sm:%s292]
                %354 = vst [vmem:[%s300 + $0x68] sm:%s292] %v353
                %v355 = vld [vmem:[%s299 + $0xcc] sm:%s292]
                %356 = vst [vmem:[%s300 + $0x6c] sm:%s292] %v355
                %v357 = vld [vmem:[%s299 + $0xd0] sm:%s292]
                %358 = vst [vmem:[%s300 + $0x70] sm:%s292] %v357
                %v359 = vld [vmem:[%s299 + $0xd4] sm:%s292]
                %360 = vst [vmem:[%s300 + $0x74] sm:%s292] %v359
                %v361 = vld [vmem:[%s299 + $0xd8] sm:%s292]
                %362 = vst [vmem:[%s300 + $0x78] sm:%s292] %v361
                %v363 = vld [vmem:[%s299 + $0xdc] sm:%s292]
                %364 = vst [vmem:[%s300 + $0x7c] sm:%s292] %v363
              $region65: #{sew_bottleneck.1} parent=59 // loop_footer
                %s298 = sadd.s32 1, %s294
              $region66: #{sew_bottleneck.1} parent=59 // loop_footer_branch
                %293 = sbr.rel target = $region62
              $region67: #{sew_bottleneck.1} parent=59 // loop_exit
                _
            $region60: #{sew_bottleneck.1} parent=51 // pred_fallthru
              _
          $region52: #{sew_bottleneck.1} parent=47 // pred_fallthru
            _
          %449 = vnop
        $region48: #{sew_bottleneck.1} parent=43 // pred_fallthru
          _
      $region44: #{sew_bottleneck.1} parent=5 // pred_fallthru
        _
      %p450 = scmp.le.s32.totalorder 1, %s17
      %p451 = scmp.lt.s32.totalorder %s17, 5
      %p452 = pnand %p450, %p451
      %p453 = pneg %p452
      // Predicated region
      $region86: #{sew_bottleneck.1} parent=5 // pred_check
        _
      $region87: #{sew_bottleneck.1} parent=5 // pred_check_branch
        %455 = sbr.rel (%p452) target = $region89
      $region88: #{sew_bottleneck.1} parent=5 // pred_region
        %s456 = ssub.s32 %s17, 1
        %s457 = sand.u32 %s44, 1
        %s458 = sand.u32 %s44, 1
        %s459 = smul.addr %s458, 128
        %s460 = scalar_lea.vmem [#allocation6], %s459
        // Predicated region
        $region90: #{sew_bottleneck.1} parent=88 // pred_check
          %p461 = pneg %p57
        $region91: #{sew_bottleneck.1} parent=88 // pred_check_branch
          %463 = sbr.rel (%p461) target = $region93
        $region92: #{sew_bottleneck.1} parent=88 // pred_region
          _
        $region93: #{sew_bottleneck.1} parent=88 // pred_fallthru
          _
        %s464 = sand.u32 %s44, 1
        %s465 = sand.u32 %s44, 1
        %s466 = smul.addr %s465, 128
        %s467 = scalar_lea.vmem [#allocation6], %s466
        %p468 = pneg %p57
        %p469 = pneg %p54
        %p470 = pneg %p78
        %p471 = pneg %p75
        %p472 = pneg %p99
        %p473 = pneg %p96
        %p474 = pneg %p120
        %p475 = pneg %p117
        %p476 = pneg %p141
        %p477 = pneg %p138
        %p478 = pneg %p162
        %p479 = pneg %p159
        %p480 = pneg %p183
        %p481 = pneg %p180
        %p482 = pneg %p204
        %p483 = pneg %p201
        %p484 = pneg %p232
        %p485 = pneg %p229
        %s486 = sand.u32 %s219, 1
        %s487 = scalar_lea.sflag [#allocation8], %s486
        %s488 = sand.u32 %s219, 1
        %s489 = smul.addr %s488, 128
        %s490 = scalar_lea.vmem [#allocation7], %s489
        %s491 = smul.u32 4, %s27
        %s492 = smul.u32 8, %s26
        %s493 = smul.u32 4, %s27
        %s494 = smul.u32 8, %s26
        %p496 = scmp.eq.s32.totalorder %s27, 0
        // Predicated region
        $region94: #{sew_bottleneck.1} parent=88 // pred_check
          %p497 = pneg %p496
        $region95: #{sew_bottleneck.1} parent=88 // pred_check_branch
          %499 = sbr.rel (%p497) target = $region97
        $region96: #{sew_bottleneck.1} parent=88 // pred_region
          %vm500 = vcmask 261120
          %501 = vst.msk [vmem:[#allocation2] sm:$0xff] %vm500, 0.0
          %502 = vst.msk [vmem:[#allocation2 + $0x8] sm:$0xff] %vm500, 0.0
          %503 = vst.msk [vmem:[#allocation2 + $0x10] sm:$0xff] %vm500, 0.0
          %504 = vst.msk [vmem:[#allocation2 + $0x18] sm:$0xff] %vm500, 0.0
          %505 = vst.msk [vmem:[#allocation2 + $0x20] sm:$0xff] %vm500, 0.0
          %506 = vst.msk [vmem:[#allocation2 + $0x28] sm:$0xff] %vm500, 0.0
          %507 = vst.msk [vmem:[#allocation2 + $0x30] sm:$0xff] %vm500, 0.0
          %508 = vst.msk [vmem:[#allocation2 + $0x38] sm:$0xff] %vm500, 0.0
          %509 = vst.msk [vmem:[#allocation3] sm:$0xff] %vm500, 0.0
          %510 = vst.msk [vmem:[#allocation3 + $0x8] sm:$0xff] %vm500, 0.0
          %511 = vst.msk [vmem:[#allocation3 + $0x10] sm:$0xff] %vm500, 0.0
          %512 = vst.msk [vmem:[#allocation3 + $0x18] sm:$0xff] %vm500, 0.0
          %513 = vst.msk [vmem:[#allocation3 + $0x20] sm:$0xff] %vm500, 0.0
          %514 = vst.msk [vmem:[#allocation3 + $0x28] sm:$0xff] %vm500, 0.0
          %515 = vst.msk [vmem:[#allocation3 + $0x30] sm:$0xff] %vm500, 0.0
          %516 = vst.msk [vmem:[#allocation3 + $0x38] sm:$0xff] %vm500, 0.0
          %517 = vst [vmem:[#allocation4] sm:$0xff] 0.0
          %518 = vst [vmem:[#allocation4 + $0x8] sm:$0xff] 0.0
          %519 = vst [vmem:[#allocation4 + $0x10] sm:$0xff] 0.0
          %520 = vst [vmem:[#allocation4 + $0x18] sm:$0xff] 0.0
          %521 = vst [vmem:[#allocation4 + $0x20] sm:$0xff] 0.0
          %522 = vst [vmem:[#allocation4 + $0x28] sm:$0xff] 0.0
          %523 = vst [vmem:[#allocation4 + $0x30] sm:$0xff] 0.0
          %524 = vst [vmem:[#allocation4 + $0x38] sm:$0xff] 0.0
        $region97: #{sew_bottleneck.1} parent=88 // pred_fallthru
          _
        %v525 = vld [vmem:[%s460] sm:$0xf]
        %v526 = vld [vmem:[%s460 + $0x4] sm:$0xf]
        %v527 = vld [vmem:[%s460 + $0x8] sm:$0xf]
        %v528 = vld [vmem:[%s460 + $0xc] sm:$0xf]
        %v529 = vld [vmem:[%s460 + $0x10] sm:$0xf]
        %v530 = vld [vmem:[%s460 + $0x14] sm:$0xf]
        %v531 = vld [vmem:[%s460 + $0x18] sm:$0xf]
        %v532 = vld [vmem:[%s460 + $0x1c] sm:$0xf]
        %v533 = vld [vmem:[%s460 + $0x20] sm:$0xf]
        %v534 = vld [vmem:[%s460 + $0x24] sm:$0xf]
        %v535 = vld [vmem:[%s460 + $0x28] sm:$0xf]
        %v536 = vld [vmem:[%s460 + $0x2c] sm:$0xf]
        %v537 = vld [vmem:[%s460 + $0x30] sm:$0xf]
        %v538 = vld [vmem:[%s460 + $0x34] sm:$0xf]
        %v539 = vld [vmem:[%s460 + $0x38] sm:$0xf]
        %v540 = vld [vmem:[%s460 + $0x3c] sm:$0xf]
        %v541 = vld [vmem:[%s460 + $0x40] sm:$0xf]
        %v542 = vld [vmem:[%s460 + $0x44] sm:$0xf]
        %v543 = vld [vmem:[%s460 + $0x48] sm:$0xf]
        %v544 = vld [vmem:[%s460 + $0x4c] sm:$0xf]
        %v545 = vld [vmem:[%s460 + $0x50] sm:$0xf]
        %v546 = vld [vmem:[%s460 + $0x54] sm:$0xf]
        %v547 = vld [vmem:[%s460 + $0x58] sm:$0xf]
        %v548 = vld [vmem:[%s460 + $0x5c] sm:$0xf]
        %v549 = vld [vmem:[%s460 + $0x60] sm:$0xf]
        %v550 = vld [vmem:[%s460 + $0x64] sm:$0xf]
        %v551 = vld [vmem:[%s460 + $0x68] sm:$0xf]
        %v552 = vld [vmem:[%s460 + $0x6c] sm:$0xf]
        %v553 = vld [vmem:[%s460 + $0x70] sm:$0xf]
        %v554 = vld [vmem:[%s460 + $0x74] sm:$0xf]
        %v555 = vld [vmem:[%s460 + $0x78] sm:$0xf]
        %v556 = vld [vmem:[%s460 + $0x7c] sm:$0xf]
        %v557 = vld [vmem:[%s1] sm:$0xf]
        %v558 = vld [vmem:[%s1 + $0x4] sm:$0xf]
        %v559 = vld [vmem:[%s1 + $0x8] sm:$0xf]
        %v560 = vld [vmem:[%s1 + $0xc] sm:$0xf]
        %v561 = vld [vmem:[%s1 + $0x10] sm:$0xf]
        %v562 = vld [vmem:[%s1 + $0x14] sm:$0xf]
        %v563 = vld [vmem:[%s1 + $0x18] sm:$0xf]
        %v564 = vld [vmem:[%s1 + $0x1c] sm:$0xf]
        %v565 = vld [vmem:[%s1 + $0x20] sm:$0xf]
        %v566 = vld [vmem:[%s1 + $0x24] sm:$0xf]
        %v567 = vld [vmem:[%s1 + $0x28] sm:$0xf]
        %v568 = vld [vmem:[%s1 + $0x2c] sm:$0xf]
        %v569 = vld [vmem:[%s1 + $0x30] sm:$0xf]
        %v570 = vld [vmem:[%s1 + $0x34] sm:$0xf]
        %v571 = vld [vmem:[%s1 + $0x38] sm:$0xf]
        %v572 = vld [vmem:[%s1 + $0x3c] sm:$0xf]
        %v573 = vld [vmem:[%s2] sm:$0x1]
        %v575 = vperm.slane %v573, 0
        %v609 = vunpack.c.l.b16 %v525
        %v610 = vunpack.c.l.b16 %v526
        %v611 = vunpack.c.l.b16 %v527
        %v612 = vunpack.c.l.b16 %v528
        %v613 = vunpack.c.l.b16 %v529
        %v614 = vunpack.c.l.b16 %v530
        %v615 = vunpack.c.l.b16 %v531
        %v616 = vunpack.c.l.b16 %v532
        %v617 = vunpack.c.l.b16 %v533
        %v618 = vunpack.c.l.b16 %v534
        %v619 = vunpack.c.l.b16 %v535
        %v620 = vunpack.c.l.b16 %v536
        %v621 = vunpack.c.l.b16 %v537
        %v622 = vunpack.c.l.b16 %v538
        %v623 = vunpack.c.l.b16 %v539
        %v624 = vunpack.c.l.b16 %v540
        %v625 = vunpack.c.l.b16 %v541
        %v626 = vunpack.c.l.b16 %v542
        %v627 = vunpack.c.l.b16 %v543
        %v628 = vunpack.c.l.b16 %v544
        %v629 = vunpack.c.l.b16 %v545
        %v630 = vunpack.c.l.b16 %v546
        %v631 = vunpack.c.l.b16 %v547
        %v632 = vunpack.c.l.b16 %v548
        %v633 = vunpack.c.l.b16 %v549
        %v634 = vunpack.c.l.b16 %v550
        %v635 = vunpack.c.l.b16 %v551
        %v636 = vunpack.c.l.b16 %v552
        %v637 = vunpack.c.l.b16 %v553
        %v638 = vunpack.c.l.b16 %v554
        %v639 = vunpack.c.l.b16 %v555
        %v640 = vunpack.c.l.b16 %v556
        %v641 = vpack.c.b16 %v610, %v609
        %v642 = vpack.c.b16 %v612, %v611
        %v643 = vpack.c.b16 %v614, %v613
        %v644 = vpack.c.b16 %v616, %v615
        %v645 = vpack.c.b16 %v618, %v617
        %v646 = vpack.c.b16 %v620, %v619
        %v647 = vpack.c.b16 %v622, %v621
        %v648 = vpack.c.b16 %v624, %v623
        %v649 = vpack.c.b16 %v626, %v625
        %v650 = vpack.c.b16 %v628, %v627
        %v651 = vpack.c.b16 %v630, %v629
        %v652 = vpack.c.b16 %v632, %v631
        %v653 = vpack.c.b16 %v634, %v633
        %v654 = vpack.c.b16 %v636, %v635
        %v655 = vpack.c.b16 %v638, %v637
        %v656 = vpack.c.b16 %v640, %v639
        %v689 = vunpack.c.l.b16 %v557
        %v690 = vunpack.c.l.b16 %v558
        %v691 = vunpack.c.l.b16 %v559
        %v692 = vunpack.c.l.b16 %v560
        %v693 = vunpack.c.l.b16 %v561
        %v694 = vunpack.c.l.b16 %v562
        %v695 = vunpack.c.l.b16 %v563
        %v696 = vunpack.c.l.b16 %v564
        %v697 = vunpack.c.l.b16 %v565
        %v698 = vunpack.c.l.b16 %v566
        %v699 = vunpack.c.l.b16 %v567
        %v700 = vunpack.c.l.b16 %v568
        %v701 = vunpack.c.l.b16 %v569
        %v702 = vunpack.c.l.b16 %v570
        %v703 = vunpack.c.l.b16 %v571
        %v704 = vunpack.c.l.b16 %v572
        %v705 = vpack.c.b16 %v690, %v689
        %v706 = vpack.c.b16 %v692, %v691
        %v707 = vpack.c.b16 %v694, %v693
        %v708 = vpack.c.b16 %v696, %v695
        %v709 = vpack.c.b16 %v698, %v697
        %v710 = vpack.c.b16 %v700, %v699
        %v711 = vpack.c.b16 %v702, %v701
        %v712 = vpack.c.b16 %v704, %v703
        %721 = vmatpush.bf16.msra.mxu0 %v712
        %722 = vmatpush.bf16.msra.mxu0 %v711
        %723 = vmatpush.bf16.msra.mxu0 %v710
        %724 = vmatpush.bf16.msra.mxu0 %v709
        %725 = vmatpush.bf16.msra.mxu0 %v708
        %726 = vmatpush.bf16.msra.mxu0 %v707
        %727 = vmatpush.bf16.msra.mxu0 %v706
        %728 = vmatpush.bf16.msra.mxu0 %v705
        %729 = vmatmul.bf16.gmra.mxu0 %v641
        %v730 = vpop.f32.mrf.mxu0
        %v731 = vadd.f32 %v575, %v730
        %v732 = vpop.f32.mrf.mxu0
        %v733 = vadd.f32 %v575, %v732
        %734 = vmatmul.bf16.gmra.mxu0 %v642
        %v735 = vpop.f32.mrf.mxu0
        %v736 = vadd.f32 %v575, %v735
        %v737 = vpop.f32.mrf.mxu0
        %v738 = vadd.f32 %v575, %v737
        %739 = vmatmul.bf16.gmra.mxu0 %v643
        %v740 = vpop.f32.mrf.mxu0
        %v741 = vadd.f32 %v575, %v740
        %v742 = vpop.f32.mrf.mxu0
        %v743 = vadd.f32 %v575, %v742
        %744 = vmatmul.bf16.gmra.mxu0 %v644
        %v745 = vpop.f32.mrf.mxu0
        %v746 = vadd.f32 %v575, %v745
        %v747 = vpop.f32.mrf.mxu0
        %v748 = vadd.f32 %v575, %v747
        %749 = vmatmul.bf16.gmra.mxu0 %v645
        %v750 = vpop.f32.mrf.mxu0
        %v751 = vadd.f32 %v575, %v750
        %v752 = vpop.f32.mrf.mxu0
        %v753 = vadd.f32 %v575, %v752
        %754 = vmatmul.bf16.gmra.mxu0 %v646
        %v755 = vpop.f32.mrf.mxu0
        %v756 = vadd.f32 %v575, %v755
        %v757 = vpop.f32.mrf.mxu0
        %v758 = vadd.f32 %v575, %v757
        %759 = vmatmul.bf16.gmra.mxu0 %v647
        %v760 = vpop.f32.mrf.mxu0
        %v761 = vadd.f32 %v575, %v760
        %v762 = vpop.f32.mrf.mxu0
        %v763 = vadd.f32 %v575, %v762
        %764 = vmatmul.bf16.gmra.mxu0 %v648
        %v765 = vpop.f32.mrf.mxu0
        %v766 = vadd.f32 %v575, %v765
        %v767 = vpop.f32.mrf.mxu0
        %v768 = vadd.f32 %v575, %v767
        %769 = vmatmul.bf16.gmra.mxu0 %v649
        %v770 = vpop.f32.mrf.mxu0
        %v771 = vadd.f32 %v575, %v770
        %v772 = vpop.f32.mrf.mxu0
        %v773 = vadd.f32 %v575, %v772
        %774 = vmatmul.bf16.gmra.mxu0 %v650
        %v775 = vpop.f32.mrf.mxu0
        %v776 = vadd.f32 %v575, %v775
        %v777 = vpop.f32.mrf.mxu0
        %v778 = vadd.f32 %v575, %v777
        %779 = vmatmul.bf16.gmra.mxu0 %v651
        %v780 = vpop.f32.mrf.mxu0
        %v781 = vadd.f32 %v575, %v780
        %v782 = vpop.f32.mrf.mxu0
        %v783 = vadd.f32 %v575, %v782
        %784 = vmatmul.bf16.gmra.mxu0 %v652
        %v785 = vpop.f32.mrf.mxu0
        %v786 = vadd.f32 %v575, %v785
        %v787 = vpop.f32.mrf.mxu0
        %v788 = vadd.f32 %v575, %v787
        %789 = vmatmul.bf16.gmra.mxu0 %v653
        %v790 = vpop.f32.mrf.mxu0
        %v791 = vadd.f32 %v575, %v790
        %v792 = vpop.f32.mrf.mxu0
        %v793 = vadd.f32 %v575, %v792
        %794 = vmatmul.bf16.gmra.mxu0 %v654
        %v795 = vpop.f32.mrf.mxu0
        %v796 = vadd.f32 %v575, %v795
        %v797 = vpop.f32.mrf.mxu0
        %v798 = vadd.f32 %v575, %v797
        %799 = vmatmul.bf16.gmra.mxu0 %v655
        %v800 = vpop.f32.mrf.mxu0
        %v801 = vadd.f32 %v575, %v800
        %v802 = vpop.f32.mrf.mxu0
        %v803 = vadd.f32 %v575, %v802
        %804 = vmatmul.bf16.gmra.mxu0 %v656
        %v805 = vpop.f32.mrf.mxu0
        %v806 = vadd.f32 %v575, %v805
        %v807 = vpop.f32.mrf.mxu0
        %v808 = vadd.f32 %v575, %v807
        %809 = vdwg.mxu0
        %vm810 = vcmask 261120
        %811 = vst.msk [vmem:[#allocation5] sm:$0xff] %vm810, %v731
        %812 = vst.msk [vmem:[#allocation5 + $0x8] sm:$0xff] %vm810, %v733
        %813 = vst.msk [vmem:[#allocation5 + $0x10] sm:$0xff] %vm810, %v736
        %814 = vst.msk [vmem:[#allocation5 + $0x18] sm:$0xff] %vm810, %v738
        %815 = vst.msk [vmem:[#allocation5 + $0x20] sm:$0xff] %vm810, %v741
        %816 = vst.msk [vmem:[#allocation5 + $0x28] sm:$0xff] %vm810, %v743
        %817 = vst.msk [vmem:[#allocation5 + $0x30] sm:$0xff] %vm810, %v746
        %818 = vst.msk [vmem:[#allocation5 + $0x38] sm:$0xff] %vm810, %v748
        %819 = vst.msk [vmem:[#allocation5 + $0x40] sm:$0xff] %vm810, %v751
        %820 = vst.msk [vmem:[#allocation5 + $0x48] sm:$0xff] %vm810, %v753
        %821 = vst.msk [vmem:[#allocation5 + $0x50] sm:$0xff] %vm810, %v756
        %822 = vst.msk [vmem:[#allocation5 + $0x58] sm:$0xff] %vm810, %v758
        %823 = vst.msk [vmem:[#allocation5 + $0x60] sm:$0xff] %vm810, %v761
        %824 = vst.msk [vmem:[#allocation5 + $0x68] sm:$0xff] %vm810, %v763
        %825 = vst.msk [vmem:[#allocation5 + $0x70] sm:$0xff] %vm810, %v766
        %826 = vst.msk [vmem:[#allocation5 + $0x78] sm:$0xff] %vm810, %v768
        %827 = vst.msk [vmem:[#allocation5 + $0x80] sm:$0xff] %vm810, %v771
        %828 = vst.msk [vmem:[#allocation5 + $0x88] sm:$0xff] %vm810, %v773
        %829 = vst.msk [vmem:[#allocation5 + $0x90] sm:$0xff] %vm810, %v776
        %830 = vst.msk [vmem:[#allocation5 + $0x98] sm:$0xff] %vm810, %v778
        %831 = vst.msk [vmem:[#allocation5 + $0xa0] sm:$0xff] %vm810, %v781
        %832 = vst.msk [vmem:[#allocation5 + $0xa8] sm:$0xff] %vm810, %v783
        %833 = vst.msk [vmem:[#allocation5 + $0xb0] sm:$0xff] %vm810, %v786
        %834 = vst.msk [vmem:[#allocation5 + $0xb8] sm:$0xff] %vm810, %v788
        %835 = vst.msk [vmem:[#allocation5 + $0xc0] sm:$0xff] %vm810, %v791
        %836 = vst.msk [vmem:[#allocation5 + $0xc8] sm:$0xff] %vm810, %v793
        %837 = vst.msk [vmem:[#allocation5 + $0xd0] sm:$0xff] %vm810, %v796
        %838 = vst.msk [vmem:[#allocation5 + $0xd8] sm:$0xff] %vm810, %v798
        %839 = vst.msk [vmem:[#allocation5 + $0xe0] sm:$0xff] %vm810, %v801
        %840 = vst.msk [vmem:[#allocation5 + $0xe8] sm:$0xff] %vm810, %v803
        %841 = vst.msk [vmem:[#allocation5 + $0xf0] sm:$0xff] %vm810, %v806
        %842 = vst.msk [vmem:[#allocation5 + $0xf8] sm:$0xff] %vm810, %v808
        %v843 = vld [vmem:[%s4] sm:$0x1]
        %v845 = vperm.slane %v843, 0
        %v847 = vld [vmem:[%s6] sm:$0x1]
        %v849 = vperm.slane %v847, 0
        %v851 = vld [vmem:[#allocation5] sm:$0xff]
        %v852 = vld [vmem:[#allocation5 + $0x8] sm:$0xff]
        %v853 = vld [vmem:[#allocation5 + $0x10] sm:$0xff]
        %v854 = vld [vmem:[#allocation5 + $0x18] sm:$0xff]
        %v855 = vld [vmem:[#allocation5 + $0x20] sm:$0xff]
        %v856 = vld [vmem:[#allocation5 + $0x28] sm:$0xff]
        %v857 = vld [vmem:[#allocation5 + $0x30] sm:$0xff]
        %v858 = vld [vmem:[#allocation5 + $0x38] sm:$0xff]
        %v859 = vld [vmem:[#allocation2] sm:$0xff]
        %v860 = vld [vmem:[#allocation2 + $0x8] sm:$0xff]
        %v861 = vld [vmem:[#allocation2 + $0x10] sm:$0xff]
        %v862 = vld [vmem:[#allocation2 + $0x18] sm:$0xff]
        %v863 = vld [vmem:[#allocation2 + $0x20] sm:$0xff]
        %v864 = vld [vmem:[#allocation2 + $0x28] sm:$0xff]
        %v865 = vld [vmem:[#allocation2 + $0x30] sm:$0xff]
        %v866 = vld [vmem:[#allocation2 + $0x38] sm:$0xff]
        %v867 = vadd.f32 %v859, %v851
        %v868 = vadd.f32 %v860, %v852
        %v869 = vadd.f32 %v861, %v853
        %v870 = vadd.f32 %v862, %v854
        %v871 = vadd.f32 %v863, %v855
        %v872 = vadd.f32 %v864, %v856
        %v873 = vadd.f32 %v865, %v857
        %v874 = vadd.f32 %v866, %v858
        %vm875 = vcmp.ge.f32.partialorder %v867, 1.0
        %vm876 = vcmp.ge.f32.partialorder %v868, 1.0
        %vm877 = vcmp.ge.f32.partialorder %v869, 1.0
        %vm878 = vcmp.ge.f32.partialorder %v870, 1.0
        %vm879 = vcmp.ge.f32.partialorder %v871, 1.0
        %vm880 = vcmp.ge.f32.partialorder %v872, 1.0
        %vm881 = vcmp.ge.f32.partialorder %v873, 1.0
        %vm882 = vcmp.ge.f32.partialorder %v874, 1.0
        %v883 = vsel %vm875, 0.0, %v867
        %v884 = vsel %vm876, 0.0, %v868
        %v885 = vsel %vm877, 0.0, %v869
        %v886 = vsel %vm878, 0.0, %v870
        %v887 = vsel %vm879, 0.0, %v871
        %v888 = vsel %vm880, 0.0, %v872
        %v889 = vsel %vm881, 0.0, %v873
        %v890 = vsel %vm882, 0.0, %v874
        %891 = vst.msk [vmem:[#allocation2] sm:$0xff] %vm810, %v883
        %892 = vst.msk [vmem:[#allocation2 + $0x8] sm:$0xff] %vm810, %v884
        %893 = vst.msk [vmem:[#allocation2 + $0x10] sm:$0xff] %vm810, %v885
        %894 = vst.msk [vmem:[#allocation2 + $0x18] sm:$0xff] %vm810, %v886
        %895 = vst.msk [vmem:[#allocation2 + $0x20] sm:$0xff] %vm810, %v887
        %896 = vst.msk [vmem:[#allocation2 + $0x28] sm:$0xff] %vm810, %v888
        %897 = vst.msk [vmem:[#allocation2 + $0x30] sm:$0xff] %vm810, %v889
        %898 = vst.msk [vmem:[#allocation2 + $0x38] sm:$0xff] %vm810, %v890
        %v899 = vsel %vm875, 1, 0
        %v900 = vsel %vm876, 1, 0
        %v901 = vsel %vm877, 1, 0
        %v902 = vsel %vm878, 1, 0
        %v903 = vsel %vm879, 1, 0
        %v904 = vsel %vm880, 1, 0
        %v905 = vsel %vm881, 1, 0
        %v906 = vsel %vm882, 1, 0
        %v907 = vcvt.s32.f32 %v899
        %v908 = vcvt.s32.f32 %v900
        %v909 = vcvt.s32.f32 %v901
        %v910 = vcvt.s32.f32 %v902
        %v911 = vcvt.s32.f32 %v903
        %v912 = vcvt.s32.f32 %v904
        %v913 = vcvt.s32.f32 %v905
        %v914 = vcvt.s32.f32 %v906
        %v915 = vpack.c.bf16 %v908, %v907
        %v916 = vpack.c.bf16 %v910, %v909
        %v917 = vpack.c.bf16 %v912, %v911
        %v918 = vpack.c.bf16 %v914, %v913
        %v919 = vld [vmem:[%s3] sm:$0xff]
        %v920 = vld [vmem:[%s3 + $0x8] sm:$0xf]
        %v921 = vld [vmem:[%s3 + $0xc] sm:$0xff]
        %v922 = vld [vmem:[%s3 + $0x14] sm:$0xf]
        %v923 = vld [vmem:[%s3 + $0x18] sm:$0xff]
        %v924 = vld [vmem:[%s3 + $0x20] sm:$0xf]
        %v925 = vld [vmem:[%s3 + $0x24] sm:$0xff]
        %v926 = vld [vmem:[%s3 + $0x2c] sm:$0xf]
        %v935 = vunpack.c.l.b16 %v919
        %v936 = vunpack.c.h.b16 %v919
        %v937 = vunpack.c.l.b16 %v920
        %v938 = vunpack.c.l.b16 %v921
        %v939 = vunpack.c.h.b16 %v921
        %v940 = vunpack.c.l.b16 %v922
        %v941 = vunpack.c.l.b16 %v923
        %v942 = vunpack.c.h.b16 %v923
        %v943 = vunpack.c.l.b16 %v924
        %v944 = vunpack.c.l.b16 %v925
        %v945 = vunpack.c.h.b16 %v925
        %v946 = vunpack.c.l.b16 %v926
        %v947 = vpack.c.b16 %v938, %v935
        %v948 = vpack.c.b16 %v939, %v936
        %v949 = vpack.c.b16 %v940, %v937
        %v950 = vpack.c.b16 %v944, %v941
        %v951 = vpack.c.b16 %v945, %v942
        %v952 = vpack.c.b16 %v946, %v943
        %v960 = vsel %vm810, %v915, 0
        %v963 = vsel %vm810, %v916, 0
        %v966 = vsel %vm810, %v917, 0
        %v969 = vsel %vm810, %v918, 0
        %971 = vmatpush.bf16.msra.mxu0 0
        %972 = vmatpush.bf16.msra.mxu0 0
        %973 = vmatpush.bf16.msra.mxu0 0
        %974 = vmatpush.bf16.msra.mxu0 0
        %975 = vmatpush.bf16.msra.mxu0 0
        %976 = vmatpush.bf16.msra.mxu0 0
        %977 = vmatpush.bf16.msra.mxu0 %v950
        %978 = vmatpush.bf16.msra.mxu0 %v947
        %979 = vmatmul.bf16.gmra.mxu0 %v960
        %v980 = vpop.f32.mrf.mxu0
        %v981 = vadd.f32 0.0, %v980
        %v982 = vpop.f32.mrf.mxu0
        %v983 = vadd.f32 0.0, %v982
        %984 = vmatmul.bf16.gmra.mxu0 %v963
        %v985 = vpop.f32.mrf.mxu0
        %v986 = vadd.f32 0.0, %v985
        %v987 = vpop.f32.mrf.mxu0
        %v988 = vadd.f32 0.0, %v987
        %989 = vmatmul.bf16.gmra.mxu0 %v966
        %v990 = vpop.f32.mrf.mxu0
        %v991 = vadd.f32 0.0, %v990
        %v992 = vpop.f32.mrf.mxu0
        %v993 = vadd.f32 0.0, %v992
        %994 = vmatmul.bf16.gmra.mxu0 %v969
        %v995 = vpop.f32.mrf.mxu0
        %v996 = vadd.f32 0.0, %v995
        %v997 = vpop.f32.mrf.mxu0
        %v998 = vadd.f32 0.0, %v997
        %999 = vdwg.mxu0
        %1000 = vmatpush.bf16.msra.mxu0 0
        %1001 = vmatpush.bf16.msra.mxu0 0
        %1002 = vmatpush.bf16.msra.mxu0 0
        %1003 = vmatpush.bf16.msra.mxu0 0
        %1004 = vmatpush.bf16.msra.mxu0 0
        %1005 = vmatpush.bf16.msra.mxu0 0
        %1006 = vmatpush.bf16.msra.mxu0 %v951
        %1007 = vmatpush.bf16.msra.mxu0 %v948
        %1008 = vmatmul.bf16.gmra.mxu0 %v960
        %v1009 = vpop.f32.mrf.mxu0
        %v1010 = vadd.f32 0.0, %v1009
        %v1011 = vpop.f32.mrf.mxu0
        %v1012 = vadd.f32 0.0, %v1011
        %1013 = vmatmul.bf16.gmra.mxu0 %v963
        %v1014 = vpop.f32.mrf.mxu0
        %v1015 = vadd.f32 0.0, %v1014
        %v1016 = vpop.f32.mrf.mxu0
        %v1017 = vadd.f32 0.0, %v1016
        %1018 = vmatmul.bf16.gmra.mxu0 %v966
        %v1019 = vpop.f32.mrf.mxu0
        %v1020 = vadd.f32 0.0, %v1019
        %v1021 = vpop.f32.mrf.mxu0
        %v1022 = vadd.f32 0.0, %v1021
        %1023 = vmatmul.bf16.gmra.mxu0 %v969
        %v1024 = vpop.f32.mrf.mxu0
        %v1025 = vadd.f32 0.0, %v1024
        %v1026 = vpop.f32.mrf.mxu0
        %v1027 = vadd.f32 0.0, %v1026
        %1028 = vdwg.mxu0
        %1029 = vmatpush.bf16.msra.mxu0 0
        %1030 = vmatpush.bf16.msra.mxu0 0
        %1031 = vmatpush.bf16.msra.mxu0 0
        %1032 = vmatpush.bf16.msra.mxu0 0
        %1033 = vmatpush.bf16.msra.mxu0 0
        %1034 = vmatpush.bf16.msra.mxu0 0
        %1035 = vmatpush.bf16.msra.mxu0 %v952
        %1036 = vmatpush.bf16.msra.mxu0 %v949
        %1037 = vmatmul.bf16.gmra.mxu0 %v960
        %v1038 = vpop.f32.mrf.mxu0
        %v1039 = vadd.f32 0.0, %v1038
        %v1040 = vpop.f32.mrf.mxu0
        %v1041 = vadd.f32 0.0, %v1040
        %1042 = vmatmul.bf16.gmra.mxu0 %v963
        %v1043 = vpop.f32.mrf.mxu0
        %v1044 = vadd.f32 0.0, %v1043
        %v1045 = vpop.f32.mrf.mxu0
        %v1046 = vadd.f32 0.0, %v1045
        %1047 = vmatmul.bf16.gmra.mxu0 %v966
        %v1048 = vpop.f32.mrf.mxu0
        %v1049 = vadd.f32 0.0, %v1048
        %v1050 = vpop.f32.mrf.mxu0
        %v1051 = vadd.f32 0.0, %v1050
        %1052 = vmatmul.bf16.gmra.mxu0 %v969
        %v1053 = vpop.f32.mrf.mxu0
        %v1054 = vadd.f32 0.0, %v1053
        %v1055 = vpop.f32.mrf.mxu0
        %v1056 = vadd.f32 0.0, %v1055
        %1057 = vdwg.mxu0
        %v1058 = vadd.f32 %v1010, %v845
        %v1059 = vadd.f32 %v1012, %v845
        %v1060 = vadd.f32 %v1015, %v845
        %v1061 = vadd.f32 %v1017, %v845
        %v1062 = vadd.f32 %v1020, %v845
        %v1063 = vadd.f32 %v1022, %v845
        %v1064 = vadd.f32 %v1025, %v845
        %v1065 = vadd.f32 %v1027, %v845
        %v1066 = vrot.slane %v981, 7
        %v1067 = vrot.slane %v983, 7
        %v1068 = vrot.slane %v986, 7
        %v1069 = vrot.slane %v988, 7
        %v1070 = vrot.slane %v991, 7
        %v1071 = vrot.slane %v993, 7
        %v1072 = vrot.slane %v996, 7
        %v1073 = vrot.slane %v998, 7
        %v1074 = vlaneseq
        %v1075 = vshrl.u32 %v1074, 7
        %vm1076 = vcmp.lt.s32.totalorder %v1075, 1
        %v1077 = vsel %vm1076, %v1072, %v1073
        %v1078 = vsel %vm1076, %v1071, %v1072
        %v1079 = vsel %vm1076, %v1070, %v1071
        %v1080 = vsel %vm1076, %v1069, %v1070
        %v1081 = vsel %vm1076, %v1068, %v1069
        %v1082 = vsel %vm1076, %v1067, %v1068
        %v1083 = vsel %vm1076, %v1066, %v1067
        %v1084 = vsel %vm1076, %v1073, %v1066
        %v1085 = vld [vmem:[%s7] sm:$0xff]
        %v1086 = vld [vmem:[%s7 + $0x8] sm:$0xff]
        %v1087 = vld [vmem:[%s7 + $0x10] sm:$0xff]
        %v1088 = vld [vmem:[%s7 + $0x18] sm:$0xff]
        %v1089 = vld [vmem:[%s7 + $0x20] sm:$0xff]
        %v1090 = vld [vmem:[%s7 + $0x28] sm:$0xff]
        %v1091 = vld [vmem:[%s7 + $0x30] sm:$0xff]
        %v1092 = vld [vmem:[%s7 + $0x38] sm:$0xff]
        %v1093 = vmul.f32 %v1077, %v1085
        %v1094 = vmul.f32 %v1084, %v1086
        %v1095 = vmul.f32 %v1083, %v1087
        %v1096 = vmul.f32 %v1082, %v1088
        %v1097 = vmul.f32 %v1081, %v1089
        %v1098 = vmul.f32 %v1080, %v1090
        %v1099 = vmul.f32 %v1079, %v1091
        %v1100 = vmul.f32 %v1078, %v1092
        %v1101 = vadd.f32 %v1058, %v1093
        %v1102 = vadd.f32 %v1059, %v1094
        %v1103 = vadd.f32 %v1060, %v1095
        %v1104 = vadd.f32 %v1061, %v1096
        %v1105 = vadd.f32 %v1062, %v1097
        %v1106 = vadd.f32 %v1063, %v1098
        %v1107 = vadd.f32 %v1064, %v1099
        %v1108 = vadd.f32 %v1065, %v1100
        %1117 = vrot.lane.b32.xlu0 %v981, 96
        %v1118 = vpop.permute.xlu0 %1117
        %1119 = vrot.lane.b32.xlu0 %v983, 96
        %v1120 = vpop.permute.xlu0 %1119
        %1121 = vrot.lane.b32.xlu0 %v986, 96
        %v1122 = vpop.permute.xlu0 %1121
        %1123 = vrot.lane.b32.xlu0 %v988, 96
        %v1124 = vpop.permute.xlu0 %1123
        %1125 = vrot.lane.b32.xlu0 %v991, 96
        %v1126 = vpop.permute.xlu0 %1125
        %1127 = vrot.lane.b32.xlu0 %v993, 96
        %v1128 = vpop.permute.xlu0 %1127
        %1129 = vrot.lane.b32.xlu0 %v996, 96
        %v1130 = vpop.permute.xlu0 %1129
        %1131 = vrot.lane.b32.xlu0 %v998, 96
        %v1132 = vpop.permute.xlu0 %1131
        %s1141 = scalar_lea.vmem %s7, 64
        %v1142 = vld [vmem:[%s1141] sm:$0xff]
        %v1143 = vld [vmem:[%s1141 + $0x8] sm:$0xff]
        %v1144 = vld [vmem:[%s1141 + $0x10] sm:$0xff]
        %v1145 = vld [vmem:[%s1141 + $0x18] sm:$0xff]
        %v1146 = vld [vmem:[%s1141 + $0x20] sm:$0xff]
        %v1147 = vld [vmem:[%s1141 + $0x28] sm:$0xff]
        %v1148 = vld [vmem:[%s1141 + $0x30] sm:$0xff]
        %v1149 = vld [vmem:[%s1141 + $0x38] sm:$0xff]
        %v1150 = vmul.f32 %v1132, %v1142
        %v1151 = vmul.f32 %v1118, %v1143
        %v1152 = vmul.f32 %v1120, %v1144
        %v1153 = vmul.f32 %v1122, %v1145
        %v1154 = vmul.f32 %v1124, %v1146
        %v1155 = vmul.f32 %v1126, %v1147
        %v1156 = vmul.f32 %v1128, %v1148
        %v1157 = vmul.f32 %v1130, %v1149
        %v1158 = vadd.f32 %v1101, %v1150
        %v1159 = vadd.f32 %v1102, %v1151
        %v1160 = vadd.f32 %v1103, %v1152
        %v1161 = vadd.f32 %v1104, %v1153
        %v1162 = vadd.f32 %v1105, %v1154
        %v1163 = vadd.f32 %v1106, %v1155
        %v1164 = vadd.f32 %v1107, %v1156
        %v1165 = vadd.f32 %v1108, %v1157
        %1166 = vrot.lane.b32.xlu0 %v981, 64
        %v1167 = vpop.permute.xlu0 %1166
        %1168 = vrot.lane.b32.xlu0 %v983, 64
        %v1169 = vpop.permute.xlu0 %1168
        %1170 = vrot.lane.b32.xlu0 %v986, 64
        %v1171 = vpop.permute.xlu0 %1170
        %1172 = vrot.lane.b32.xlu0 %v988, 64
        %v1173 = vpop.permute.xlu0 %1172
        %1174 = vrot.lane.b32.xlu0 %v991, 64
        %v1175 = vpop.permute.xlu0 %1174
        %1176 = vrot.lane.b32.xlu0 %v993, 64
        %v1177 = vpop.permute.xlu0 %1176
        %1178 = vrot.lane.b32.xlu0 %v996, 64
        %v1179 = vpop.permute.xlu0 %1178
        %1180 = vrot.lane.b32.xlu0 %v998, 64
        %v1181 = vpop.permute.xlu0 %1180
        %v1190 = vrot.slane %v1167, 1
        %v1191 = vrot.slane %v1169, 1
        %v1192 = vrot.slane %v1171, 1
        %v1193 = vrot.slane %v1173, 1
        %v1194 = vrot.slane %v1175, 1
        %v1195 = vrot.slane %v1177, 1
        %v1196 = vrot.slane %v1179, 1
        %v1197 = vrot.slane %v1181, 1
        %vm1198 = vcmp.lt.s32.totalorder %v1075, 7
        %v1199 = vsel %vm1198, %v1196, %v1197
        %v1200 = vsel %vm1198, %v1195, %v1196
        %v1201 = vsel %vm1198, %v1194, %v1195
        %v1202 = vsel %vm1198, %v1193, %v1194
        %v1203 = vsel %vm1198, %v1192, %v1193
        %v1204 = vsel %vm1198, %v1191, %v1192
        %v1205 = vsel %vm1198, %v1190, %v1191
        %v1206 = vsel %vm1198, %v1197, %v1190
        %s1207 = scalar_lea.vmem %s7, 128
        %v1208 = vld [vmem:[%s1207] sm:$0xff]
        %v1209 = vld [vmem:[%s1207 + $0x8] sm:$0xff]
        %v1210 = vld [vmem:[%s1207 + $0x10] sm:$0xff]
        %v1211 = vld [vmem:[%s1207 + $0x18] sm:$0xff]
        %v1212 = vld [vmem:[%s1207 + $0x20] sm:$0xff]
        %v1213 = vld [vmem:[%s1207 + $0x28] sm:$0xff]
        %v1214 = vld [vmem:[%s1207 + $0x30] sm:$0xff]
        %v1215 = vld [vmem:[%s1207 + $0x38] sm:$0xff]
        %v1216 = vmul.f32 %v1206, %v1208
        %v1217 = vmul.f32 %v1205, %v1209
        %v1218 = vmul.f32 %v1204, %v1210
        %v1219 = vmul.f32 %v1203, %v1211
        %v1220 = vmul.f32 %v1202, %v1212
        %v1221 = vmul.f32 %v1201, %v1213
        %v1222 = vmul.f32 %v1200, %v1214
        %v1223 = vmul.f32 %v1199, %v1215
        %v1224 = vadd.f32 %v1158, %v1216
        %v1225 = vadd.f32 %v1159, %v1217
        %v1226 = vadd.f32 %v1160, %v1218
        %v1227 = vadd.f32 %v1161, %v1219
        %v1228 = vadd.f32 %v1162, %v1220
        %v1229 = vadd.f32 %v1163, %v1221
        %v1230 = vadd.f32 %v1164, %v1222
        %v1231 = vadd.f32 %v1165, %v1223
        %1232 = vrot.lane.b32.xlu0 %v981, 32
        %v1233 = vpop.permute.xlu0 %1232
        %1234 = vrot.lane.b32.xlu0 %v983, 32
        %v1235 = vpop.permute.xlu0 %1234
        %1236 = vrot.lane.b32.xlu0 %v986, 32
        %v1237 = vpop.permute.xlu0 %1236
        %1238 = vrot.lane.b32.xlu0 %v988, 32
        %v1239 = vpop.permute.xlu0 %1238
        %1240 = vrot.lane.b32.xlu0 %v991, 32
        %v1241 = vpop.permute.xlu0 %1240
        %1242 = vrot.lane.b32.xlu0 %v993, 32
        %v1243 = vpop.permute.xlu0 %1242
        %1244 = vrot.lane.b32.xlu0 %v996, 32
        %v1245 = vpop.permute.xlu0 %1244
        %1246 = vrot.lane.b32.xlu0 %v998, 32
        %v1247 = vpop.permute.xlu0 %1246
        %v1256 = vrot.slane %v1233, 7
        %v1257 = vrot.slane %v1235, 7
        %v1258 = vrot.slane %v1237, 7
        %v1259 = vrot.slane %v1239, 7
        %v1260 = vrot.slane %v1241, 7
        %v1261 = vrot.slane %v1243, 7
        %v1262 = vrot.slane %v1245, 7
        %v1263 = vrot.slane %v1247, 7
        %v1264 = vsel %vm1076, %v1262, %v1263
        %v1265 = vsel %vm1076, %v1261, %v1262
        %v1266 = vsel %vm1076, %v1260, %v1261
        %v1267 = vsel %vm1076, %v1259, %v1260
        %v1268 = vsel %vm1076, %v1258, %v1259
        %v1269 = vsel %vm1076, %v1257, %v1258
        %v1270 = vsel %vm1076, %v1256, %v1257
        %v1271 = vsel %vm1076, %v1263, %v1256
        %s1272 = scalar_lea.vmem %s7, 192
        %v1273 = vld [vmem:[%s1272] sm:$0xff]
        %v1274 = vld [vmem:[%s1272 + $0x8] sm:$0xff]
        %v1275 = vld [vmem:[%s1272 + $0x10] sm:$0xff]
        %v1276 = vld [vmem:[%s1272 + $0x18] sm:$0xff]
        %v1277 = vld [vmem:[%s1272 + $0x20] sm:$0xff]
        %v1278 = vld [vmem:[%s1272 + $0x28] sm:$0xff]
        %v1279 = vld [vmem:[%s1272 + $0x30] sm:$0xff]
        %v1280 = vld [vmem:[%s1272 + $0x38] sm:$0xff]
        %v1281 = vmul.f32 %v1271, %v1273
        %v1282 = vmul.f32 %v1270, %v1274
        %v1283 = vmul.f32 %v1269, %v1275
        %v1284 = vmul.f32 %v1268, %v1276
        %v1285 = vmul.f32 %v1267, %v1277
        %v1286 = vmul.f32 %v1266, %v1278
        %v1287 = vmul.f32 %v1265, %v1279
        %v1288 = vmul.f32 %v1264, %v1280
        %v1289 = vadd.f32 %v1224, %v1281
        %v1290 = vadd.f32 %v1225, %v1282
        %v1291 = vadd.f32 %v1226, %v1283
        %v1292 = vadd.f32 %v1227, %v1284
        %v1293 = vadd.f32 %v1228, %v1285
        %v1294 = vadd.f32 %v1229, %v1286
        %v1295 = vadd.f32 %v1230, %v1287
        %v1296 = vadd.f32 %v1231, %v1288
        %1305 = vrot.lane.b32.xlu0 %v1010, 96
        %v1306 = vpop.permute.xlu0 %1305
        %1307 = vrot.lane.b32.xlu0 %v1012, 96
        %v1308 = vpop.permute.xlu0 %1307
        %1309 = vrot.lane.b32.xlu0 %v1015, 96
        %v1310 = vpop.permute.xlu0 %1309
        %1311 = vrot.lane.b32.xlu0 %v1017, 96
        %v1312 = vpop.permute.xlu0 %1311
        %1313 = vrot.lane.b32.xlu0 %v1020, 96
        %v1314 = vpop.permute.xlu0 %1313
        %1315 = vrot.lane.b32.xlu0 %v1022, 96
        %v1316 = vpop.permute.xlu0 %1315
        %1317 = vrot.lane.b32.xlu0 %v1025, 96
        %v1318 = vpop.permute.xlu0 %1317
        %1319 = vrot.lane.b32.xlu0 %v1027, 96
        %v1320 = vpop.permute.xlu0 %1319
        %v1329 = vrot.slane %v1306, 1
        %v1330 = vrot.slane %v1308, 1
        %v1331 = vrot.slane %v1310, 1
        %v1332 = vrot.slane %v1312, 1
        %v1333 = vrot.slane %v1314, 1
        %v1334 = vrot.slane %v1316, 1
        %v1335 = vrot.slane %v1318, 1
        %v1336 = vrot.slane %v1320, 1
        %v1337 = vsel %vm1198, %v1335, %v1336
        %v1338 = vsel %vm1198, %v1334, %v1335
        %v1339 = vsel %vm1198, %v1333, %v1334
        %v1340 = vsel %vm1198, %v1332, %v1333
        %v1341 = vsel %vm1198, %v1331, %v1332
        %v1342 = vsel %vm1198, %v1330, %v1331
        %v1343 = vsel %vm1198, %v1329, %v1330
        %v1344 = vsel %vm1198, %v1336, %v1329
        %s1345 = scalar_lea.vmem %s7, 320
        %v1346 = vld [vmem:[%s1345] sm:$0xff]
        %v1347 = vld [vmem:[%s1345 + $0x8] sm:$0xff]
        %v1348 = vld [vmem:[%s1345 + $0x10] sm:$0xff]
        %v1349 = vld [vmem:[%s1345 + $0x18] sm:$0xff]
        %v1350 = vld [vmem:[%s1345 + $0x20] sm:$0xff]
        %v1351 = vld [vmem:[%s1345 + $0x28] sm:$0xff]
        %v1352 = vld [vmem:[%s1345 + $0x30] sm:$0xff]
        %v1353 = vld [vmem:[%s1345 + $0x38] sm:$0xff]
        %v1354 = vmul.f32 %v1343, %v1346
        %v1355 = vmul.f32 %v1342, %v1347
        %v1356 = vmul.f32 %v1341, %v1348
        %v1357 = vmul.f32 %v1340, %v1349
        %v1358 = vmul.f32 %v1339, %v1350
        %v1359 = vmul.f32 %v1338, %v1351
        %v1360 = vmul.f32 %v1337, %v1352
        %v1361 = vmul.f32 %v1344, %v1353
        %v1362 = vadd.f32 %v1289, %v1354
        %v1363 = vadd.f32 %v1290, %v1355
        %v1364 = vadd.f32 %v1291, %v1356
        %v1365 = vadd.f32 %v1292, %v1357
        %v1366 = vadd.f32 %v1293, %v1358
        %v1367 = vadd.f32 %v1294, %v1359
        %v1368 = vadd.f32 %v1295, %v1360
        %v1369 = vadd.f32 %v1296, %v1361
        %1370 = vrot.lane.b32.xlu0 %v1010, 64
        %v1371 = vpop.permute.xlu0 %1370
        %1372 = vrot.lane.b32.xlu0 %v1012, 64
        %v1373 = vpop.permute.xlu0 %1372
        %1374 = vrot.lane.b32.xlu0 %v1015, 64
        %v1375 = vpop.permute.xlu0 %1374
        %1376 = vrot.lane.b32.xlu0 %v1017, 64
        %v1377 = vpop.permute.xlu0 %1376
        %1378 = vrot.lane.b32.xlu0 %v1020, 64
        %v1379 = vpop.permute.xlu0 %1378
        %1380 = vrot.lane.b32.xlu0 %v1022, 64
        %v1381 = vpop.permute.xlu0 %1380
        %1382 = vrot.lane.b32.xlu0 %v1025, 64
        %v1383 = vpop.permute.xlu0 %1382
        %1384 = vrot.lane.b32.xlu0 %v1027, 64
        %v1385 = vpop.permute.xlu0 %1384
        %v1394 = vrot.slane %v1371, 7
        %v1395 = vrot.slane %v1373, 7
        %v1396 = vrot.slane %v1375, 7
        %v1397 = vrot.slane %v1377, 7
        %v1398 = vrot.slane %v1379, 7
        %v1399 = vrot.slane %v1381, 7
        %v1400 = vrot.slane %v1383, 7
        %v1401 = vrot.slane %v1385, 7
        %v1402 = vsel %vm1076, %v1400, %v1401
        %v1403 = vsel %vm1076, %v1399, %v1400
        %v1404 = vsel %vm1076, %v1398, %v1399
        %v1405 = vsel %vm1076, %v1397, %v1398
        %v1406 = vsel %vm1076, %v1396, %v1397
        %v1407 = vsel %vm1076, %v1395, %v1396
        %v1408 = vsel %vm1076, %v1394, %v1395
        %v1409 = vsel %vm1076, %v1401, %v1394
        %s1410 = scalar_lea.vmem %s7, 384
        %v1411 = vld [vmem:[%s1410] sm:$0xff]
        %v1412 = vld [vmem:[%s1410 + $0x8] sm:$0xff]
        %v1413 = vld [vmem:[%s1410 + $0x10] sm:$0xff]
        %v1414 = vld [vmem:[%s1410 + $0x18] sm:$0xff]
        %v1415 = vld [vmem:[%s1410 + $0x20] sm:$0xff]
        %v1416 = vld [vmem:[%s1410 + $0x28] sm:$0xff]
        %v1417 = vld [vmem:[%s1410 + $0x30] sm:$0xff]
        %v1418 = vld [vmem:[%s1410 + $0x38] sm:$0xff]
        %v1419 = vmul.f32 %v1408, %v1411
        %v1420 = vmul.f32 %v1407, %v1412
        %v1421 = vmul.f32 %v1406, %v1413
        %v1422 = vmul.f32 %v1405, %v1414
        %v1423 = vmul.f32 %v1404, %v1415
        %v1424 = vmul.f32 %v1403, %v1416
        %v1425 = vmul.f32 %v1402, %v1417
        %v1426 = vmul.f32 %v1409, %v1418
        %v1427 = vadd.f32 %v1362, %v1419
        %v1428 = vadd.f32 %v1363, %v1420
        %v1429 = vadd.f32 %v1364, %v1421
        %v1430 = vadd.f32 %v1365, %v1422
        %v1431 = vadd.f32 %v1366, %v1423
        %v1432 = vadd.f32 %v1367, %v1424
        %v1433 = vadd.f32 %v1368, %v1425
        %v1434 = vadd.f32 %v1369, %v1426
        %1435 = vrot.lane.b32.xlu0 %v1010, 32
        %v1436 = vpop.permute.xlu0 %1435
        %1437 = vrot.lane.b32.xlu0 %v1012, 32
        %v1438 = vpop.permute.xlu0 %1437
        %1439 = vrot.lane.b32.xlu0 %v1015, 32
        %v1440 = vpop.permute.xlu0 %1439
        %1441 = vrot.lane.b32.xlu0 %v1017, 32
        %v1442 = vpop.permute.xlu0 %1441
        %1443 = vrot.lane.b32.xlu0 %v1020, 32
        %v1444 = vpop.permute.xlu0 %1443
        %1445 = vrot.lane.b32.xlu0 %v1022, 32
        %v1446 = vpop.permute.xlu0 %1445
        %1447 = vrot.lane.b32.xlu0 %v1025, 32
        %v1448 = vpop.permute.xlu0 %1447
        %1449 = vrot.lane.b32.xlu0 %v1027, 32
        %v1450 = vpop.permute.xlu0 %1449
        %s1459 = scalar_lea.vmem %s7, 448
        %v1460 = vld [vmem:[%s1459] sm:$0xff]
        %v1461 = vld [vmem:[%s1459 + $0x8] sm:$0xff]
        %v1462 = vld [vmem:[%s1459 + $0x10] sm:$0xff]
        %v1463 = vld [vmem:[%s1459 + $0x18] sm:$0xff]
        %v1464 = vld [vmem:[%s1459 + $0x20] sm:$0xff]
        %v1465 = vld [vmem:[%s1459 + $0x28] sm:$0xff]
        %v1466 = vld [vmem:[%s1459 + $0x30] sm:$0xff]
        %v1467 = vld [vmem:[%s1459 + $0x38] sm:$0xff]
        %v1468 = vmul.f32 %v1438, %v1460
        %v1469 = vmul.f32 %v1440, %v1461
        %v1470 = vmul.f32 %v1442, %v1462
        %v1471 = vmul.f32 %v1444, %v1463
        %v1472 = vmul.f32 %v1446, %v1464
        %v1473 = vmul.f32 %v1448, %v1465
        %v1474 = vmul.f32 %v1450, %v1466
        %v1475 = vmul.f32 %v1436, %v1467
        %v1476 = vadd.f32 %v1427, %v1468
        %v1477 = vadd.f32 %v1428, %v1469
        %v1478 = vadd.f32 %v1429, %v1470
        %v1479 = vadd.f32 %v1430, %v1471
        %v1480 = vadd.f32 %v1431, %v1472
        %v1481 = vadd.f32 %v1432, %v1473
        %v1482 = vadd.f32 %v1433, %v1474
        %v1483 = vadd.f32 %v1434, %v1475
        %v1484 = vrot.slane %v1039, 1
        %v1485 = vrot.slane %v1041, 1
        %v1486 = vrot.slane %v1044, 1
        %v1487 = vrot.slane %v1046, 1
        %v1488 = vrot.slane %v1049, 1
        %v1489 = vrot.slane %v1051, 1
        %v1490 = vrot.slane %v1054, 1
        %v1491 = vrot.slane %v1056, 1
        %v1492 = vsel %vm1198, %v1490, %v1491
        %v1493 = vsel %vm1198, %v1489, %v1490
        %v1494 = vsel %vm1198, %v1488, %v1489
        %v1495 = vsel %vm1198, %v1487, %v1488
        %v1496 = vsel %vm1198, %v1486, %v1487
        %v1497 = vsel %vm1198, %v1485, %v1486
        %v1498 = vsel %vm1198, %v1484, %v1485
        %v1499 = vsel %vm1198, %v1491, %v1484
        %s1500 = scalar_lea.vmem %s7, 512
        %v1501 = vld [vmem:[%s1500] sm:$0xff]
        %v1502 = vld [vmem:[%s1500 + $0x8] sm:$0xff]
        %v1503 = vld [vmem:[%s1500 + $0x10] sm:$0xff]
        %v1504 = vld [vmem:[%s1500 + $0x18] sm:$0xff]
        %v1505 = vld [vmem:[%s1500 + $0x20] sm:$0xff]
        %v1506 = vld [vmem:[%s1500 + $0x28] sm:$0xff]
        %v1507 = vld [vmem:[%s1500 + $0x30] sm:$0xff]
        %v1508 = vld [vmem:[%s1500 + $0x38] sm:$0xff]
        %v1509 = vmul.f32 %v1497, %v1501
        %v1510 = vmul.f32 %v1496, %v1502
        %v1511 = vmul.f32 %v1495, %v1503
        %v1512 = vmul.f32 %v1494, %v1504
        %v1513 = vmul.f32 %v1493, %v1505
        %v1514 = vmul.f32 %v1492, %v1506
        %v1515 = vmul.f32 %v1499, %v1507
        %v1516 = vmul.f32 %v1498, %v1508
        %v1517 = vadd.f32 %v1476, %v1509
        %v1518 = vadd.f32 %v1477, %v1510
        %v1519 = vadd.f32 %v1478, %v1511
        %v1520 = vadd.f32 %v1479, %v1512
        %v1521 = vadd.f32 %v1480, %v1513
        %v1522 = vadd.f32 %v1481, %v1514
        %v1523 = vadd.f32 %v1482, %v1515
        %v1524 = vadd.f32 %v1483, %v1516
        %v1525 = vld [vmem:[#allocation3] sm:$0xff]
        %v1526 = vld [vmem:[#allocation3 + $0x8] sm:$0xff]
        %v1527 = vld [vmem:[#allocation3 + $0x10] sm:$0xff]
        %v1528 = vld [vmem:[#allocation3 + $0x18] sm:$0xff]
        %v1529 = vld [vmem:[#allocation3 + $0x20] sm:$0xff]
        %v1530 = vld [vmem:[#allocation3 + $0x28] sm:$0xff]
        %v1531 = vld [vmem:[#allocation3 + $0x30] sm:$0xff]
        %v1532 = vld [vmem:[#allocation3 + $0x38] sm:$0xff]
        %v1533 = vadd.f32 %v1525, %v1517
        %v1534 = vadd.f32 %v1526, %v1518
        %v1535 = vadd.f32 %v1527, %v1519
        %v1536 = vadd.f32 %v1528, %v1520
        %v1537 = vadd.f32 %v1529, %v1521
        %v1538 = vadd.f32 %v1530, %v1522
        %v1539 = vadd.f32 %v1531, %v1523
        %v1540 = vadd.f32 %v1532, %v1524
        %vm1541 = vcmp.ge.f32.partialorder %v1533, 1.0
        %vm1542 = vcmp.ge.f32.partialorder %v1534, 1.0
        %vm1543 = vcmp.ge.f32.partialorder %v1535, 1.0
        %vm1544 = vcmp.ge.f32.partialorder %v1536, 1.0
        %vm1545 = vcmp.ge.f32.partialorder %v1537, 1.0
        %vm1546 = vcmp.ge.f32.partialorder %v1538, 1.0
        %vm1547 = vcmp.ge.f32.partialorder %v1539, 1.0
        %vm1548 = vcmp.ge.f32.partialorder %v1540, 1.0
        %v1549 = vsel %vm1541, 0.0, %v1533
        %v1550 = vsel %vm1542, 0.0, %v1534
        %v1551 = vsel %vm1543, 0.0, %v1535
        %v1552 = vsel %vm1544, 0.0, %v1536
        %v1553 = vsel %vm1545, 0.0, %v1537
        %v1554 = vsel %vm1546, 0.0, %v1538
        %v1555 = vsel %vm1547, 0.0, %v1539
        %v1556 = vsel %vm1548, 0.0, %v1540
        %1557 = vst.msk [vmem:[#allocation3] sm:$0xff] %vm810, %v1549
        %1558 = vst.msk [vmem:[#allocation3 + $0x8] sm:$0xff] %vm810, %v1550
        %1559 = vst.msk [vmem:[#allocation3 + $0x10] sm:$0xff] %vm810, %v1551
        %1560 = vst.msk [vmem:[#allocation3 + $0x18] sm:$0xff] %vm810, %v1552
        %1561 = vst.msk [vmem:[#allocation3 + $0x20] sm:$0xff] %vm810, %v1553
        %1562 = vst.msk [vmem:[#allocation3 + $0x28] sm:$0xff] %vm810, %v1554
        %1563 = vst.msk [vmem:[#allocation3 + $0x30] sm:$0xff] %vm810, %v1555
        %1564 = vst.msk [vmem:[#allocation3 + $0x38] sm:$0xff] %vm810, %v1556
        %v1565 = vsel %vm1541, 1, 0
        %v1566 = vsel %vm1542, 1, 0
        %v1567 = vsel %vm1543, 1, 0
        %v1568 = vsel %vm1544, 1, 0
        %v1569 = vsel %vm1545, 1, 0
        %v1570 = vsel %vm1546, 1, 0
        %v1571 = vsel %vm1547, 1, 0
        %v1572 = vsel %vm1548, 1, 0
        %v1573 = vcvt.s32.f32 %v1565
        %v1574 = vcvt.s32.f32 %v1566
        %v1575 = vcvt.s32.f32 %v1567
        %v1576 = vcvt.s32.f32 %v1568
        %v1577 = vcvt.s32.f32 %v1569
        %v1578 = vcvt.s32.f32 %v1570
        %v1579 = vcvt.s32.f32 %v1571
        %v1580 = vcvt.s32.f32 %v1572
        %v1581 = vpack.c.bf16 %v1574, %v1573
        %v1582 = vpack.c.bf16 %v1576, %v1575
        %v1583 = vpack.c.bf16 %v1578, %v1577
        %v1584 = vpack.c.bf16 %v1580, %v1579
        %v1585 = vld [vmem:[%s5] sm:$0xf]
        %v1586 = vld [vmem:[%s5 + $0x4] sm:$0xf]
        %v1587 = vld [vmem:[%s5 + $0x8] sm:$0xf]
        %v1588 = vld [vmem:[%s5 + $0xc] sm:$0xf]
        %v1593 = vunpack.c.l.b16 %v1585
        %v1594 = vunpack.c.l.b16 %v1586
        %v1595 = vunpack.c.l.b16 %v1587
        %v1596 = vunpack.c.l.b16 %v1588
        %v1597 = vpack.c.b16 %v1594, %v1593
        %v1598 = vpack.c.b16 %v1596, %v1595
        %v1602 = vsel %vm810, %v1581, 0
        %v1605 = vsel %vm810, %v1582, 0
        %v1608 = vsel %vm810, %v1583, 0
        %v1611 = vsel %vm810, %v1584, 0
        %1613 = vmatpush.bf16.msra.mxu0 0
        %1614 = vmatpush.bf16.msra.mxu0 0
        %1615 = vmatpush.bf16.msra.mxu0 0
        %1616 = vmatpush.bf16.msra.mxu0 0
        %1617 = vmatpush.bf16.msra.mxu0 0
        %1618 = vmatpush.bf16.msra.mxu0 0
        %1619 = vmatpush.bf16.msra.mxu0 %v1598
        %1620 = vmatpush.bf16.msra.mxu0 %v1597
        %1621 = vmatmul.bf16.gmra.mxu0 %v1602
        %v1622 = vpop.f32.mrf.mxu0
        %v1623 = vadd.f32 %v849, %v1622
        %v1624 = vpop.f32.mrf.mxu0
        %v1625 = vadd.f32 %v849, %v1624
        %1626 = vmatmul.bf16.gmra.mxu0 %v1605
        %v1627 = vpop.f32.mrf.mxu0
        %v1628 = vadd.f32 %v849, %v1627
        %v1629 = vpop.f32.mrf.mxu0
        %v1630 = vadd.f32 %v849, %v1629
        %1631 = vmatmul.bf16.gmra.mxu0 %v1608
        %v1632 = vpop.f32.mrf.mxu0
        %v1633 = vadd.f32 %v849, %v1632
        %v1634 = vpop.f32.mrf.mxu0
        %v1635 = vadd.f32 %v849, %v1634
        %1636 = vmatmul.bf16.gmra.mxu0 %v1611
        %v1637 = vpop.f32.mrf.mxu0
        %v1638 = vadd.f32 %v849, %v1637
        %v1639 = vpop.f32.mrf.mxu0
        %v1640 = vadd.f32 %v849, %v1639
        %1641 = vdwg.mxu0
        %v1642 = vld [vmem:[#allocation4] sm:$0xff]
        %v1643 = vld [vmem:[#allocation4 + $0x8] sm:$0xff]
        %v1644 = vld [vmem:[#allocation4 + $0x10] sm:$0xff]
        %v1645 = vld [vmem:[#allocation4 + $0x18] sm:$0xff]
        %v1646 = vld [vmem:[#allocation4 + $0x20] sm:$0xff]
        %v1647 = vld [vmem:[#allocation4 + $0x28] sm:$0xff]
        %v1648 = vld [vmem:[#allocation4 + $0x30] sm:$0xff]
        %v1649 = vld [vmem:[#allocation4 + $0x38] sm:$0xff]
        %v1650 = vadd.f32 %v1642, %v1623
        %v1651 = vadd.f32 %v1643, %v1625
        %v1652 = vadd.f32 %v1644, %v1628
        %v1653 = vadd.f32 %v1645, %v1630
        %v1654 = vadd.f32 %v1646, %v1633
        %v1655 = vadd.f32 %v1647, %v1635
        %v1656 = vadd.f32 %v1648, %v1638
        %v1657 = vadd.f32 %v1649, %v1640
        %vm1658 = vcmp.ge.f32.partialorder %v1650, 1.0
        %vm1659 = vcmp.ge.f32.partialorder %v1651, 1.0
        %vm1660 = vcmp.ge.f32.partialorder %v1652, 1.0
        %vm1661 = vcmp.ge.f32.partialorder %v1653, 1.0
        %vm1662 = vcmp.ge.f32.partialorder %v1654, 1.0
        %vm1663 = vcmp.ge.f32.partialorder %v1655, 1.0
        %vm1664 = vcmp.ge.f32.partialorder %v1656, 1.0
        %vm1665 = vcmp.ge.f32.partialorder %v1657, 1.0
        %v1666 = vsel %vm1658, 0.0, %v1650
        %v1667 = vsel %vm1659, 0.0, %v1651
        %v1668 = vsel %vm1660, 0.0, %v1652
        %v1669 = vsel %vm1661, 0.0, %v1653
        %v1670 = vsel %vm1662, 0.0, %v1654
        %v1671 = vsel %vm1663, 0.0, %v1655
        %v1672 = vsel %vm1664, 0.0, %v1656
        %v1673 = vsel %vm1665, 0.0, %v1657
        %1674 = vst [vmem:[#allocation4] sm:$0xff] %v1666
        %1675 = vst [vmem:[#allocation4 + $0x8] sm:$0xff] %v1667
        %1676 = vst [vmem:[#allocation4 + $0x10] sm:$0xff] %v1668
        %1677 = vst [vmem:[#allocation4 + $0x18] sm:$0xff] %v1669
        %1678 = vst [vmem:[#allocation4 + $0x20] sm:$0xff] %v1670
        %1679 = vst [vmem:[#allocation4 + $0x28] sm:$0xff] %v1671
        %1680 = vst [vmem:[#allocation4 + $0x30] sm:$0xff] %v1672
        %1681 = vst [vmem:[#allocation4 + $0x38] sm:$0xff] %v1673
        %v1682 = vld [vmem:[%s460] sm:$0xf]
        %v1683 = vld [vmem:[%s460 + $0x4] sm:$0xf]
        %v1684 = vld [vmem:[%s460 + $0x8] sm:$0xf]
        %v1685 = vld [vmem:[%s460 + $0xc] sm:$0xf]
        %v1686 = vld [vmem:[%s460 + $0x10] sm:$0xf]
        %v1687 = vld [vmem:[%s460 + $0x14] sm:$0xf]
        %v1688 = vld [vmem:[%s460 + $0x18] sm:$0xf]
        %v1689 = vld [vmem:[%s460 + $0x1c] sm:$0xf]
        %v1690 = vsel %vm1658, 1, 0
        %v1691 = vsel %vm1659, 1, 0
        %v1692 = vsel %vm1660, 1, 0
        %v1693 = vsel %vm1661, 1, 0
        %v1694 = vsel %vm1662, 1, 0
        %v1695 = vsel %vm1663, 1, 0
        %v1696 = vsel %vm1664, 1, 0
        %v1697 = vsel %vm1665, 1, 0
        %v1698 = vcvt.s32.f32 %v1690
        %v1699 = vcvt.s32.f32 %v1691
        %v1700 = vcvt.s32.f32 %v1692
        %v1701 = vcvt.s32.f32 %v1693
        %v1702 = vcvt.s32.f32 %v1694
        %v1703 = vcvt.s32.f32 %v1695
        %v1704 = vcvt.s32.f32 %v1696
        %v1705 = vcvt.s32.f32 %v1697
        %v1706 = vpack.c.bf16 %v1698, %v1698
        %v1707 = vpack.c.bf16 %v1699, %v1699
        %v1708 = vpack.c.bf16 %v1700, %v1700
        %v1709 = vpack.c.bf16 %v1701, %v1701
        %v1710 = vpack.c.bf16 %v1702, %v1702
        %v1711 = vpack.c.bf16 %v1703, %v1703
        %v1712 = vpack.c.bf16 %v1704, %v1704
        %v1713 = vpack.c.bf16 %v1705, %v1705
        %v1714 = vunpack.c.l.bf16 %v1682
        %v1715 = vunpack.c.l.bf16 %v1683
        %v1716 = vunpack.c.l.bf16 %v1684
        %v1717 = vunpack.c.l.bf16 %v1685
        %v1718 = vunpack.c.l.bf16 %v1686
        %v1719 = vunpack.c.l.bf16 %v1687
        %v1720 = vunpack.c.l.bf16 %v1688
        %v1721 = vunpack.c.l.bf16 %v1689
        %v1722 = vunpack.c.l.bf16 %v1706
        %v1723 = vunpack.c.l.bf16 %v1707
        %v1724 = vunpack.c.l.bf16 %v1708
        %v1725 = vunpack.c.l.bf16 %v1709
        %v1726 = vunpack.c.l.bf16 %v1710
        %v1727 = vunpack.c.l.bf16 %v1711
        %v1728 = vunpack.c.l.bf16 %v1712
        %v1729 = vunpack.c.l.bf16 %v1713
        %v1730 = vadd.f32 %v1714, %v1722
        %v1731 = vadd.f32 %v1715, %v1723
        %v1732 = vadd.f32 %v1716, %v1724
        %v1733 = vadd.f32 %v1717, %v1725
        %v1734 = vadd.f32 %v1718, %v1726
        %v1735 = vadd.f32 %v1719, %v1727
        %v1736 = vadd.f32 %v1720, %v1728
        %v1737 = vadd.f32 %v1721, %v1729
        %v1738 = vpack.c.bf16 %v1730, %v1730
        %v1739 = vpack.c.bf16 %v1731, %v1731
        %v1740 = vpack.c.bf16 %v1732, %v1732
        %v1741 = vpack.c.bf16 %v1733, %v1733
        %v1742 = vpack.c.bf16 %v1734, %v1734
        %v1743 = vpack.c.bf16 %v1735, %v1735
        %v1744 = vpack.c.bf16 %v1736, %v1736
        %v1745 = vpack.c.bf16 %v1737, %v1737
        %1746 = vst [vmem:[%s490] sm:$0xf] %v1738
        %1747 = vst [vmem:[%s490 + $0x4] sm:$0xf] %v1739
        %1748 = vst [vmem:[%s490 + $0x8] sm:$0xf] %v1740
        %1749 = vst [vmem:[%s490 + $0xc] sm:$0xf] %v1741
        %1750 = vst [vmem:[%s490 + $0x10] sm:$0xf] %v1742
        %1751 = vst [vmem:[%s490 + $0x14] sm:$0xf] %v1743
        %1752 = vst [vmem:[%s490 + $0x18] sm:$0xf] %v1744
        %1753 = vst [vmem:[%s490 + $0x1c] sm:$0xf] %v1745
        %v1754 = vld [vmem:[#allocation5 + $0x40] sm:$0xff]
        %v1755 = vld [vmem:[#allocation5 + $0x48] sm:$0xff]
        %v1756 = vld [vmem:[#allocation5 + $0x50] sm:$0xff]
        %v1757 = vld [vmem:[#allocation5 + $0x58] sm:$0xff]
        %v1758 = vld [vmem:[#allocation5 + $0x60] sm:$0xff]
        %v1759 = vld [vmem:[#allocation5 + $0x68] sm:$0xff]
        %v1760 = vld [vmem:[#allocation5 + $0x70] sm:$0xff]
        %v1761 = vld [vmem:[#allocation5 + $0x78] sm:$0xff]
        %v1762 = vld [vmem:[#allocation2] sm:$0xff]
        %v1763 = vld [vmem:[#allocation2 + $0x8] sm:$0xff]
        %v1764 = vld [vmem:[#allocation2 + $0x10] sm:$0xff]
        %v1765 = vld [vmem:[#allocation2 + $0x18] sm:$0xff]
        %v1766 = vld [vmem:[#allocation2 + $0x20] sm:$0xff]
        %v1767 = vld [vmem:[#allocation2 + $0x28] sm:$0xff]
        %v1768 = vld [vmem:[#allocation2 + $0x30] sm:$0xff]
        %v1769 = vld [vmem:[#allocation2 + $0x38] sm:$0xff]
        %v1770 = vadd.f32 %v1762, %v1754
        %v1771 = vadd.f32 %v1763, %v1755
        %v1772 = vadd.f32 %v1764, %v1756
        %v1773 = vadd.f32 %v1765, %v1757
        %v1774 = vadd.f32 %v1766, %v1758
        %v1775 = vadd.f32 %v1767, %v1759
        %v1776 = vadd.f32 %v1768, %v1760
        %v1777 = vadd.f32 %v1769, %v1761
        %vm1778 = vcmp.ge.f32.partialorder %v1770, 1.0
        %vm1779 = vcmp.ge.f32.partialorder %v1771, 1.0
        %vm1780 = vcmp.ge.f32.partialorder %v1772, 1.0
        %vm1781 = vcmp.ge.f32.partialorder %v1773, 1.0
        %vm1782 = vcmp.ge.f32.partialorder %v1774, 1.0
        %vm1783 = vcmp.ge.f32.partialorder %v1775, 1.0
        %vm1784 = vcmp.ge.f32.partialorder %v1776, 1.0
        %vm1785 = vcmp.ge.f32.partialorder %v1777, 1.0
        %v1786 = vsel %vm1778, 0.0, %v1770
        %v1787 = vsel %vm1779, 0.0, %v1771
        %v1788 = vsel %vm1780, 0.0, %v1772
        %v1789 = vsel %vm1781, 0.0, %v1773
        %v1790 = vsel %vm1782, 0.0, %v1774
        %v1791 = vsel %vm1783, 0.0, %v1775
        %v1792 = vsel %vm1784, 0.0, %v1776
        %v1793 = vsel %vm1785, 0.0, %v1777
        %1794 = vst.msk [vmem:[#allocation2] sm:$0xff] %vm810, %v1786
        %1795 = vst.msk [vmem:[#allocation2 + $0x8] sm:$0xff] %vm810, %v1787
        %1796 = vst.msk [vmem:[#allocation2 + $0x10] sm:$0xff] %vm810, %v1788
        %1797 = vst.msk [vmem:[#allocation2 + $0x18] sm:$0xff] %vm810, %v1789
        %1798 = vst.msk [vmem:[#allocation2 + $0x20] sm:$0xff] %vm810, %v1790
        %1799 = vst.msk [vmem:[#allocation2 + $0x28] sm:$0xff] %vm810, %v1791
        %1800 = vst.msk [vmem:[#allocation2 + $0x30] sm:$0xff] %vm810, %v1792
        %1801 = vst.msk [vmem:[#allocation2 + $0x38] sm:$0xff] %vm810, %v1793
        %v1802 = vsel %vm1778, 1, 0
        %v1803 = vsel %vm1779, 1, 0
        %v1804 = vsel %vm1780, 1, 0
        %v1805 = vsel %vm1781, 1, 0
        %v1806 = vsel %vm1782, 1, 0
        %v1807 = vsel %vm1783, 1, 0
        %v1808 = vsel %vm1784, 1, 0
        %v1809 = vsel %vm1785, 1, 0
        %v1810 = vcvt.s32.f32 %v1802
        %v1811 = vcvt.s32.f32 %v1803
        %v1812 = vcvt.s32.f32 %v1804
        %v1813 = vcvt.s32.f32 %v1805
        %v1814 = vcvt.s32.f32 %v1806
        %v1815 = vcvt.s32.f32 %v1807
        %v1816 = vcvt.s32.f32 %v1808
        %v1817 = vcvt.s32.f32 %v1809
        %v1818 = vpack.c.bf16 %v1811, %v1810
        %v1819 = vpack.c.bf16 %v1813, %v1812
        %v1820 = vpack.c.bf16 %v1815, %v1814
        %v1821 = vpack.c.bf16 %v1817, %v1816
        %v1822 = vld [vmem:[%s3] sm:$0xff]
        %v1823 = vld [vmem:[%s3 + $0x8] sm:$0xf]
        %v1824 = vld [vmem:[%s3 + $0xc] sm:$0xff]
        %v1825 = vld [vmem:[%s3 + $0x14] sm:$0xf]
        %v1826 = vld [vmem:[%s3 + $0x18] sm:$0xff]
        %v1827 = vld [vmem:[%s3 + $0x20] sm:$0xf]
        %v1828 = vld [vmem:[%s3 + $0x24] sm:$0xff]
        %v1829 = vld [vmem:[%s3 + $0x2c] sm:$0xf]
        %v1838 = vunpack.c.l.b16 %v1822
        %v1839 = vunpack.c.h.b16 %v1822
        %v1840 = vunpack.c.l.b16 %v1823
        %v1841 = vunpack.c.l.b16 %v1824
        %v1842 = vunpack.c.h.b16 %v1824
        %v1843 = vunpack.c.l.b16 %v1825
        %v1844 = vunpack.c.l.b16 %v1826
        %v1845 = vunpack.c.h.b16 %v1826
        %v1846 = vunpack.c.l.b16 %v1827
        %v1847 = vunpack.c.l.b16 %v1828
        %v1848 = vunpack.c.h.b16 %v1828
        %v1849 = vunpack.c.l.b16 %v1829
        %v1850 = vpack.c.b16 %v1841, %v1838
        %v1851 = vpack.c.b16 %v1842, %v1839
        %v1852 = vpack.c.b16 %v1843, %v1840
        %v1853 = vpack.c.b16 %v1847, %v1844
        %v1854 = vpack.c.b16 %v1848, %v1845
        %v1855 = vpack.c.b16 %v1849, %v1846
        %v1863 = vsel %vm810, %v1818, 0
        %v1866 = vsel %vm810, %v1819, 0
        %v1869 = vsel %vm810, %v1820, 0
        %v1872 = vsel %vm810, %v1821, 0
        %1874 = vmatpush.bf16.msra.mxu0 0
        %1875 = vmatpush.bf16.msra.mxu0 0
        %1876 = vmatpush.bf16.msra.mxu0 0
        %1877 = vmatpush.bf16.msra.mxu0 0
        %1878 = vmatpush.bf16.msra.mxu0 0
        %1879 = vmatpush.bf16.msra.mxu0 0
        %1880 = vmatpush.bf16.msra.mxu0 %v1853
        %1881 = vmatpush.bf16.msra.mxu0 %v1850
        %1882 = vmatmul.bf16.gmra.mxu0 %v1863
        %v1883 = vpop.f32.mrf.mxu0
        %v1884 = vadd.f32 0.0, %v1883
        %v1885 = vpop.f32.mrf.mxu0
        %v1886 = vadd.f32 0.0, %v1885
        %1887 = vmatmul.bf16.gmra.mxu0 %v1866
        %v1888 = vpop.f32.mrf.mxu0
        %v1889 = vadd.f32 0.0, %v1888
        %v1890 = vpop.f32.mrf.mxu0
        %v1891 = vadd.f32 0.0, %v1890
        %1892 = vmatmul.bf16.gmra.mxu0 %v1869
        %v1893 = vpop.f32.mrf.mxu0
        %v1894 = vadd.f32 0.0, %v1893
        %v1895 = vpop.f32.mrf.mxu0
        %v1896 = vadd.f32 0.0, %v1895
        %1897 = vmatmul.bf16.gmra.mxu0 %v1872
        %v1898 = vpop.f32.mrf.mxu0
        %v1899 = vadd.f32 0.0, %v1898
        %v1900 = vpop.f32.mrf.mxu0
        %v1901 = vadd.f32 0.0, %v1900
        %1902 = vdwg.mxu0
        %1903 = vmatpush.bf16.msra.mxu0 0
        %1904 = vmatpush.bf16.msra.mxu0 0
        %1905 = vmatpush.bf16.msra.mxu0 0
        %1906 = vmatpush.bf16.msra.mxu0 0
        %1907 = vmatpush.bf16.msra.mxu0 0
        %1908 = vmatpush.bf16.msra.mxu0 0
        %1909 = vmatpush.bf16.msra.mxu0 %v1854
        %1910 = vmatpush.bf16.msra.mxu0 %v1851
        %1911 = vmatmul.bf16.gmra.mxu0 %v1863
        %v1912 = vpop.f32.mrf.mxu0
        %v1913 = vadd.f32 0.0, %v1912
        %v1914 = vpop.f32.mrf.mxu0
        %v1915 = vadd.f32 0.0, %v1914
        %1916 = vmatmul.bf16.gmra.mxu0 %v1866
        %v1917 = vpop.f32.mrf.mxu0
        %v1918 = vadd.f32 0.0, %v1917
        %v1919 = vpop.f32.mrf.mxu0
        %v1920 = vadd.f32 0.0, %v1919
        %1921 = vmatmul.bf16.gmra.mxu0 %v1869
        %v1922 = vpop.f32.mrf.mxu0
        %v1923 = vadd.f32 0.0, %v1922
        %v1924 = vpop.f32.mrf.mxu0
        %v1925 = vadd.f32 0.0, %v1924
        %1926 = vmatmul.bf16.gmra.mxu0 %v1872
        %v1927 = vpop.f32.mrf.mxu0
        %v1928 = vadd.f32 0.0, %v1927
        %v1929 = vpop.f32.mrf.mxu0
        %v1930 = vadd.f32 0.0, %v1929
        %1931 = vdwg.mxu0
        %1932 = vmatpush.bf16.msra.mxu0 0
        %1933 = vmatpush.bf16.msra.mxu0 0
        %1934 = vmatpush.bf16.msra.mxu0 0
        %1935 = vmatpush.bf16.msra.mxu0 0
        %1936 = vmatpush.bf16.msra.mxu0 0
        %1937 = vmatpush.bf16.msra.mxu0 0
        %1938 = vmatpush.bf16.msra.mxu0 %v1855
        %1939 = vmatpush.bf16.msra.mxu0 %v1852
        %1940 = vmatmul.bf16.gmra.mxu0 %v1863
        %v1941 = vpop.f32.mrf.mxu0
        %v1942 = vadd.f32 0.0, %v1941
        %v1943 = vpop.f32.mrf.mxu0
        %v1944 = vadd.f32 0.0, %v1943
        %1945 = vmatmul.bf16.gmra.mxu0 %v1866
        %v1946 = vpop.f32.mrf.mxu0
        %v1947 = vadd.f32 0.0, %v1946
        %v1948 = vpop.f32.mrf.mxu0
        %v1949 = vadd.f32 0.0, %v1948
        %1950 = vmatmul.bf16.gmra.mxu0 %v1869
        %v1951 = vpop.f32.mrf.mxu0
        %v1952 = vadd.f32 0.0, %v1951
        %v1953 = vpop.f32.mrf.mxu0
        %v1954 = vadd.f32 0.0, %v1953
        %1955 = vmatmul.bf16.gmra.mxu0 %v1872
        %v1956 = vpop.f32.mrf.mxu0
        %v1957 = vadd.f32 0.0, %v1956
        %v1958 = vpop.f32.mrf.mxu0
        %v1959 = vadd.f32 0.0, %v1958
        %1960 = vdwg.mxu0
        %v1961 = vadd.f32 %v1913, %v845
        %v1962 = vadd.f32 %v1915, %v845
        %v1963 = vadd.f32 %v1918, %v845
        %v1964 = vadd.f32 %v1920, %v845
        %v1965 = vadd.f32 %v1923, %v845
        %v1966 = vadd.f32 %v1925, %v845
        %v1967 = vadd.f32 %v1928, %v845
        %v1968 = vadd.f32 %v1930, %v845
        %v1969 = vrot.slane %v1884, 7
        %v1970 = vrot.slane %v1886, 7
        %v1971 = vrot.slane %v1889, 7
        %v1972 = vrot.slane %v1891, 7
        %v1973 = vrot.slane %v1894, 7
        %v1974 = vrot.slane %v1896, 7
        %v1975 = vrot.slane %v1899, 7
        %v1976 = vrot.slane %v1901, 7
        %v1977 = vsel %vm1076, %v1975, %v1976
        %v1978 = vsel %vm1076, %v1974, %v1975
        %v1979 = vsel %vm1076, %v1973, %v1974
        %v1980 = vsel %vm1076, %v1972, %v1973
        %v1981 = vsel %vm1076, %v1971, %v1972
        %v1982 = vsel %vm1076, %v1970, %v1971
        %v1983 = vsel %vm1076, %v1969, %v1970
        %v1984 = vsel %vm1076, %v1976, %v1969
        %v1985 = vld [vmem:[%s7] sm:$0xff]
        %v1986 = vld [vmem:[%s7 + $0x8] sm:$0xff]
        %v1987 = vld [vmem:[%s7 + $0x10] sm:$0xff]
        %v1988 = vld [vmem:[%s7 + $0x18] sm:$0xff]
        %v1989 = vld [vmem:[%s7 + $0x20] sm:$0xff]
        %v1990 = vld [vmem:[%s7 + $0x28] sm:$0xff]
        %v1991 = vld [vmem:[%s7 + $0x30] sm:$0xff]
        %v1992 = vld [vmem:[%s7 + $0x38] sm:$0xff]
        %v1993 = vmul.f32 %v1977, %v1985
        %v1994 = vmul.f32 %v1984, %v1986
        %v1995 = vmul.f32 %v1983, %v1987
        %v1996 = vmul.f32 %v1982, %v1988
        %v1997 = vmul.f32 %v1981, %v1989
        %v1998 = vmul.f32 %v1980, %v1990
        %v1999 = vmul.f32 %v1979, %v1991
        %v2000 = vmul.f32 %v1978, %v1992
        %v2001 = vadd.f32 %v1961, %v1993
        %v2002 = vadd.f32 %v1962, %v1994
        %v2003 = vadd.f32 %v1963, %v1995
        %v2004 = vadd.f32 %v1964, %v1996
        %v2005 = vadd.f32 %v1965, %v1997
        %v2006 = vadd.f32 %v1966, %v1998
        %v2007 = vadd.f32 %v1967, %v1999
        %v2008 = vadd.f32 %v1968, %v2000
        %2017 = vrot.lane.b32.xlu0 %v1884, 96
        %v2018 = vpop.permute.xlu0 %2017
        %2019 = vrot.lane.b32.xlu0 %v1886, 96
        %v2020 = vpop.permute.xlu0 %2019
        %2021 = vrot.lane.b32.xlu0 %v1889, 96
        %v2022 = vpop.permute.xlu0 %2021
        %2023 = vrot.lane.b32.xlu0 %v1891, 96
        %v2024 = vpop.permute.xlu0 %2023
        %2025 = vrot.lane.b32.xlu0 %v1894, 96
        %v2026 = vpop.permute.xlu0 %2025
        %2027 = vrot.lane.b32.xlu0 %v1896, 96
        %v2028 = vpop.permute.xlu0 %2027
        %2029 = vrot.lane.b32.xlu0 %v1899, 96
        %v2030 = vpop.permute.xlu0 %2029
        %2031 = vrot.lane.b32.xlu0 %v1901, 96
        %v2032 = vpop.permute.xlu0 %2031
        %v2041 = vld [vmem:[%s1141] sm:$0xff]
        %v2042 = vld [vmem:[%s1141 + $0x8] sm:$0xff]
        %v2043 = vld [vmem:[%s1141 + $0x10] sm:$0xff]
        %v2044 = vld [vmem:[%s1141 + $0x18] sm:$0xff]
        %v2045 = vld [vmem:[%s1141 + $0x20] sm:$0xff]
        %v2046 = vld [vmem:[%s1141 + $0x28] sm:$0xff]
        %v2047 = vld [vmem:[%s1141 + $0x30] sm:$0xff]
        %v2048 = vld [vmem:[%s1141 + $0x38] sm:$0xff]
        %v2049 = vmul.f32 %v2032, %v2041
        %v2050 = vmul.f32 %v2018, %v2042
        %v2051 = vmul.f32 %v2020, %v2043
        %v2052 = vmul.f32 %v2022, %v2044
        %v2053 = vmul.f32 %v2024, %v2045
        %v2054 = vmul.f32 %v2026, %v2046
        %v2055 = vmul.f32 %v2028, %v2047
        %v2056 = vmul.f32 %v2030, %v2048
        %v2057 = vadd.f32 %v2001, %v2049
        %v2058 = vadd.f32 %v2002, %v2050
        %v2059 = vadd.f32 %v2003, %v2051
        %v2060 = vadd.f32 %v2004, %v2052
        %v2061 = vadd.f32 %v2005, %v2053
        %v2062 = vadd.f32 %v2006, %v2054
        %v2063 = vadd.f32 %v2007, %v2055
        %v2064 = vadd.f32 %v2008, %v2056
        %2065 = vrot.lane.b32.xlu0 %v1884, 64
        %v2066 = vpop.permute.xlu0 %2065
        %2067 = vrot.lane.b32.xlu0 %v1886, 64
        %v2068 = vpop.permute.xlu0 %2067
        %2069 = vrot.lane.b32.xlu0 %v1889, 64
        %v2070 = vpop.permute.xlu0 %2069
        %2071 = vrot.lane.b32.xlu0 %v1891, 64
        %v2072 = vpop.permute.xlu0 %2071
        %2073 = vrot.lane.b32.xlu0 %v1894, 64
        %v2074 = vpop.permute.xlu0 %2073
        %2075 = vrot.lane.b32.xlu0 %v1896, 64
        %v2076 = vpop.permute.xlu0 %2075
        %2077 = vrot.lane.b32.xlu0 %v1899, 64
        %v2078 = vpop.permute.xlu0 %2077
        %2079 = vrot.lane.b32.xlu0 %v1901, 64
        %v2080 = vpop.permute.xlu0 %2079
        %v2089 = vrot.slane %v2066, 1
        %v2090 = vrot.slane %v2068, 1
        %v2091 = vrot.slane %v2070, 1
        %v2092 = vrot.slane %v2072, 1
        %v2093 = vrot.slane %v2074, 1
        %v2094 = vrot.slane %v2076, 1
        %v2095 = vrot.slane %v2078, 1
        %v2096 = vrot.slane %v2080, 1
        %v2097 = vsel %vm1198, %v2095, %v2096
        %v2098 = vsel %vm1198, %v2094, %v2095
        %v2099 = vsel %vm1198, %v2093, %v2094
        %v2100 = vsel %vm1198, %v2092, %v2093
        %v2101 = vsel %vm1198, %v2091, %v2092
        %v2102 = vsel %vm1198, %v2090, %v2091
        %v2103 = vsel %vm1198, %v2089, %v2090
        %v2104 = vsel %vm1198, %v2096, %v2089
        %v2105 = vld [vmem:[%s1207] sm:$0xff]
        %v2106 = vld [vmem:[%s1207 + $0x8] sm:$0xff]
        %v2107 = vld [vmem:[%s1207 + $0x10] sm:$0xff]
        %v2108 = vld [vmem:[%s1207 + $0x18] sm:$0xff]
        %v2109 = vld [vmem:[%s1207 + $0x20] sm:$0xff]
        %v2110 = vld [vmem:[%s1207 + $0x28] sm:$0xff]
        %v2111 = vld [vmem:[%s1207 + $0x30] sm:$0xff]
        %v2112 = vld [vmem:[%s1207 + $0x38] sm:$0xff]
        %v2113 = vmul.f32 %v2104, %v2105
        %v2114 = vmul.f32 %v2103, %v2106
        %v2115 = vmul.f32 %v2102, %v2107
        %v2116 = vmul.f32 %v2101, %v2108
        %v2117 = vmul.f32 %v2100, %v2109
        %v2118 = vmul.f32 %v2099, %v2110
        %v2119 = vmul.f32 %v2098, %v2111
        %v2120 = vmul.f32 %v2097, %v2112
        %v2121 = vadd.f32 %v2057, %v2113
        %v2122 = vadd.f32 %v2058, %v2114
        %v2123 = vadd.f32 %v2059, %v2115
        %v2124 = vadd.f32 %v2060, %v2116
        %v2125 = vadd.f32 %v2061, %v2117
        %v2126 = vadd.f32 %v2062, %v2118
        %v2127 = vadd.f32 %v2063, %v2119
        %v2128 = vadd.f32 %v2064, %v2120
        %2129 = vrot.lane.b32.xlu0 %v1884, 32
        %v2130 = vpop.permute.xlu0 %2129
        %2131 = vrot.lane.b32.xlu0 %v1886, 32
        %v2132 = vpop.permute.xlu0 %2131
        %2133 = vrot.lane.b32.xlu0 %v1889, 32
        %v2134 = vpop.permute.xlu0 %2133
        %2135 = vrot.lane.b32.xlu0 %v1891, 32
        %v2136 = vpop.permute.xlu0 %2135
        %2137 = vrot.lane.b32.xlu0 %v1894, 32
        %v2138 = vpop.permute.xlu0 %2137
        %2139 = vrot.lane.b32.xlu0 %v1896, 32
        %v2140 = vpop.permute.xlu0 %2139
        %2141 = vrot.lane.b32.xlu0 %v1899, 32
        %v2142 = vpop.permute.xlu0 %2141
        %2143 = vrot.lane.b32.xlu0 %v1901, 32
        %v2144 = vpop.permute.xlu0 %2143
        %v2153 = vrot.slane %v2130, 7
        %v2154 = vrot.slane %v2132, 7
        %v2155 = vrot.slane %v2134, 7
        %v2156 = vrot.slane %v2136, 7
        %v2157 = vrot.slane %v2138, 7
        %v2158 = vrot.slane %v2140, 7
        %v2159 = vrot.slane %v2142, 7
        %v2160 = vrot.slane %v2144, 7
        %v2161 = vsel %vm1076, %v2159, %v2160
        %v2162 = vsel %vm1076, %v2158, %v2159
        %v2163 = vsel %vm1076, %v2157, %v2158
        %v2164 = vsel %vm1076, %v2156, %v2157
        %v2165 = vsel %vm1076, %v2155, %v2156
        %v2166 = vsel %vm1076, %v2154, %v2155
        %v2167 = vsel %vm1076, %v2153, %v2154
        %v2168 = vsel %vm1076, %v2160, %v2153
        %v2169 = vld [vmem:[%s1272] sm:$0xff]
        %v2170 = vld [vmem:[%s1272 + $0x8] sm:$0xff]
        %v2171 = vld [vmem:[%s1272 + $0x10] sm:$0xff]
        %v2172 = vld [vmem:[%s1272 + $0x18] sm:$0xff]
        %v2173 = vld [vmem:[%s1272 + $0x20] sm:$0xff]
        %v2174 = vld [vmem:[%s1272 + $0x28] sm:$0xff]
        %v2175 = vld [vmem:[%s1272 + $0x30] sm:$0xff]
        %v2176 = vld [vmem:[%s1272 + $0x38] sm:$0xff]
        %v2177 = vmul.f32 %v2168, %v2169
        %v2178 = vmul.f32 %v2167, %v2170
        %v2179 = vmul.f32 %v2166, %v2171
        %v2180 = vmul.f32 %v2165, %v2172
        %v2181 = vmul.f32 %v2164, %v2173
        %v2182 = vmul.f32 %v2163, %v2174
        %v2183 = vmul.f32 %v2162, %v2175
        %v2184 = vmul.f32 %v2161, %v2176
        %v2185 = vadd.f32 %v2121, %v2177
        %v2186 = vadd.f32 %v2122, %v2178
        %v2187 = vadd.f32 %v2123, %v2179
        %v2188 = vadd.f32 %v2124, %v2180
        %v2189 = vadd.f32 %v2125, %v2181
        %v2190 = vadd.f32 %v2126, %v2182
        %v2191 = vadd.f32 %v2127, %v2183
        %v2192 = vadd.f32 %v2128, %v2184
        %2201 = vrot.lane.b32.xlu0 %v1913, 96
        %v2202 = vpop.permute.xlu0 %2201
        %2203 = vrot.lane.b32.xlu0 %v1915, 96
        %v2204 = vpop.permute.xlu0 %2203
        %2205 = vrot.lane.b32.xlu0 %v1918, 96
        %v2206 = vpop.permute.xlu0 %2205
        %2207 = vrot.lane.b32.xlu0 %v1920, 96
        %v2208 = vpop.permute.xlu0 %2207
        %2209 = vrot.lane.b32.xlu0 %v1923, 96
        %v2210 = vpop.permute.xlu0 %2209
        %2211 = vrot.lane.b32.xlu0 %v1925, 96
        %v2212 = vpop.permute.xlu0 %2211
        %2213 = vrot.lane.b32.xlu0 %v1928, 96
        %v2214 = vpop.permute.xlu0 %2213
        %2215 = vrot.lane.b32.xlu0 %v1930, 96
        %v2216 = vpop.permute.xlu0 %2215
        %v2225 = vrot.slane %v2202, 1
        %v2226 = vrot.slane %v2204, 1
        %v2227 = vrot.slane %v2206, 1
        %v2228 = vrot.slane %v2208, 1
        %v2229 = vrot.slane %v2210, 1
        %v2230 = vrot.slane %v2212, 1
        %v2231 = vrot.slane %v2214, 1
        %v2232 = vrot.slane %v2216, 1
        %v2233 = vsel %vm1198, %v2231, %v2232
        %v2234 = vsel %vm1198, %v2230, %v2231
        %v2235 = vsel %vm1198, %v2229, %v2230
        %v2236 = vsel %vm1198, %v2228, %v2229
        %v2237 = vsel %vm1198, %v2227, %v2228
        %v2238 = vsel %vm1198, %v2226, %v2227
        %v2239 = vsel %vm1198, %v2225, %v2226
        %v2240 = vsel %vm1198, %v2232, %v2225
        %v2241 = vld [vmem:[%s1345] sm:$0xff]
        %v2242 = vld [vmem:[%s1345 + $0x8] sm:$0xff]
        %v2243 = vld [vmem:[%s1345 + $0x10] sm:$0xff]
        %v2244 = vld [vmem:[%s1345 + $0x18] sm:$0xff]
        %v2245 = vld [vmem:[%s1345 + $0x20] sm:$0xff]
        %v2246 = vld [vmem:[%s1345 + $0x28] sm:$0xff]
        %v2247 = vld [vmem:[%s1345 + $0x30] sm:$0xff]
        %v2248 = vld [vmem:[%s1345 + $0x38] sm:$0xff]
        %v2249 = vmul.f32 %v2239, %v2241
        %v2250 = vmul.f32 %v2238, %v2242
        %v2251 = vmul.f32 %v2237, %v2243
        %v2252 = vmul.f32 %v2236, %v2244
        %v2253 = vmul.f32 %v2235, %v2245
        %v2254 = vmul.f32 %v2234, %v2246
        %v2255 = vmul.f32 %v2233, %v2247
        %v2256 = vmul.f32 %v2240, %v2248
        %v2257 = vadd.f32 %v2185, %v2249
        %v2258 = vadd.f32 %v2186, %v2250
        %v2259 = vadd.f32 %v2187, %v2251
        %v2260 = vadd.f32 %v2188, %v2252
        %v2261 = vadd.f32 %v2189, %v2253
        %v2262 = vadd.f32 %v2190, %v2254
        %v2263 = vadd.f32 %v2191, %v2255
        %v2264 = vadd.f32 %v2192, %v2256
        %2265 = vrot.lane.b32.xlu0 %v1913, 64
        %v2266 = vpop.permute.xlu0 %2265
        %2267 = vrot.lane.b32.xlu0 %v1915, 64
        %v2268 = vpop.permute.xlu0 %2267
        %2269 = vrot.lane.b32.xlu0 %v1918, 64
        %v2270 = vpop.permute.xlu0 %2269
        %2271 = vrot.lane.b32.xlu0 %v1920, 64
        %v2272 = vpop.permute.xlu0 %2271
        %2273 = vrot.lane.b32.xlu0 %v1923, 64
        %v2274 = vpop.permute.xlu0 %2273
        %2275 = vrot.lane.b32.xlu0 %v1925, 64
        %v2276 = vpop.permute.xlu0 %2275
        %2277 = vrot.lane.b32.xlu0 %v1928, 64
        %v2278 = vpop.permute.xlu0 %2277
        %2279 = vrot.lane.b32.xlu0 %v1930, 64
        %v2280 = vpop.permute.xlu0 %2279
        %v2289 = vrot.slane %v2266, 7
        %v2290 = vrot.slane %v2268, 7
        %v2291 = vrot.slane %v2270, 7
        %v2292 = vrot.slane %v2272, 7
        %v2293 = vrot.slane %v2274, 7
        %v2294 = vrot.slane %v2276, 7
        %v2295 = vrot.slane %v2278, 7
        %v2296 = vrot.slane %v2280, 7
        %v2297 = vsel %vm1076, %v2295, %v2296
        %v2298 = vsel %vm1076, %v2294, %v2295
        %v2299 = vsel %vm1076, %v2293, %v2294
        %v2300 = vsel %vm1076, %v2292, %v2293
        %v2301 = vsel %vm1076, %v2291, %v2292
        %v2302 = vsel %vm1076, %v2290, %v2291
        %v2303 = vsel %vm1076, %v2289, %v2290
        %v2304 = vsel %vm1076, %v2296, %v2289
        %v2305 = vld [vmem:[%s1410] sm:$0xff]
        %v2306 = vld [vmem:[%s1410 + $0x8] sm:$0xff]
        %v2307 = vld [vmem:[%s1410 + $0x10] sm:$0xff]
        %v2308 = vld [vmem:[%s1410 + $0x18] sm:$0xff]
        %v2309 = vld [vmem:[%s1410 + $0x20] sm:$0xff]
        %v2310 = vld [vmem:[%s1410 + $0x28] sm:$0xff]
        %v2311 = vld [vmem:[%s1410 + $0x30] sm:$0xff]
        %v2312 = vld [vmem:[%s1410 + $0x38] sm:$0xff]
        %v2313 = vmul.f32 %v2303, %v2305
        %v2314 = vmul.f32 %v2302, %v2306
        %v2315 = vmul.f32 %v2301, %v2307
        %v2316 = vmul.f32 %v2300, %v2308
        %v2317 = vmul.f32 %v2299, %v2309
        %v2318 = vmul.f32 %v2298, %v2310
        %v2319 = vmul.f32 %v2297, %v2311
        %v2320 = vmul.f32 %v2304, %v2312
        %v2321 = vadd.f32 %v2257, %v2313
        %v2322 = vadd.f32 %v2258, %v2314
        %v2323 = vadd.f32 %v2259, %v2315
        %v2324 = vadd.f32 %v2260, %v2316
        %v2325 = vadd.f32 %v2261, %v2317
        %v2326 = vadd.f32 %v2262, %v2318
        %v2327 = vadd.f32 %v2263, %v2319
        %v2328 = vadd.f32 %v2264, %v2320
        %2329 = vrot.lane.b32.xlu0 %v1913, 32
        %v2330 = vpop.permute.xlu0 %2329
        %2331 = vrot.lane.b32.xlu0 %v1915, 32
        %v2332 = vpop.permute.xlu0 %2331
        %2333 = vrot.lane.b32.xlu0 %v1918, 32
        %v2334 = vpop.permute.xlu0 %2333
        %2335 = vrot.lane.b32.xlu0 %v1920, 32
        %v2336 = vpop.permute.xlu0 %2335
        %2337 = vrot.lane.b32.xlu0 %v1923, 32
        %v2338 = vpop.permute.xlu0 %2337
        %2339 = vrot.lane.b32.xlu0 %v1925, 32
        %v2340 = vpop.permute.xlu0 %2339
        %2341 = vrot.lane.b32.xlu0 %v1928, 32
        %v2342 = vpop.permute.xlu0 %2341
        %2343 = vrot.lane.b32.xlu0 %v1930, 32
        %v2344 = vpop.permute.xlu0 %2343
        %v2353 = vld [vmem:[%s1459] sm:$0xff]
        %v2354 = vld [vmem:[%s1459 + $0x8] sm:$0xff]
        %v2355 = vld [vmem:[%s1459 + $0x10] sm:$0xff]
        %v2356 = vld [vmem:[%s1459 + $0x18] sm:$0xff]
        %v2357 = vld [vmem:[%s1459 + $0x20] sm:$0xff]
        %v2358 = vld [vmem:[%s1459 + $0x28] sm:$0xff]
        %v2359 = vld [vmem:[%s1459 + $0x30] sm:$0xff]
        %v2360 = vld [vmem:[%s1459 + $0x38] sm:$0xff]
        %v2361 = vmul.f32 %v2332, %v2353
        %v2362 = vmul.f32 %v2334, %v2354
        %v2363 = vmul.f32 %v2336, %v2355
        %v2364 = vmul.f32 %v2338, %v2356
        %v2365 = vmul.f32 %v2340, %v2357
        %v2366 = vmul.f32 %v2342, %v2358
        %v2367 = vmul.f32 %v2344, %v2359
        %v2368 = vmul.f32 %v2330, %v2360
        %v2369 = vadd.f32 %v2321, %v2361
        %v2370 = vadd.f32 %v2322, %v2362
        %v2371 = vadd.f32 %v2323, %v2363
        %v2372 = vadd.f32 %v2324, %v2364
        %v2373 = vadd.f32 %v2325, %v2365
        %v2374 = vadd.f32 %v2326, %v2366
        %v2375 = vadd.f32 %v2327, %v2367
        %v2376 = vadd.f32 %v2328, %v2368
        %v2377 = vrot.slane %v1942, 1
        %v2378 = vrot.slane %v1944, 1
        %v2379 = vrot.slane %v1947, 1
        %v2380 = vrot.slane %v1949, 1
        %v2381 = vrot.slane %v1952, 1
        %v2382 = vrot.slane %v1954, 1
        %v2383 = vrot.slane %v1957, 1
        %v2384 = vrot.slane %v1959, 1
        %v2385 = vsel %vm1198, %v2383, %v2384
        %v2386 = vsel %vm1198, %v2382, %v2383
        %v2387 = vsel %vm1198, %v2381, %v2382
        %v2388 = vsel %vm1198, %v2380, %v2381
        %v2389 = vsel %vm1198, %v2379, %v2380
        %v2390 = vsel %vm1198, %v2378, %v2379
        %v2391 = vsel %vm1198, %v2377, %v2378
        %v2392 = vsel %vm1198, %v2384, %v2377
        %v2393 = vld [vmem:[%s1500] sm:$0xff]
        %v2394 = vld [vmem:[%s1500 + $0x8] sm:$0xff]
        %v2395 = vld [vmem:[%s1500 + $0x10] sm:$0xff]
        %v2396 = vld [vmem:[%s1500 + $0x18] sm:$0xff]
        %v2397 = vld [vmem:[%s1500 + $0x20] sm:$0xff]
        %v2398 = vld [vmem:[%s1500 + $0x28] sm:$0xff]
        %v2399 = vld [vmem:[%s1500 + $0x30] sm:$0xff]
        %v2400 = vld [vmem:[%s1500 + $0x38] sm:$0xff]
        %v2401 = vmul.f32 %v2390, %v2393
        %v2402 = vmul.f32 %v2389, %v2394
        %v2403 = vmul.f32 %v2388, %v2395
        %v2404 = vmul.f32 %v2387, %v2396
        %v2405 = vmul.f32 %v2386, %v2397
        %v2406 = vmul.f32 %v2385, %v2398
        %v2407 = vmul.f32 %v2392, %v2399
        %v2408 = vmul.f32 %v2391, %v2400
        %v2409 = vadd.f32 %v2369, %v2401
        %v2410 = vadd.f32 %v2370, %v2402
        %v2411 = vadd.f32 %v2371, %v2403
        %v2412 = vadd.f32 %v2372, %v2404
        %v2413 = vadd.f32 %v2373, %v2405
        %v2414 = vadd.f32 %v2374, %v2406
        %v2415 = vadd.f32 %v2375, %v2407
        %v2416 = vadd.f32 %v2376, %v2408
        %v2417 = vld [vmem:[#allocation3] sm:$0xff]
        %v2418 = vld [vmem:[#allocation3 + $0x8] sm:$0xff]
        %v2419 = vld [vmem:[#allocation3 + $0x10] sm:$0xff]
        %v2420 = vld [vmem:[#allocation3 + $0x18] sm:$0xff]
        %v2421 = vld [vmem:[#allocation3 + $0x20] sm:$0xff]
        %v2422 = vld [vmem:[#allocation3 + $0x28] sm:$0xff]
        %v2423 = vld [vmem:[#allocation3 + $0x30] sm:$0xff]
        %v2424 = vld [vmem:[#allocation3 + $0x38] sm:$0xff]
        %v2425 = vadd.f32 %v2417, %v2409
        %v2426 = vadd.f32 %v2418, %v2410
        %v2427 = vadd.f32 %v2419, %v2411
        %v2428 = vadd.f32 %v2420, %v2412
        %v2429 = vadd.f32 %v2421, %v2413
        %v2430 = vadd.f32 %v2422, %v2414
        %v2431 = vadd.f32 %v2423, %v2415
        %v2432 = vadd.f32 %v2424, %v2416
        %vm2433 = vcmp.ge.f32.partialorder %v2425, 1.0
        %vm2434 = vcmp.ge.f32.partialorder %v2426, 1.0
        %vm2435 = vcmp.ge.f32.partialorder %v2427, 1.0
        %vm2436 = vcmp.ge.f32.partialorder %v2428, 1.0
        %vm2437 = vcmp.ge.f32.partialorder %v2429, 1.0
        %vm2438 = vcmp.ge.f32.partialorder %v2430, 1.0
        %vm2439 = vcmp.ge.f32.partialorder %v2431, 1.0
        %vm2440 = vcmp.ge.f32.partialorder %v2432, 1.0
        %v2441 = vsel %vm2433, 0.0, %v2425
        %v2442 = vsel %vm2434, 0.0, %v2426
        %v2443 = vsel %vm2435, 0.0, %v2427
        %v2444 = vsel %vm2436, 0.0, %v2428
        %v2445 = vsel %vm2437, 0.0, %v2429
        %v2446 = vsel %vm2438, 0.0, %v2430
        %v2447 = vsel %vm2439, 0.0, %v2431
        %v2448 = vsel %vm2440, 0.0, %v2432
        %2449 = vst.msk [vmem:[#allocation3] sm:$0xff] %vm810, %v2441
        %2450 = vst.msk [vmem:[#allocation3 + $0x8] sm:$0xff] %vm810, %v2442
        %2451 = vst.msk [vmem:[#allocation3 + $0x10] sm:$0xff] %vm810, %v2443
        %2452 = vst.msk [vmem:[#allocation3 + $0x18] sm:$0xff] %vm810, %v2444
        %2453 = vst.msk [vmem:[#allocation3 + $0x20] sm:$0xff] %vm810, %v2445
        %2454 = vst.msk [vmem:[#allocation3 + $0x28] sm:$0xff] %vm810, %v2446
        %2455 = vst.msk [vmem:[#allocation3 + $0x30] sm:$0xff] %vm810, %v2447
        %2456 = vst.msk [vmem:[#allocation3 + $0x38] sm:$0xff] %vm810, %v2448
        %v2457 = vsel %vm2433, 1, 0
        %v2458 = vsel %vm2434, 1, 0
        %v2459 = vsel %vm2435, 1, 0
        %v2460 = vsel %vm2436, 1, 0
        %v2461 = vsel %vm2437, 1, 0
        %v2462 = vsel %vm2438, 1, 0
        %v2463 = vsel %vm2439, 1, 0
        %v2464 = vsel %vm2440, 1, 0
        %v2465 = vcvt.s32.f32 %v2457
        %v2466 = vcvt.s32.f32 %v2458
        %v2467 = vcvt.s32.f32 %v2459
        %v2468 = vcvt.s32.f32 %v2460
        %v2469 = vcvt.s32.f32 %v2461
        %v2470 = vcvt.s32.f32 %v2462
        %v2471 = vcvt.s32.f32 %v2463
        %v2472 = vcvt.s32.f32 %v2464
        %v2473 = vpack.c.bf16 %v2466, %v2465
        %v2474 = vpack.c.bf16 %v2468, %v2467
        %v2475 = vpack.c.bf16 %v2470, %v2469
        %v2476 = vpack.c.bf16 %v2472, %v2471
        %v2477 = vld [vmem:[%s5] sm:$0xf]
        %v2478 = vld [vmem:[%s5 + $0x4] sm:$0xf]
        %v2479 = vld [vmem:[%s5 + $0x8] sm:$0xf]
        %v2480 = vld [vmem:[%s5 + $0xc] sm:$0xf]
        %v2485 = vunpack.c.l.b16 %v2477
        %v2486 = vunpack.c.l.b16 %v2478
        %v2487 = vunpack.c.l.b16 %v2479
        %v2488 = vunpack.c.l.b16 %v2480
        %v2489 = vpack.c.b16 %v2486, %v2485
        %v2490 = vpack.c.b16 %v2488, %v2487
        %v2494 = vsel %vm810, %v2473, 0
        %v2497 = vsel %vm810, %v2474, 0
        %v2500 = vsel %vm810, %v2475, 0
        %v2503 = vsel %vm810, %v2476, 0
        %2505 = vmatpush.bf16.msra.mxu0 0
        %2506 = vmatpush.bf16.msra.mxu0 0
        %2507 = vmatpush.bf16.msra.mxu0 0
        %2508 = vmatpush.bf16.msra.mxu0 0
        %2509 = vmatpush.bf16.msra.mxu0 0
        %2510 = vmatpush.bf16.msra.mxu0 0
        %2511 = vmatpush.bf16.msra.mxu0 %v2490
        %2512 = vmatpush.bf16.msra.mxu0 %v2489
        %2513 = vmatmul.bf16.gmra.mxu0 %v2494
        %v2514 = vpop.f32.mrf.mxu0
        %v2515 = vadd.f32 %v849, %v2514
        %v2516 = vpop.f32.mrf.mxu0
        %v2517 = vadd.f32 %v849, %v2516
        %2518 = vmatmul.bf16.gmra.mxu0 %v2497
        %v2519 = vpop.f32.mrf.mxu0
        %v2520 = vadd.f32 %v849, %v2519
        %v2521 = vpop.f32.mrf.mxu0
        %v2522 = vadd.f32 %v849, %v2521
        %2523 = vmatmul.bf16.gmra.mxu0 %v2500
        %v2524 = vpop.f32.mrf.mxu0
        %v2525 = vadd.f32 %v849, %v2524
        %v2526 = vpop.f32.mrf.mxu0
        %v2527 = vadd.f32 %v849, %v2526
        %2528 = vmatmul.bf16.gmra.mxu0 %v2503
        %v2529 = vpop.f32.mrf.mxu0
        %v2530 = vadd.f32 %v849, %v2529
        %v2531 = vpop.f32.mrf.mxu0
        %v2532 = vadd.f32 %v849, %v2531
        %2533 = vdwg.mxu0
        %v2534 = vld [vmem:[#allocation4] sm:$0xff]
        %v2535 = vld [vmem:[#allocation4 + $0x8] sm:$0xff]
        %v2536 = vld [vmem:[#allocation4 + $0x10] sm:$0xff]
        %v2537 = vld [vmem:[#allocation4 + $0x18] sm:$0xff]
        %v2538 = vld [vmem:[#allocation4 + $0x20] sm:$0xff]
        %v2539 = vld [vmem:[#allocation4 + $0x28] sm:$0xff]
        %v2540 = vld [vmem:[#allocation4 + $0x30] sm:$0xff]
        %v2541 = vld [vmem:[#allocation4 + $0x38] sm:$0xff]
        %v2542 = vadd.f32 %v2534, %v2515
        %v2543 = vadd.f32 %v2535, %v2517
        %v2544 = vadd.f32 %v2536, %v2520
        %v2545 = vadd.f32 %v2537, %v2522
        %v2546 = vadd.f32 %v2538, %v2525
        %v2547 = vadd.f32 %v2539, %v2527
        %v2548 = vadd.f32 %v2540, %v2530
        %v2549 = vadd.f32 %v2541, %v2532
        %vm2550 = vcmp.ge.f32.partialorder %v2542, 1.0
        %vm2551 = vcmp.ge.f32.partialorder %v2543, 1.0
        %vm2552 = vcmp.ge.f32.partialorder %v2544, 1.0
        %vm2553 = vcmp.ge.f32.partialorder %v2545, 1.0
        %vm2554 = vcmp.ge.f32.partialorder %v2546, 1.0
        %vm2555 = vcmp.ge.f32.partialorder %v2547, 1.0
        %vm2556 = vcmp.ge.f32.partialorder %v2548, 1.0
        %vm2557 = vcmp.ge.f32.partialorder %v2549, 1.0
        %v2558 = vsel %vm2550, 0.0, %v2542
        %v2559 = vsel %vm2551, 0.0, %v2543
        %v2560 = vsel %vm2552, 0.0, %v2544
        %v2561 = vsel %vm2553, 0.0, %v2545
        %v2562 = vsel %vm2554, 0.0, %v2546
        %v2563 = vsel %vm2555, 0.0, %v2547
        %v2564 = vsel %vm2556, 0.0, %v2548
        %v2565 = vsel %vm2557, 0.0, %v2549
        %2566 = vst [vmem:[#allocation4] sm:$0xff] %v2558
        %2567 = vst [vmem:[#allocation4 + $0x8] sm:$0xff] %v2559
        %2568 = vst [vmem:[#allocation4 + $0x10] sm:$0xff] %v2560
        %2569 = vst [vmem:[#allocation4 + $0x18] sm:$0xff] %v2561
        %2570 = vst [vmem:[#allocation4 + $0x20] sm:$0xff] %v2562
        %2571 = vst [vmem:[#allocation4 + $0x28] sm:$0xff] %v2563
        %2572 = vst [vmem:[#allocation4 + $0x30] sm:$0xff] %v2564
        %2573 = vst [vmem:[#allocation4 + $0x38] sm:$0xff] %v2565
        %s2574 = scalar_lea.vmem %s460, 32 [#allocation6]
        %v2575 = vld [vmem:[%s2574] sm:$0xf]
        %v2576 = vld [vmem:[%s2574 + $0x4] sm:$0xf]
        %v2577 = vld [vmem:[%s2574 + $0x8] sm:$0xf]
        %v2578 = vld [vmem:[%s2574 + $0xc] sm:$0xf]
        %v2579 = vld [vmem:[%s2574 + $0x10] sm:$0xf]
        %v2580 = vld [vmem:[%s2574 + $0x14] sm:$0xf]
        %v2581 = vld [vmem:[%s2574 + $0x18] sm:$0xf]
        %v2582 = vld [vmem:[%s2574 + $0x1c] sm:$0xf]
        %v2583 = vsel %vm2550, 1, 0
        %v2584 = vsel %vm2551, 1, 0
        %v2585 = vsel %vm2552, 1, 0
        %v2586 = vsel %vm2553, 1, 0
        %v2587 = vsel %vm2554, 1, 0
        %v2588 = vsel %vm2555, 1, 0
        %v2589 = vsel %vm2556, 1, 0
        %v2590 = vsel %vm2557, 1, 0
        %v2591 = vcvt.s32.f32 %v2583
        %v2592 = vcvt.s32.f32 %v2584
        %v2593 = vcvt.s32.f32 %v2585
        %v2594 = vcvt.s32.f32 %v2586
        %v2595 = vcvt.s32.f32 %v2587
        %v2596 = vcvt.s32.f32 %v2588
        %v2597 = vcvt.s32.f32 %v2589
        %v2598 = vcvt.s32.f32 %v2590
        %v2599 = vpack.c.bf16 %v2591, %v2591
        %v2600 = vpack.c.bf16 %v2592, %v2592
        %v2601 = vpack.c.bf16 %v2593, %v2593
        %v2602 = vpack.c.bf16 %v2594, %v2594
        %v2603 = vpack.c.bf16 %v2595, %v2595
        %v2604 = vpack.c.bf16 %v2596, %v2596
        %v2605 = vpack.c.bf16 %v2597, %v2597
        %v2606 = vpack.c.bf16 %v2598, %v2598
        %v2607 = vunpack.c.l.bf16 %v2575
        %v2608 = vunpack.c.l.bf16 %v2576
        %v2609 = vunpack.c.l.bf16 %v2577
        %v2610 = vunpack.c.l.bf16 %v2578
        %v2611 = vunpack.c.l.bf16 %v2579
        %v2612 = vunpack.c.l.bf16 %v2580
        %v2613 = vunpack.c.l.bf16 %v2581
        %v2614 = vunpack.c.l.bf16 %v2582
        %v2615 = vunpack.c.l.bf16 %v2599
        %v2616 = vunpack.c.l.bf16 %v2600
        %v2617 = vunpack.c.l.bf16 %v2601
        %v2618 = vunpack.c.l.bf16 %v2602
        %v2619 = vunpack.c.l.bf16 %v2603
        %v2620 = vunpack.c.l.bf16 %v2604
        %v2621 = vunpack.c.l.bf16 %v2605
        %v2622 = vunpack.c.l.bf16 %v2606
        %v2623 = vadd.f32 %v2607, %v2615
        %v2624 = vadd.f32 %v2608, %v2616
        %v2625 = vadd.f32 %v2609, %v2617
        %v2626 = vadd.f32 %v2610, %v2618
        %v2627 = vadd.f32 %v2611, %v2619
        %v2628 = vadd.f32 %v2612, %v2620
        %v2629 = vadd.f32 %v2613, %v2621
        %v2630 = vadd.f32 %v2614, %v2622
        %v2631 = vpack.c.bf16 %v2623, %v2623
        %v2632 = vpack.c.bf16 %v2624, %v2624
        %v2633 = vpack.c.bf16 %v2625, %v2625
        %v2634 = vpack.c.bf16 %v2626, %v2626
        %v2635 = vpack.c.bf16 %v2627, %v2627
        %v2636 = vpack.c.bf16 %v2628, %v2628
        %v2637 = vpack.c.bf16 %v2629, %v2629
        %v2638 = vpack.c.bf16 %v2630, %v2630
        %s2639 = scalar_lea.vmem %s490, 32 [#allocation7]
        %2640 = vst [vmem:[%s2639] sm:$0xf] %v2631
        %2641 = vst [vmem:[%s2639 + $0x4] sm:$0xf] %v2632
        %2642 = vst [vmem:[%s2639 + $0x8] sm:$0xf] %v2633
        %2643 = vst [vmem:[%s2639 + $0xc] sm:$0xf] %v2634
        %2644 = vst [vmem:[%s2639 + $0x10] sm:$0xf] %v2635
        %2645 = vst [vmem:[%s2639 + $0x14] sm:$0xf] %v2636
        %2646 = vst [vmem:[%s2639 + $0x18] sm:$0xf] %v2637
        %2647 = vst [vmem:[%s2639 + $0x1c] sm:$0xf] %v2638
        %v2648 = vld [vmem:[#allocation5 + $0x80] sm:$0xff]
        %v2649 = vld [vmem:[#allocation5 + $0x88] sm:$0xff]
        %v2650 = vld [vmem:[#allocation5 + $0x90] sm:$0xff]
        %v2651 = vld [vmem:[#allocation5 + $0x98] sm:$0xff]
        %v2652 = vld [vmem:[#allocation5 + $0xa0] sm:$0xff]
        %v2653 = vld [vmem:[#allocation5 + $0xa8] sm:$0xff]
        %v2654 = vld [vmem:[#allocation5 + $0xb0] sm:$0xff]
        %v2655 = vld [vmem:[#allocation5 + $0xb8] sm:$0xff]
        %v2656 = vld [vmem:[#allocation2] sm:$0xff]
        %v2657 = vld [vmem:[#allocation2 + $0x8] sm:$0xff]
        %v2658 = vld [vmem:[#allocation2 + $0x10] sm:$0xff]
        %v2659 = vld [vmem:[#allocation2 + $0x18] sm:$0xff]
        %v2660 = vld [vmem:[#allocation2 + $0x20] sm:$0xff]
        %v2661 = vld [vmem:[#allocation2 + $0x28] sm:$0xff]
        %v2662 = vld [vmem:[#allocation2 + $0x30] sm:$0xff]
        %v2663 = vld [vmem:[#allocation2 + $0x38] sm:$0xff]
        %v2664 = vadd.f32 %v2656, %v2648
        %v2665 = vadd.f32 %v2657, %v2649
        %v2666 = vadd.f32 %v2658, %v2650
        %v2667 = vadd.f32 %v2659, %v2651
        %v2668 = vadd.f32 %v2660, %v2652
        %v2669 = vadd.f32 %v2661, %v2653
        %v2670 = vadd.f32 %v2662, %v2654
        %v2671 = vadd.f32 %v2663, %v2655
        %vm2672 = vcmp.ge.f32.partialorder %v2664, 1.0
        %vm2673 = vcmp.ge.f32.partialorder %v2665, 1.0
        %vm2674 = vcmp.ge.f32.partialorder %v2666, 1.0
        %vm2675 = vcmp.ge.f32.partialorder %v2667, 1.0
        %vm2676 = vcmp.ge.f32.partialorder %v2668, 1.0
        %vm2677 = vcmp.ge.f32.partialorder %v2669, 1.0
        %vm2678 = vcmp.ge.f32.partialorder %v2670, 1.0
        %vm2679 = vcmp.ge.f32.partialorder %v2671, 1.0
        %v2680 = vsel %vm2672, 0.0, %v2664
        %v2681 = vsel %vm2673, 0.0, %v2665
        %v2682 = vsel %vm2674, 0.0, %v2666
        %v2683 = vsel %vm2675, 0.0, %v2667
        %v2684 = vsel %vm2676, 0.0, %v2668
        %v2685 = vsel %vm2677, 0.0, %v2669
        %v2686 = vsel %vm2678, 0.0, %v2670
        %v2687 = vsel %vm2679, 0.0, %v2671
        %2688 = vst.msk [vmem:[#allocation2] sm:$0xff] %vm810, %v2680
        %2689 = vst.msk [vmem:[#allocation2 + $0x8] sm:$0xff] %vm810, %v2681
        %2690 = vst.msk [vmem:[#allocation2 + $0x10] sm:$0xff] %vm810, %v2682
        %2691 = vst.msk [vmem:[#allocation2 + $0x18] sm:$0xff] %vm810, %v2683
        %2692 = vst.msk [vmem:[#allocation2 + $0x20] sm:$0xff] %vm810, %v2684
        %2693 = vst.msk [vmem:[#allocation2 + $0x28] sm:$0xff] %vm810, %v2685
        %2694 = vst.msk [vmem:[#allocation2 + $0x30] sm:$0xff] %vm810, %v2686
        %2695 = vst.msk [vmem:[#allocation2 + $0x38] sm:$0xff] %vm810, %v2687
        %v2696 = vsel %vm2672, 1, 0
        %v2697 = vsel %vm2673, 1, 0
        %v2698 = vsel %vm2674, 1, 0
        %v2699 = vsel %vm2675, 1, 0
        %v2700 = vsel %vm2676, 1, 0
        %v2701 = vsel %vm2677, 1, 0
        %v2702 = vsel %vm2678, 1, 0
        %v2703 = vsel %vm2679, 1, 0
        %v2704 = vcvt.s32.f32 %v2696
        %v2705 = vcvt.s32.f32 %v2697
        %v2706 = vcvt.s32.f32 %v2698
        %v2707 = vcvt.s32.f32 %v2699
        %v2708 = vcvt.s32.f32 %v2700
        %v2709 = vcvt.s32.f32 %v2701
        %v2710 = vcvt.s32.f32 %v2702
        %v2711 = vcvt.s32.f32 %v2703
        %v2712 = vpack.c.bf16 %v2705, %v2704
        %v2713 = vpack.c.bf16 %v2707, %v2706
        %v2714 = vpack.c.bf16 %v2709, %v2708
        %v2715 = vpack.c.bf16 %v2711, %v2710
        %v2716 = vld [vmem:[%s3] sm:$0xff]
        %v2717 = vld [vmem:[%s3 + $0x8] sm:$0xf]
        %v2718 = vld [vmem:[%s3 + $0xc] sm:$0xff]
        %v2719 = vld [vmem:[%s3 + $0x14] sm:$0xf]
        %v2720 = vld [vmem:[%s3 + $0x18] sm:$0xff]
        %v2721 = vld [vmem:[%s3 + $0x20] sm:$0xf]
        %v2722 = vld [vmem:[%s3 + $0x24] sm:$0xff]
        %v2723 = vld [vmem:[%s3 + $0x2c] sm:$0xf]
        %v2732 = vunpack.c.l.b16 %v2716
        %v2733 = vunpack.c.h.b16 %v2716
        %v2734 = vunpack.c.l.b16 %v2717
        %v2735 = vunpack.c.l.b16 %v2718
        %v2736 = vunpack.c.h.b16 %v2718
        %v2737 = vunpack.c.l.b16 %v2719
        %v2738 = vunpack.c.l.b16 %v2720
        %v2739 = vunpack.c.h.b16 %v2720
        %v2740 = vunpack.c.l.b16 %v2721
        %v2741 = vunpack.c.l.b16 %v2722
        %v2742 = vunpack.c.h.b16 %v2722
        %v2743 = vunpack.c.l.b16 %v2723
        %v2744 = vpack.c.b16 %v2735, %v2732
        %v2745 = vpack.c.b16 %v2736, %v2733
        %v2746 = vpack.c.b16 %v2737, %v2734
        %v2747 = vpack.c.b16 %v2741, %v2738
        %v2748 = vpack.c.b16 %v2742, %v2739
        %v2749 = vpack.c.b16 %v2743, %v2740
        %v2757 = vsel %vm810, %v2712, 0
        %v2760 = vsel %vm810, %v2713, 0
        %v2763 = vsel %vm810, %v2714, 0
        %v2766 = vsel %vm810, %v2715, 0
        %2768 = vmatpush.bf16.msra.mxu0 0
        %2769 = vmatpush.bf16.msra.mxu0 0
        %2770 = vmatpush.bf16.msra.mxu0 0
        %2771 = vmatpush.bf16.msra.mxu0 0
        %2772 = vmatpush.bf16.msra.mxu0 0
        %2773 = vmatpush.bf16.msra.mxu0 0
        %2774 = vmatpush.bf16.msra.mxu0 %v2747
        %2775 = vmatpush.bf16.msra.mxu0 %v2744
        %2776 = vmatmul.bf16.gmra.mxu0 %v2757
        %v2777 = vpop.f32.mrf.mxu0
        %v2778 = vadd.f32 0.0, %v2777
        %v2779 = vpop.f32.mrf.mxu0
        %v2780 = vadd.f32 0.0, %v2779
        %2781 = vmatmul.bf16.gmra.mxu0 %v2760
        %v2782 = vpop.f32.mrf.mxu0
        %v2783 = vadd.f32 0.0, %v2782
        %v2784 = vpop.f32.mrf.mxu0
        %v2785 = vadd.f32 0.0, %v2784
        %2786 = vmatmul.bf16.gmra.mxu0 %v2763
        %v2787 = vpop.f32.mrf.mxu0
        %v2788 = vadd.f32 0.0, %v2787
        %v2789 = vpop.f32.mrf.mxu0
        %v2790 = vadd.f32 0.0, %v2789
        %2791 = vmatmul.bf16.gmra.mxu0 %v2766
        %v2792 = vpop.f32.mrf.mxu0
        %v2793 = vadd.f32 0.0, %v2792
        %v2794 = vpop.f32.mrf.mxu0
        %v2795 = vadd.f32 0.0, %v2794
        %2796 = vdwg.mxu0
        %2797 = vmatpush.bf16.msra.mxu0 0
        %2798 = vmatpush.bf16.msra.mxu0 0
        %2799 = vmatpush.bf16.msra.mxu0 0
        %2800 = vmatpush.bf16.msra.mxu0 0
        %2801 = vmatpush.bf16.msra.mxu0 0
        %2802 = vmatpush.bf16.msra.mxu0 0
        %2803 = vmatpush.bf16.msra.mxu0 %v2748
        %2804 = vmatpush.bf16.msra.mxu0 %v2745
        %2805 = vmatmul.bf16.gmra.mxu0 %v2757
        %v2806 = vpop.f32.mrf.mxu0
        %v2807 = vadd.f32 0.0, %v2806
        %v2808 = vpop.f32.mrf.mxu0
        %v2809 = vadd.f32 0.0, %v2808
        %2810 = vmatmul.bf16.gmra.mxu0 %v2760
        %v2811 = vpop.f32.mrf.mxu0
        %v2812 = vadd.f32 0.0, %v2811
        %v2813 = vpop.f32.mrf.mxu0
        %v2814 = vadd.f32 0.0, %v2813
        %2815 = vmatmul.bf16.gmra.mxu0 %v2763
        %v2816 = vpop.f32.mrf.mxu0
        %v2817 = vadd.f32 0.0, %v2816
        %v2818 = vpop.f32.mrf.mxu0
        %v2819 = vadd.f32 0.0, %v2818
        %2820 = vmatmul.bf16.gmra.mxu0 %v2766
        %v2821 = vpop.f32.mrf.mxu0
        %v2822 = vadd.f32 0.0, %v2821
        %v2823 = vpop.f32.mrf.mxu0
        %v2824 = vadd.f32 0.0, %v2823
        %2825 = vdwg.mxu0
        %2826 = vmatpush.bf16.msra.mxu0 0
        %2827 = vmatpush.bf16.msra.mxu0 0
        %2828 = vmatpush.bf16.msra.mxu0 0
        %2829 = vmatpush.bf16.msra.mxu0 0
        %2830 = vmatpush.bf16.msra.mxu0 0
        %2831 = vmatpush.bf16.msra.mxu0 0
        %2832 = vmatpush.bf16.msra.mxu0 %v2749
        %2833 = vmatpush.bf16.msra.mxu0 %v2746
        %2834 = vmatmul.bf16.gmra.mxu0 %v2757
        %v2835 = vpop.f32.mrf.mxu0
        %v2836 = vadd.f32 0.0, %v2835
        %v2837 = vpop.f32.mrf.mxu0
        %v2838 = vadd.f32 0.0, %v2837
        %2839 = vmatmul.bf16.gmra.mxu0 %v2760
        %v2840 = vpop.f32.mrf.mxu0
        %v2841 = vadd.f32 0.0, %v2840
        %v2842 = vpop.f32.mrf.mxu0
        %v2843 = vadd.f32 0.0, %v2842
        %2844 = vmatmul.bf16.gmra.mxu0 %v2763
        %v2845 = vpop.f32.mrf.mxu0
        %v2846 = vadd.f32 0.0, %v2845
        %v2847 = vpop.f32.mrf.mxu0
        %v2848 = vadd.f32 0.0, %v2847
        %2849 = vmatmul.bf16.gmra.mxu0 %v2766
        %v2850 = vpop.f32.mrf.mxu0
        %v2851 = vadd.f32 0.0, %v2850
        %v2852 = vpop.f32.mrf.mxu0
        %v2853 = vadd.f32 0.0, %v2852
        %2854 = vdwg.mxu0
        %v2855 = vadd.f32 %v2807, %v845
        %v2856 = vadd.f32 %v2809, %v845
        %v2857 = vadd.f32 %v2812, %v845
        %v2858 = vadd.f32 %v2814, %v845
        %v2859 = vadd.f32 %v2817, %v845
        %v2860 = vadd.f32 %v2819, %v845
        %v2861 = vadd.f32 %v2822, %v845
        %v2862 = vadd.f32 %v2824, %v845
        %v2863 = vrot.slane %v2778, 7
        %v2864 = vrot.slane %v2780, 7
        %v2865 = vrot.slane %v2783, 7
        %v2866 = vrot.slane %v2785, 7
        %v2867 = vrot.slane %v2788, 7
        %v2868 = vrot.slane %v2790, 7
        %v2869 = vrot.slane %v2793, 7
        %v2870 = vrot.slane %v2795, 7
        %v2871 = vsel %vm1076, %v2869, %v2870
        %v2872 = vsel %vm1076, %v2868, %v2869
        %v2873 = vsel %vm1076, %v2867, %v2868
        %v2874 = vsel %vm1076, %v2866, %v2867
        %v2875 = vsel %vm1076, %v2865, %v2866
        %v2876 = vsel %vm1076, %v2864, %v2865
        %v2877 = vsel %vm1076, %v2863, %v2864
        %v2878 = vsel %vm1076, %v2870, %v2863
        %v2879 = vld [vmem:[%s7] sm:$0xff]
        %v2880 = vld [vmem:[%s7 + $0x8] sm:$0xff]
        %v2881 = vld [vmem:[%s7 + $0x10] sm:$0xff]
        %v2882 = vld [vmem:[%s7 + $0x18] sm:$0xff]
        %v2883 = vld [vmem:[%s7 + $0x20] sm:$0xff]
        %v2884 = vld [vmem:[%s7 + $0x28] sm:$0xff]
        %v2885 = vld [vmem:[%s7 + $0x30] sm:$0xff]
        %v2886 = vld [vmem:[%s7 + $0x38] sm:$0xff]
        %v2887 = vmul.f32 %v2871, %v2879
        %v2888 = vmul.f32 %v2878, %v2880
        %v2889 = vmul.f32 %v2877, %v2881
        %v2890 = vmul.f32 %v2876, %v2882
        %v2891 = vmul.f32 %v2875, %v2883
        %v2892 = vmul.f32 %v2874, %v2884
        %v2893 = vmul.f32 %v2873, %v2885
        %v2894 = vmul.f32 %v2872, %v2886
        %v2895 = vadd.f32 %v2855, %v2887
        %v2896 = vadd.f32 %v2856, %v2888
        %v2897 = vadd.f32 %v2857, %v2889
        %v2898 = vadd.f32 %v2858, %v2890
        %v2899 = vadd.f32 %v2859, %v2891
        %v2900 = vadd.f32 %v2860, %v2892
        %v2901 = vadd.f32 %v2861, %v2893
        %v2902 = vadd.f32 %v2862, %v2894
        %2911 = vrot.lane.b32.xlu0 %v2778, 96
        %v2912 = vpop.permute.xlu0 %2911
        %2913 = vrot.lane.b32.xlu0 %v2780, 96
        %v2914 = vpop.permute.xlu0 %2913
        %2915 = vrot.lane.b32.xlu0 %v2783, 96
        %v2916 = vpop.permute.xlu0 %2915
        %2917 = vrot.lane.b32.xlu0 %v2785, 96
        %v2918 = vpop.permute.xlu0 %2917
        %2919 = vrot.lane.b32.xlu0 %v2788, 96
        %v2920 = vpop.permute.xlu0 %2919
        %2921 = vrot.lane.b32.xlu0 %v2790, 96
        %v2922 = vpop.permute.xlu0 %2921
        %2923 = vrot.lane.b32.xlu0 %v2793, 96
        %v2924 = vpop.permute.xlu0 %2923
        %2925 = vrot.lane.b32.xlu0 %v2795, 96
        %v2926 = vpop.permute.xlu0 %2925
        %v2935 = vld [vmem:[%s1141] sm:$0xff]
        %v2936 = vld [vmem:[%s1141 + $0x8] sm:$0xff]
        %v2937 = vld [vmem:[%s1141 + $0x10] sm:$0xff]
        %v2938 = vld [vmem:[%s1141 + $0x18] sm:$0xff]
        %v2939 = vld [vmem:[%s1141 + $0x20] sm:$0xff]
        %v2940 = vld [vmem:[%s1141 + $0x28] sm:$0xff]
        %v2941 = vld [vmem:[%s1141 + $0x30] sm:$0xff]
        %v2942 = vld [vmem:[%s1141 + $0x38] sm:$0xff]
        %v2943 = vmul.f32 %v2926, %v2935
        %v2944 = vmul.f32 %v2912, %v2936
        %v2945 = vmul.f32 %v2914, %v2937
        %v2946 = vmul.f32 %v2916, %v2938
        %v2947 = vmul.f32 %v2918, %v2939
        %v2948 = vmul.f32 %v2920, %v2940
        %v2949 = vmul.f32 %v2922, %v2941
        %v2950 = vmul.f32 %v2924, %v2942
        %v2951 = vadd.f32 %v2895, %v2943
        %v2952 = vadd.f32 %v2896, %v2944
        %v2953 = vadd.f32 %v2897, %v2945
        %v2954 = vadd.f32 %v2898, %v2946
        %v2955 = vadd.f32 %v2899, %v2947
        %v2956 = vadd.f32 %v2900, %v2948
        %v2957 = vadd.f32 %v2901, %v2949
        %v2958 = vadd.f32 %v2902, %v2950
        %2959 = vrot.lane.b32.xlu0 %v2778, 64
        %v2960 = vpop.permute.xlu0 %2959
        %2961 = vrot.lane.b32.xlu0 %v2780, 64
        %v2962 = vpop.permute.xlu0 %2961
        %2963 = vrot.lane.b32.xlu0 %v2783, 64
        %v2964 = vpop.permute.xlu0 %2963
        %2965 = vrot.lane.b32.xlu0 %v2785, 64
        %v2966 = vpop.permute.xlu0 %2965
        %2967 = vrot.lane.b32.xlu0 %v2788, 64
        %v2968 = vpop.permute.xlu0 %2967
        %2969 = vrot.lane.b32.xlu0 %v2790, 64
        %v2970 = vpop.permute.xlu0 %2969
        %2971 = vrot.lane.b32.xlu0 %v2793, 64
        %v2972 = vpop.permute.xlu0 %2971
        %2973 = vrot.lane.b32.xlu0 %v2795, 64
        %v2974 = vpop.permute.xlu0 %2973
        %v2983 = vrot.slane %v2960, 1
        %v2984 = vrot.slane %v2962, 1
        %v2985 = vrot.slane %v2964, 1
        %v2986 = vrot.slane %v2966, 1
        %v2987 = vrot.slane %v2968, 1
        %v2988 = vrot.slane %v2970, 1
        %v2989 = vrot.slane %v2972, 1
        %v2990 = vrot.slane %v2974, 1
        %v2991 = vsel %vm1198, %v2989, %v2990
        %v2992 = vsel %vm1198, %v2988, %v2989
        %v2993 = vsel %vm1198, %v2987, %v2988
        %v2994 = vsel %vm1198, %v2986, %v2987
        %v2995 = vsel %vm1198, %v2985, %v2986
        %v2996 = vsel %vm1198, %v2984, %v2985
        %v2997 = vsel %vm1198, %v2983, %v2984
        %v2998 = vsel %vm1198, %v2990, %v2983
        %v2999 = vld [vmem:[%s1207] sm:$0xff]
        %v3000 = vld [vmem:[%s1207 + $0x8] sm:$0xff]
        %v3001 = vld [vmem:[%s1207 + $0x10] sm:$0xff]
        %v3002 = vld [vmem:[%s1207 + $0x18] sm:$0xff]
        %v3003 = vld [vmem:[%s1207 + $0x20] sm:$0xff]
        %v3004 = vld [vmem:[%s1207 + $0x28] sm:$0xff]
        %v3005 = vld [vmem:[%s1207 + $0x30] sm:$0xff]
        %v3006 = vld [vmem:[%s1207 + $0x38] sm:$0xff]
        %v3007 = vmul.f32 %v2998, %v2999
        %v3008 = vmul.f32 %v2997, %v3000
        %v3009 = vmul.f32 %v2996, %v3001
        %v3010 = vmul.f32 %v2995, %v3002
        %v3011 = vmul.f32 %v2994, %v3003
        %v3012 = vmul.f32 %v2993, %v3004
        %v3013 = vmul.f32 %v2992, %v3005
        %v3014 = vmul.f32 %v2991, %v3006
        %v3015 = vadd.f32 %v2951, %v3007
        %v3016 = vadd.f32 %v2952, %v3008
        %v3017 = vadd.f32 %v2953, %v3009
        %v3018 = vadd.f32 %v2954, %v3010
        %v3019 = vadd.f32 %v2955, %v3011
        %v3020 = vadd.f32 %v2956, %v3012
        %v3021 = vadd.f32 %v2957, %v3013
        %v3022 = vadd.f32 %v2958, %v3014
        %3023 = vrot.lane.b32.xlu0 %v2778, 32
        %v3024 = vpop.permute.xlu0 %3023
        %3025 = vrot.lane.b32.xlu0 %v2780, 32
        %v3026 = vpop.permute.xlu0 %3025
        %3027 = vrot.lane.b32.xlu0 %v2783, 32
        %v3028 = vpop.permute.xlu0 %3027
        %3029 = vrot.lane.b32.xlu0 %v2785, 32
        %v3030 = vpop.permute.xlu0 %3029
        %3031 = vrot.lane.b32.xlu0 %v2788, 32
        %v3032 = vpop.permute.xlu0 %3031
        %3033 = vrot.lane.b32.xlu0 %v2790, 32
        %v3034 = vpop.permute.xlu0 %3033
        %3035 = vrot.lane.b32.xlu0 %v2793, 32
        %v3036 = vpop.permute.xlu0 %3035
        %3037 = vrot.lane.b32.xlu0 %v2795, 32
        %v3038 = vpop.permute.xlu0 %3037
        %v3047 = vrot.slane %v3024, 7
        %v3048 = vrot.slane %v3026, 7
        %v3049 = vrot.slane %v3028, 7
        %v3050 = vrot.slane %v3030, 7
        %v3051 = vrot.slane %v3032, 7
        %v3052 = vrot.slane %v3034, 7
        %v3053 = vrot.slane %v3036, 7
        %v3054 = vrot.slane %v3038, 7
        %v3055 = vsel %vm1076, %v3053, %v3054
        %v3056 = vsel %vm1076, %v3052, %v3053
        %v3057 = vsel %vm1076, %v3051, %v3052
        %v3058 = vsel %vm1076, %v3050, %v3051
        %v3059 = vsel %vm1076, %v3049, %v3050
        %v3060 = vsel %vm1076, %v3048, %v3049
        %v3061 = vsel %vm1076, %v3047, %v3048
        %v3062 = vsel %vm1076, %v3054, %v3047
        %v3063 = vld [vmem:[%s1272] sm:$0xff]
        %v3064 = vld [vmem:[%s1272 + $0x8] sm:$0xff]
        %v3065 = vld [vmem:[%s1272 + $0x10] sm:$0xff]
        %v3066 = vld [vmem:[%s1272 + $0x18] sm:$0xff]
        %v3067 = vld [vmem:[%s1272 + $0x20] sm:$0xff]
        %v3068 = vld [vmem:[%s1272 + $0x28] sm:$0xff]
        %v3069 = vld [vmem:[%s1272 + $0x30] sm:$0xff]
        %v3070 = vld [vmem:[%s1272 + $0x38] sm:$0xff]
        %v3071 = vmul.f32 %v3062, %v3063
        %v3072 = vmul.f32 %v3061, %v3064
        %v3073 = vmul.f32 %v3060, %v3065
        %v3074 = vmul.f32 %v3059, %v3066
        %v3075 = vmul.f32 %v3058, %v3067
        %v3076 = vmul.f32 %v3057, %v3068
        %v3077 = vmul.f32 %v3056, %v3069
        %v3078 = vmul.f32 %v3055, %v3070
        %v3079 = vadd.f32 %v3015, %v3071
        %v3080 = vadd.f32 %v3016, %v3072
        %v3081 = vadd.f32 %v3017, %v3073
        %v3082 = vadd.f32 %v3018, %v3074
        %v3083 = vadd.f32 %v3019, %v3075
        %v3084 = vadd.f32 %v3020, %v3076
        %v3085 = vadd.f32 %v3021, %v3077
        %v3086 = vadd.f32 %v3022, %v3078
        %3095 = vrot.lane.b32.xlu0 %v2807, 96
        %v3096 = vpop.permute.xlu0 %3095
        %3097 = vrot.lane.b32.xlu0 %v2809, 96
        %v3098 = vpop.permute.xlu0 %3097
        %3099 = vrot.lane.b32.xlu0 %v2812, 96
        %v3100 = vpop.permute.xlu0 %3099
        %3101 = vrot.lane.b32.xlu0 %v2814, 96
        %v3102 = vpop.permute.xlu0 %3101
        %3103 = vrot.lane.b32.xlu0 %v2817, 96
        %v3104 = vpop.permute.xlu0 %3103
        %3105 = vrot.lane.b32.xlu0 %v2819, 96
        %v3106 = vpop.permute.xlu0 %3105
        %3107 = vrot.lane.b32.xlu0 %v2822, 96
        %v3108 = vpop.permute.xlu0 %3107
        %3109 = vrot.lane.b32.xlu0 %v2824, 96
        %v3110 = vpop.permute.xlu0 %3109
        %v3119 = vrot.slane %v3096, 1
        %v3120 = vrot.slane %v3098, 1
        %v3121 = vrot.slane %v3100, 1
        %v3122 = vrot.slane %v3102, 1
        %v3123 = vrot.slane %v3104, 1
        %v3124 = vrot.slane %v3106, 1
        %v3125 = vrot.slane %v3108, 1
        %v3126 = vrot.slane %v3110, 1
        %v3127 = vsel %vm1198, %v3125, %v3126
        %v3128 = vsel %vm1198, %v3124, %v3125
        %v3129 = vsel %vm1198, %v3123, %v3124
        %v3130 = vsel %vm1198, %v3122, %v3123
        %v3131 = vsel %vm1198, %v3121, %v3122
        %v3132 = vsel %vm1198, %v3120, %v3121
        %v3133 = vsel %vm1198, %v3119, %v3120
        %v3134 = vsel %vm1198, %v3126, %v3119
        %v3135 = vld [vmem:[%s1345] sm:$0xff]
        %v3136 = vld [vmem:[%s1345 + $0x8] sm:$0xff]
        %v3137 = vld [vmem:[%s1345 + $0x10] sm:$0xff]
        %v3138 = vld [vmem:[%s1345 + $0x18] sm:$0xff]
        %v3139 = vld [vmem:[%s1345 + $0x20] sm:$0xff]
        %v3140 = vld [vmem:[%s1345 + $0x28] sm:$0xff]
        %v3141 = vld [vmem:[%s1345 + $0x30] sm:$0xff]
        %v3142 = vld [vmem:[%s1345 + $0x38] sm:$0xff]
        %v3143 = vmul.f32 %v3133, %v3135
        %v3144 = vmul.f32 %v3132, %v3136
        %v3145 = vmul.f32 %v3131, %v3137
        %v3146 = vmul.f32 %v3130, %v3138
        %v3147 = vmul.f32 %v3129, %v3139
        %v3148 = vmul.f32 %v3128, %v3140
        %v3149 = vmul.f32 %v3127, %v3141
        %v3150 = vmul.f32 %v3134, %v3142
        %v3151 = vadd.f32 %v3079, %v3143
        %v3152 = vadd.f32 %v3080, %v3144
        %v3153 = vadd.f32 %v3081, %v3145
        %v3154 = vadd.f32 %v3082, %v3146
        %v3155 = vadd.f32 %v3083, %v3147
        %v3156 = vadd.f32 %v3084, %v3148
        %v3157 = vadd.f32 %v3085, %v3149
        %v3158 = vadd.f32 %v3086, %v3150
        %3159 = vrot.lane.b32.xlu0 %v2807, 64
        %v3160 = vpop.permute.xlu0 %3159
        %3161 = vrot.lane.b32.xlu0 %v2809, 64
        %v3162 = vpop.permute.xlu0 %3161
        %3163 = vrot.lane.b32.xlu0 %v2812, 64
        %v3164 = vpop.permute.xlu0 %3163
        %3165 = vrot.lane.b32.xlu0 %v2814, 64
        %v3166 = vpop.permute.xlu0 %3165
        %3167 = vrot.lane.b32.xlu0 %v2817, 64
        %v3168 = vpop.permute.xlu0 %3167
        %3169 = vrot.lane.b32.xlu0 %v2819, 64
        %v3170 = vpop.permute.xlu0 %3169
        %3171 = vrot.lane.b32.xlu0 %v2822, 64
        %v3172 = vpop.permute.xlu0 %3171
        %3173 = vrot.lane.b32.xlu0 %v2824, 64
        %v3174 = vpop.permute.xlu0 %3173
        %v3183 = vrot.slane %v3160, 7
        %v3184 = vrot.slane %v3162, 7
        %v3185 = vrot.slane %v3164, 7
        %v3186 = vrot.slane %v3166, 7
        %v3187 = vrot.slane %v3168, 7
        %v3188 = vrot.slane %v3170, 7
        %v3189 = vrot.slane %v3172, 7
        %v3190 = vrot.slane %v3174, 7
        %v3191 = vsel %vm1076, %v3189, %v3190
        %v3192 = vsel %vm1076, %v3188, %v3189
        %v3193 = vsel %vm1076, %v3187, %v3188
        %v3194 = vsel %vm1076, %v3186, %v3187
        %v3195 = vsel %vm1076, %v3185, %v3186
        %v3196 = vsel %vm1076, %v3184, %v3185
        %v3197 = vsel %vm1076, %v3183, %v3184
        %v3198 = vsel %vm1076, %v3190, %v3183
        %v3199 = vld [vmem:[%s1410] sm:$0xff]
        %v3200 = vld [vmem:[%s1410 + $0x8] sm:$0xff]
        %v3201 = vld [vmem:[%s1410 + $0x10] sm:$0xff]
        %v3202 = vld [vmem:[%s1410 + $0x18] sm:$0xff]
        %v3203 = vld [vmem:[%s1410 + $0x20] sm:$0xff]
        %v3204 = vld [vmem:[%s1410 + $0x28] sm:$0xff]
        %v3205 = vld [vmem:[%s1410 + $0x30] sm:$0xff]
        %v3206 = vld [vmem:[%s1410 + $0x38] sm:$0xff]
        %v3207 = vmul.f32 %v3197, %v3199
        %v3208 = vmul.f32 %v3196, %v3200
        %v3209 = vmul.f32 %v3195, %v3201
        %v3210 = vmul.f32 %v3194, %v3202
        %v3211 = vmul.f32 %v3193, %v3203
        %v3212 = vmul.f32 %v3192, %v3204
        %v3213 = vmul.f32 %v3191, %v3205
        %v3214 = vmul.f32 %v3198, %v3206
        %v3215 = vadd.f32 %v3151, %v3207
        %v3216 = vadd.f32 %v3152, %v3208
        %v3217 = vadd.f32 %v3153, %v3209
        %v3218 = vadd.f32 %v3154, %v3210
        %v3219 = vadd.f32 %v3155, %v3211
        %v3220 = vadd.f32 %v3156, %v3212
        %v3221 = vadd.f32 %v3157, %v3213
        %v3222 = vadd.f32 %v3158, %v3214
        %3223 = vrot.lane.b32.xlu0 %v2807, 32
        %v3224 = vpop.permute.xlu0 %3223
        %3225 = vrot.lane.b32.xlu0 %v2809, 32
        %v3226 = vpop.permute.xlu0 %3225
        %3227 = vrot.lane.b32.xlu0 %v2812, 32
        %v3228 = vpop.permute.xlu0 %3227
        %3229 = vrot.lane.b32.xlu0 %v2814, 32
        %v3230 = vpop.permute.xlu0 %3229
        %3231 = vrot.lane.b32.xlu0 %v2817, 32
        %v3232 = vpop.permute.xlu0 %3231
        %3233 = vrot.lane.b32.xlu0 %v2819, 32
        %v3234 = vpop.permute.xlu0 %3233
        %3235 = vrot.lane.b32.xlu0 %v2822, 32
        %v3236 = vpop.permute.xlu0 %3235
        %3237 = vrot.lane.b32.xlu0 %v2824, 32
        %v3238 = vpop.permute.xlu0 %3237
        %v3247 = vld [vmem:[%s1459] sm:$0xff]
        %v3248 = vld [vmem:[%s1459 + $0x8] sm:$0xff]
        %v3249 = vld [vmem:[%s1459 + $0x10] sm:$0xff]
        %v3250 = vld [vmem:[%s1459 + $0x18] sm:$0xff]
        %v3251 = vld [vmem:[%s1459 + $0x20] sm:$0xff]
        %v3252 = vld [vmem:[%s1459 + $0x28] sm:$0xff]
        %v3253 = vld [vmem:[%s1459 + $0x30] sm:$0xff]
        %v3254 = vld [vmem:[%s1459 + $0x38] sm:$0xff]
        %v3255 = vmul.f32 %v3226, %v3247
        %v3256 = vmul.f32 %v3228, %v3248
        %v3257 = vmul.f32 %v3230, %v3249
        %v3258 = vmul.f32 %v3232, %v3250
        %v3259 = vmul.f32 %v3234, %v3251
        %v3260 = vmul.f32 %v3236, %v3252
        %v3261 = vmul.f32 %v3238, %v3253
        %v3262 = vmul.f32 %v3224, %v3254
        %v3263 = vadd.f32 %v3215, %v3255
        %v3264 = vadd.f32 %v3216, %v3256
        %v3265 = vadd.f32 %v3217, %v3257
        %v3266 = vadd.f32 %v3218, %v3258
        %v3267 = vadd.f32 %v3219, %v3259
        %v3268 = vadd.f32 %v3220, %v3260
        %v3269 = vadd.f32 %v3221, %v3261
        %v3270 = vadd.f32 %v3222, %v3262
        %v3271 = vrot.slane %v2836, 1
        %v3272 = vrot.slane %v2838, 1
        %v3273 = vrot.slane %v2841, 1
        %v3274 = vrot.slane %v2843, 1
        %v3275 = vrot.slane %v2846, 1
        %v3276 = vrot.slane %v2848, 1
        %v3277 = vrot.slane %v2851, 1
        %v3278 = vrot.slane %v2853, 1
        %v3279 = vsel %vm1198, %v3277, %v3278
        %v3280 = vsel %vm1198, %v3276, %v3277
        %v3281 = vsel %vm1198, %v3275, %v3276
        %v3282 = vsel %vm1198, %v3274, %v3275
        %v3283 = vsel %vm1198, %v3273, %v3274
        %v3284 = vsel %vm1198, %v3272, %v3273
        %v3285 = vsel %vm1198, %v3271, %v3272
        %v3286 = vsel %vm1198, %v3278, %v3271
        %v3287 = vld [vmem:[%s1500] sm:$0xff]
        %v3288 = vld [vmem:[%s1500 + $0x8] sm:$0xff]
        %v3289 = vld [vmem:[%s1500 + $0x10] sm:$0xff]
        %v3290 = vld [vmem:[%s1500 + $0x18] sm:$0xff]
        %v3291 = vld [vmem:[%s1500 + $0x20] sm:$0xff]
        %v3292 = vld [vmem:[%s1500 + $0x28] sm:$0xff]
        %v3293 = vld [vmem:[%s1500 + $0x30] sm:$0xff]
        %v3294 = vld [vmem:[%s1500 + $0x38] sm:$0xff]
        %v3295 = vmul.f32 %v3284, %v3287
        %v3296 = vmul.f32 %v3283, %v3288
        %v3297 = vmul.f32 %v3282, %v3289
        %v3298 = vmul.f32 %v3281, %v3290
        %v3299 = vmul.f32 %v3280, %v3291
        %v3300 = vmul.f32 %v3279, %v3292
        %v3301 = vmul.f32 %v3286, %v3293
        %v3302 = vmul.f32 %v3285, %v3294
        %v3303 = vadd.f32 %v3263, %v3295
        %v3304 = vadd.f32 %v3264, %v3296
        %v3305 = vadd.f32 %v3265, %v3297
        %v3306 = vadd.f32 %v3266, %v3298
        %v3307 = vadd.f32 %v3267, %v3299
        %v3308 = vadd.f32 %v3268, %v3300
        %v3309 = vadd.f32 %v3269, %v3301
        %v3310 = vadd.f32 %v3270, %v3302
        %v3311 = vld [vmem:[#allocation3] sm:$0xff]
        %v3312 = vld [vmem:[#allocation3 + $0x8] sm:$0xff]
        %v3313 = vld [vmem:[#allocation3 + $0x10] sm:$0xff]
        %v3314 = vld [vmem:[#allocation3 + $0x18] sm:$0xff]
        %v3315 = vld [vmem:[#allocation3 + $0x20] sm:$0xff]
        %v3316 = vld [vmem:[#allocation3 + $0x28] sm:$0xff]
        %v3317 = vld [vmem:[#allocation3 + $0x30] sm:$0xff]
        %v3318 = vld [vmem:[#allocation3 + $0x38] sm:$0xff]
        %v3319 = vadd.f32 %v3311, %v3303
        %v3320 = vadd.f32 %v3312, %v3304
        %v3321 = vadd.f32 %v3313, %v3305
        %v3322 = vadd.f32 %v3314, %v3306
        %v3323 = vadd.f32 %v3315, %v3307
        %v3324 = vadd.f32 %v3316, %v3308
        %v3325 = vadd.f32 %v3317, %v3309
        %v3326 = vadd.f32 %v3318, %v3310
        %vm3327 = vcmp.ge.f32.partialorder %v3319, 1.0
        %vm3328 = vcmp.ge.f32.partialorder %v3320, 1.0
        %vm3329 = vcmp.ge.f32.partialorder %v3321, 1.0
        %vm3330 = vcmp.ge.f32.partialorder %v3322, 1.0
        %vm3331 = vcmp.ge.f32.partialorder %v3323, 1.0
        %vm3332 = vcmp.ge.f32.partialorder %v3324, 1.0
        %vm3333 = vcmp.ge.f32.partialorder %v3325, 1.0
        %vm3334 = vcmp.ge.f32.partialorder %v3326, 1.0
        %v3335 = vsel %vm3327, 0.0, %v3319
        %v3336 = vsel %vm3328, 0.0, %v3320
        %v3337 = vsel %vm3329, 0.0, %v3321
        %v3338 = vsel %vm3330, 0.0, %v3322
        %v3339 = vsel %vm3331, 0.0, %v3323
        %v3340 = vsel %vm3332, 0.0, %v3324
        %v3341 = vsel %vm3333, 0.0, %v3325
        %v3342 = vsel %vm3334, 0.0, %v3326
        %3343 = vst.msk [vmem:[#allocation3] sm:$0xff] %vm810, %v3335
        %3344 = vst.msk [vmem:[#allocation3 + $0x8] sm:$0xff] %vm810, %v3336
        %3345 = vst.msk [vmem:[#allocation3 + $0x10] sm:$0xff] %vm810, %v3337
        %3346 = vst.msk [vmem:[#allocation3 + $0x18] sm:$0xff] %vm810, %v3338
        %3347 = vst.msk [vmem:[#allocation3 + $0x20] sm:$0xff] %vm810, %v3339
        %3348 = vst.msk [vmem:[#allocation3 + $0x28] sm:$0xff] %vm810, %v3340
        %3349 = vst.msk [vmem:[#allocation3 + $0x30] sm:$0xff] %vm810, %v3341
        %3350 = vst.msk [vmem:[#allocation3 + $0x38] sm:$0xff] %vm810, %v3342
        %v3351 = vsel %vm3327, 1, 0
        %v3352 = vsel %vm3328, 1, 0
        %v3353 = vsel %vm3329, 1, 0
        %v3354 = vsel %vm3330, 1, 0
        %v3355 = vsel %vm3331, 1, 0
        %v3356 = vsel %vm3332, 1, 0
        %v3357 = vsel %vm3333, 1, 0
        %v3358 = vsel %vm3334, 1, 0
        %v3359 = vcvt.s32.f32 %v3351
        %v3360 = vcvt.s32.f32 %v3352
        %v3361 = vcvt.s32.f32 %v3353
        %v3362 = vcvt.s32.f32 %v3354
        %v3363 = vcvt.s32.f32 %v3355
        %v3364 = vcvt.s32.f32 %v3356
        %v3365 = vcvt.s32.f32 %v3357
        %v3366 = vcvt.s32.f32 %v3358
        %v3367 = vpack.c.bf16 %v3360, %v3359
        %v3368 = vpack.c.bf16 %v3362, %v3361
        %v3369 = vpack.c.bf16 %v3364, %v3363
        %v3370 = vpack.c.bf16 %v3366, %v3365
        %v3371 = vld [vmem:[%s5] sm:$0xf]
        %v3372 = vld [vmem:[%s5 + $0x4] sm:$0xf]
        %v3373 = vld [vmem:[%s5 + $0x8] sm:$0xf]
        %v3374 = vld [vmem:[%s5 + $0xc] sm:$0xf]
        %v3379 = vunpack.c.l.b16 %v3371
        %v3380 = vunpack.c.l.b16 %v3372
        %v3381 = vunpack.c.l.b16 %v3373
        %v3382 = vunpack.c.l.b16 %v3374
        %v3383 = vpack.c.b16 %v3380, %v3379
        %v3384 = vpack.c.b16 %v3382, %v3381
        %v3388 = vsel %vm810, %v3367, 0
        %v3391 = vsel %vm810, %v3368, 0
        %v3394 = vsel %vm810, %v3369, 0
        %v3397 = vsel %vm810, %v3370, 0
        %3399 = vmatpush.bf16.msra.mxu0 0
        %3400 = vmatpush.bf16.msra.mxu0 0
        %3401 = vmatpush.bf16.msra.mxu0 0
        %3402 = vmatpush.bf16.msra.mxu0 0
        %3403 = vmatpush.bf16.msra.mxu0 0
        %3404 = vmatpush.bf16.msra.mxu0 0
        %3405 = vmatpush.bf16.msra.mxu0 %v3384
        %3406 = vmatpush.bf16.msra.mxu0 %v3383
        %3407 = vmatmul.bf16.gmra.mxu0 %v3388
        %v3408 = vpop.f32.mrf.mxu0
        %v3409 = vadd.f32 %v849, %v3408
        %v3410 = vpop.f32.mrf.mxu0
        %v3411 = vadd.f32 %v849, %v3410
        %3412 = vmatmul.bf16.gmra.mxu0 %v3391
        %v3413 = vpop.f32.mrf.mxu0
        %v3414 = vadd.f32 %v849, %v3413
        %v3415 = vpop.f32.mrf.mxu0
        %v3416 = vadd.f32 %v849, %v3415
        %3417 = vmatmul.bf16.gmra.mxu0 %v3394
        %v3418 = vpop.f32.mrf.mxu0
        %v3419 = vadd.f32 %v849, %v3418
        %v3420 = vpop.f32.mrf.mxu0
        %v3421 = vadd.f32 %v849, %v3420
        %3422 = vmatmul.bf16.gmra.mxu0 %v3397
        %v3423 = vpop.f32.mrf.mxu0
        %v3424 = vadd.f32 %v849, %v3423
        %v3425 = vpop.f32.mrf.mxu0
        %v3426 = vadd.f32 %v849, %v3425
        %3427 = vdwg.mxu0
        %v3428 = vld [vmem:[#allocation4] sm:$0xff]
        %v3429 = vld [vmem:[#allocation4 + $0x8] sm:$0xff]
        %v3430 = vld [vmem:[#allocation4 + $0x10] sm:$0xff]
        %v3431 = vld [vmem:[#allocation4 + $0x18] sm:$0xff]
        %v3432 = vld [vmem:[#allocation4 + $0x20] sm:$0xff]
        %v3433 = vld [vmem:[#allocation4 + $0x28] sm:$0xff]
        %v3434 = vld [vmem:[#allocation4 + $0x30] sm:$0xff]
        %v3435 = vld [vmem:[#allocation4 + $0x38] sm:$0xff]
        %v3436 = vadd.f32 %v3428, %v3409
        %v3437 = vadd.f32 %v3429, %v3411
        %v3438 = vadd.f32 %v3430, %v3414
        %v3439 = vadd.f32 %v3431, %v3416
        %v3440 = vadd.f32 %v3432, %v3419
        %v3441 = vadd.f32 %v3433, %v3421
        %v3442 = vadd.f32 %v3434, %v3424
        %v3443 = vadd.f32 %v3435, %v3426
        %vm3444 = vcmp.ge.f32.partialorder %v3436, 1.0
        %vm3445 = vcmp.ge.f32.partialorder %v3437, 1.0
        %vm3446 = vcmp.ge.f32.partialorder %v3438, 1.0
        %vm3447 = vcmp.ge.f32.partialorder %v3439, 1.0
        %vm3448 = vcmp.ge.f32.partialorder %v3440, 1.0
        %vm3449 = vcmp.ge.f32.partialorder %v3441, 1.0
        %vm3450 = vcmp.ge.f32.partialorder %v3442, 1.0
        %vm3451 = vcmp.ge.f32.partialorder %v3443, 1.0
        %v3452 = vsel %vm3444, 0.0, %v3436
        %v3453 = vsel %vm3445, 0.0, %v3437
        %v3454 = vsel %vm3446, 0.0, %v3438
        %v3455 = vsel %vm3447, 0.0, %v3439
        %v3456 = vsel %vm3448, 0.0, %v3440
        %v3457 = vsel %vm3449, 0.0, %v3441
        %v3458 = vsel %vm3450, 0.0, %v3442
        %v3459 = vsel %vm3451, 0.0, %v3443
        %3460 = vst [vmem:[#allocation4] sm:$0xff] %v3452
        %3461 = vst [vmem:[#allocation4 + $0x8] sm:$0xff] %v3453
        %3462 = vst [vmem:[#allocation4 + $0x10] sm:$0xff] %v3454
        %3463 = vst [vmem:[#allocation4 + $0x18] sm:$0xff] %v3455
        %3464 = vst [vmem:[#allocation4 + $0x20] sm:$0xff] %v3456
        %3465 = vst [vmem:[#allocation4 + $0x28] sm:$0xff] %v3457
        %3466 = vst [vmem:[#allocation4 + $0x30] sm:$0xff] %v3458
        %3467 = vst [vmem:[#allocation4 + $0x38] sm:$0xff] %v3459
        %s3468 = scalar_lea.vmem %s460, 64 [#allocation6]
        %v3469 = vld [vmem:[%s3468] sm:$0xf]
        %v3470 = vld [vmem:[%s3468 + $0x4] sm:$0xf]
        %v3471 = vld [vmem:[%s3468 + $0x8] sm:$0xf]
        %v3472 = vld [vmem:[%s3468 + $0xc] sm:$0xf]
        %v3473 = vld [vmem:[%s3468 + $0x10] sm:$0xf]
        %v3474 = vld [vmem:[%s3468 + $0x14] sm:$0xf]
        %v3475 = vld [vmem:[%s3468 + $0x18] sm:$0xf]
        %v3476 = vld [vmem:[%s3468 + $0x1c] sm:$0xf]
        %v3477 = vsel %vm3444, 1, 0
        %v3478 = vsel %vm3445, 1, 0
        %v3479 = vsel %vm3446, 1, 0
        %v3480 = vsel %vm3447, 1, 0
        %v3481 = vsel %vm3448, 1, 0
        %v3482 = vsel %vm3449, 1, 0
        %v3483 = vsel %vm3450, 1, 0
        %v3484 = vsel %vm3451, 1, 0
        %v3485 = vcvt.s32.f32 %v3477
        %v3486 = vcvt.s32.f32 %v3478
        %v3487 = vcvt.s32.f32 %v3479
        %v3488 = vcvt.s32.f32 %v3480
        %v3489 = vcvt.s32.f32 %v3481
        %v3490 = vcvt.s32.f32 %v3482
        %v3491 = vcvt.s32.f32 %v3483
        %v3492 = vcvt.s32.f32 %v3484
        %v3493 = vpack.c.bf16 %v3485, %v3485
        %v3494 = vpack.c.bf16 %v3486, %v3486
        %v3495 = vpack.c.bf16 %v3487, %v3487
        %v3496 = vpack.c.bf16 %v3488, %v3488
        %v3497 = vpack.c.bf16 %v3489, %v3489
        %v3498 = vpack.c.bf16 %v3490, %v3490
        %v3499 = vpack.c.bf16 %v3491, %v3491
        %v3500 = vpack.c.bf16 %v3492, %v3492
        %v3501 = vunpack.c.l.bf16 %v3469
        %v3502 = vunpack.c.l.bf16 %v3470
        %v3503 = vunpack.c.l.bf16 %v3471
        %v3504 = vunpack.c.l.bf16 %v3472
        %v3505 = vunpack.c.l.bf16 %v3473
        %v3506 = vunpack.c.l.bf16 %v3474
        %v3507 = vunpack.c.l.bf16 %v3475
        %v3508 = vunpack.c.l.bf16 %v3476
        %v3509 = vunpack.c.l.bf16 %v3493
        %v3510 = vunpack.c.l.bf16 %v3494
        %v3511 = vunpack.c.l.bf16 %v3495
        %v3512 = vunpack.c.l.bf16 %v3496
        %v3513 = vunpack.c.l.bf16 %v3497
        %v3514 = vunpack.c.l.bf16 %v3498
        %v3515 = vunpack.c.l.bf16 %v3499
        %v3516 = vunpack.c.l.bf16 %v3500
        %v3517 = vadd.f32 %v3501, %v3509
        %v3518 = vadd.f32 %v3502, %v3510
        %v3519 = vadd.f32 %v3503, %v3511
        %v3520 = vadd.f32 %v3504, %v3512
        %v3521 = vadd.f32 %v3505, %v3513
        %v3522 = vadd.f32 %v3506, %v3514
        %v3523 = vadd.f32 %v3507, %v3515
        %v3524 = vadd.f32 %v3508, %v3516
        %v3525 = vpack.c.bf16 %v3517, %v3517
        %v3526 = vpack.c.bf16 %v3518, %v3518
        %v3527 = vpack.c.bf16 %v3519, %v3519
        %v3528 = vpack.c.bf16 %v3520, %v3520
        %v3529 = vpack.c.bf16 %v3521, %v3521
        %v3530 = vpack.c.bf16 %v3522, %v3522
        %v3531 = vpack.c.bf16 %v3523, %v3523
        %v3532 = vpack.c.bf16 %v3524, %v3524
        %s3533 = scalar_lea.vmem %s490, 64 [#allocation7]
        %3534 = vst [vmem:[%s3533] sm:$0xf] %v3525
        %3535 = vst [vmem:[%s3533 + $0x4] sm:$0xf] %v3526
        %3536 = vst [vmem:[%s3533 + $0x8] sm:$0xf] %v3527
        %3537 = vst [vmem:[%s3533 + $0xc] sm:$0xf] %v3528
        %3538 = vst [vmem:[%s3533 + $0x10] sm:$0xf] %v3529
        %3539 = vst [vmem:[%s3533 + $0x14] sm:$0xf] %v3530
        %3540 = vst [vmem:[%s3533 + $0x18] sm:$0xf] %v3531
        %3541 = vst [vmem:[%s3533 + $0x1c] sm:$0xf] %v3532
        %v3542 = vld [vmem:[#allocation5 + $0xc0] sm:$0xff]
        %v3543 = vld [vmem:[#allocation5 + $0xc8] sm:$0xff]
        %v3544 = vld [vmem:[#allocation5 + $0xd0] sm:$0xff]
        %v3545 = vld [vmem:[#allocation5 + $0xd8] sm:$0xff]
        %v3546 = vld [vmem:[#allocation5 + $0xe0] sm:$0xff]
        %v3547 = vld [vmem:[#allocation5 + $0xe8] sm:$0xff]
        %v3548 = vld [vmem:[#allocation5 + $0xf0] sm:$0xff]
        %v3549 = vld [vmem:[#allocation5 + $0xf8] sm:$0xff]
        %v3550 = vld [vmem:[#allocation2] sm:$0xff]
        %v3551 = vld [vmem:[#allocation2 + $0x8] sm:$0xff]
        %v3552 = vld [vmem:[#allocation2 + $0x10] sm:$0xff]
        %v3553 = vld [vmem:[#allocation2 + $0x18] sm:$0xff]
        %v3554 = vld [vmem:[#allocation2 + $0x20] sm:$0xff]
        %v3555 = vld [vmem:[#allocation2 + $0x28] sm:$0xff]
        %v3556 = vld [vmem:[#allocation2 + $0x30] sm:$0xff]
        %v3557 = vld [vmem:[#allocation2 + $0x38] sm:$0xff]
        %v3558 = vadd.f32 %v3550, %v3542
        %v3559 = vadd.f32 %v3551, %v3543
        %v3560 = vadd.f32 %v3552, %v3544
        %v3561 = vadd.f32 %v3553, %v3545
        %v3562 = vadd.f32 %v3554, %v3546
        %v3563 = vadd.f32 %v3555, %v3547
        %v3564 = vadd.f32 %v3556, %v3548
        %v3565 = vadd.f32 %v3557, %v3549
        %vm3566 = vcmp.ge.f32.partialorder %v3558, 1.0
        %vm3567 = vcmp.ge.f32.partialorder %v3559, 1.0
        %vm3568 = vcmp.ge.f32.partialorder %v3560, 1.0
        %vm3569 = vcmp.ge.f32.partialorder %v3561, 1.0
        %vm3570 = vcmp.ge.f32.partialorder %v3562, 1.0
        %vm3571 = vcmp.ge.f32.partialorder %v3563, 1.0
        %vm3572 = vcmp.ge.f32.partialorder %v3564, 1.0
        %vm3573 = vcmp.ge.f32.partialorder %v3565, 1.0
        %v3574 = vsel %vm3566, 0.0, %v3558
        %v3575 = vsel %vm3567, 0.0, %v3559
        %v3576 = vsel %vm3568, 0.0, %v3560
        %v3577 = vsel %vm3569, 0.0, %v3561
        %v3578 = vsel %vm3570, 0.0, %v3562
        %v3579 = vsel %vm3571, 0.0, %v3563
        %v3580 = vsel %vm3572, 0.0, %v3564
        %v3581 = vsel %vm3573, 0.0, %v3565
        %3582 = vst.msk [vmem:[#allocation2] sm:$0xff] %vm810, %v3574
        %3583 = vst.msk [vmem:[#allocation2 + $0x8] sm:$0xff] %vm810, %v3575
        %3584 = vst.msk [vmem:[#allocation2 + $0x10] sm:$0xff] %vm810, %v3576
        %3585 = vst.msk [vmem:[#allocation2 + $0x18] sm:$0xff] %vm810, %v3577
        %3586 = vst.msk [vmem:[#allocation2 + $0x20] sm:$0xff] %vm810, %v3578
        %3587 = vst.msk [vmem:[#allocation2 + $0x28] sm:$0xff] %vm810, %v3579
        %3588 = vst.msk [vmem:[#allocation2 + $0x30] sm:$0xff] %vm810, %v3580
        %3589 = vst.msk [vmem:[#allocation2 + $0x38] sm:$0xff] %vm810, %v3581
        %v3590 = vsel %vm3566, 1, 0
        %v3591 = vsel %vm3567, 1, 0
        %v3592 = vsel %vm3568, 1, 0
        %v3593 = vsel %vm3569, 1, 0
        %v3594 = vsel %vm3570, 1, 0
        %v3595 = vsel %vm3571, 1, 0
        %v3596 = vsel %vm3572, 1, 0
        %v3597 = vsel %vm3573, 1, 0
        %v3598 = vcvt.s32.f32 %v3590
        %v3599 = vcvt.s32.f32 %v3591
        %v3600 = vcvt.s32.f32 %v3592
        %v3601 = vcvt.s32.f32 %v3593
        %v3602 = vcvt.s32.f32 %v3594
        %v3603 = vcvt.s32.f32 %v3595
        %v3604 = vcvt.s32.f32 %v3596
        %v3605 = vcvt.s32.f32 %v3597
        %v3606 = vpack.c.bf16 %v3599, %v3598
        %v3607 = vpack.c.bf16 %v3601, %v3600
        %v3608 = vpack.c.bf16 %v3603, %v3602
        %v3609 = vpack.c.bf16 %v3605, %v3604
        %v3610 = vld [vmem:[%s3] sm:$0xff]
        %v3611 = vld [vmem:[%s3 + $0x8] sm:$0xf]
        %v3612 = vld [vmem:[%s3 + $0xc] sm:$0xff]
        %v3613 = vld [vmem:[%s3 + $0x14] sm:$0xf]
        %v3614 = vld [vmem:[%s3 + $0x18] sm:$0xff]
        %v3615 = vld [vmem:[%s3 + $0x20] sm:$0xf]
        %v3616 = vld [vmem:[%s3 + $0x24] sm:$0xff]
        %v3617 = vld [vmem:[%s3 + $0x2c] sm:$0xf]
        %v3626 = vunpack.c.l.b16 %v3610
        %v3627 = vunpack.c.h.b16 %v3610
        %v3628 = vunpack.c.l.b16 %v3611
        %v3629 = vunpack.c.l.b16 %v3612
        %v3630 = vunpack.c.h.b16 %v3612
        %v3631 = vunpack.c.l.b16 %v3613
        %v3632 = vunpack.c.l.b16 %v3614
        %v3633 = vunpack.c.h.b16 %v3614
        %v3634 = vunpack.c.l.b16 %v3615
        %v3635 = vunpack.c.l.b16 %v3616
        %v3636 = vunpack.c.h.b16 %v3616
        %v3637 = vunpack.c.l.b16 %v3617
        %v3638 = vpack.c.b16 %v3629, %v3626
        %v3639 = vpack.c.b16 %v3630, %v3627
        %v3640 = vpack.c.b16 %v3631, %v3628
        %v3641 = vpack.c.b16 %v3635, %v3632
        %v3642 = vpack.c.b16 %v3636, %v3633
        %v3643 = vpack.c.b16 %v3637, %v3634
        %v3651 = vsel %vm810, %v3606, 0
        %v3654 = vsel %vm810, %v3607, 0
        %v3657 = vsel %vm810, %v3608, 0
        %v3660 = vsel %vm810, %v3609, 0
        %3662 = vmatpush.bf16.msra.mxu0 0
        %3663 = vmatpush.bf16.msra.mxu0 0
        %3664 = vmatpush.bf16.msra.mxu0 0
        %3665 = vmatpush.bf16.msra.mxu0 0
        %3666 = vmatpush.bf16.msra.mxu0 0
        %3667 = vmatpush.bf16.msra.mxu0 0
        %3668 = vmatpush.bf16.msra.mxu0 %v3641
        %3669 = vmatpush.bf16.msra.mxu0 %v3638
        %3670 = vmatmul.bf16.gmra.mxu0 %v3651
        %v3671 = vpop.f32.mrf.mxu0
        %v3672 = vadd.f32 0.0, %v3671
        %v3673 = vpop.f32.mrf.mxu0
        %v3674 = vadd.f32 0.0, %v3673
        %3675 = vmatmul.bf16.gmra.mxu0 %v3654
        %v3676 = vpop.f32.mrf.mxu0
        %v3677 = vadd.f32 0.0, %v3676
        %v3678 = vpop.f32.mrf.mxu0
        %v3679 = vadd.f32 0.0, %v3678
        %3680 = vmatmul.bf16.gmra.mxu0 %v3657
        %v3681 = vpop.f32.mrf.mxu0
        %v3682 = vadd.f32 0.0, %v3681
        %v3683 = vpop.f32.mrf.mxu0
        %v3684 = vadd.f32 0.0, %v3683
        %3685 = vmatmul.bf16.gmra.mxu0 %v3660
        %v3686 = vpop.f32.mrf.mxu0
        %v3687 = vadd.f32 0.0, %v3686
        %v3688 = vpop.f32.mrf.mxu0
        %v3689 = vadd.f32 0.0, %v3688
        %3690 = vdwg.mxu0
        %3691 = vmatpush.bf16.msra.mxu0 0
        %3692 = vmatpush.bf16.msra.mxu0 0
        %3693 = vmatpush.bf16.msra.mxu0 0
        %3694 = vmatpush.bf16.msra.mxu0 0
        %3695 = vmatpush.bf16.msra.mxu0 0
        %3696 = vmatpush.bf16.msra.mxu0 0
        %3697 = vmatpush.bf16.msra.mxu0 %v3642
        %3698 = vmatpush.bf16.msra.mxu0 %v3639
        %3699 = vmatmul.bf16.gmra.mxu0 %v3651
        %v3700 = vpop.f32.mrf.mxu0
        %v3701 = vadd.f32 0.0, %v3700
        %v3702 = vpop.f32.mrf.mxu0
        %v3703 = vadd.f32 0.0, %v3702
        %3704 = vmatmul.bf16.gmra.mxu0 %v3654
        %v3705 = vpop.f32.mrf.mxu0
        %v3706 = vadd.f32 0.0, %v3705
        %v3707 = vpop.f32.mrf.mxu0
        %v3708 = vadd.f32 0.0, %v3707
        %3709 = vmatmul.bf16.gmra.mxu0 %v3657
        %v3710 = vpop.f32.mrf.mxu0
        %v3711 = vadd.f32 0.0, %v3710
        %v3712 = vpop.f32.mrf.mxu0
        %v3713 = vadd.f32 0.0, %v3712
        %3714 = vmatmul.bf16.gmra.mxu0 %v3660
        %v3715 = vpop.f32.mrf.mxu0
        %v3716 = vadd.f32 0.0, %v3715
        %v3717 = vpop.f32.mrf.mxu0
        %v3718 = vadd.f32 0.0, %v3717
        %3719 = vdwg.mxu0
        %3720 = vmatpush.bf16.msra.mxu0 0
        %3721 = vmatpush.bf16.msra.mxu0 0
        %3722 = vmatpush.bf16.msra.mxu0 0
        %3723 = vmatpush.bf16.msra.mxu0 0
        %3724 = vmatpush.bf16.msra.mxu0 0
        %3725 = vmatpush.bf16.msra.mxu0 0
        %3726 = vmatpush.bf16.msra.mxu0 %v3643
        %3727 = vmatpush.bf16.msra.mxu0 %v3640
        %3728 = vmatmul.bf16.gmra.mxu0 %v3651
        %v3729 = vpop.f32.mrf.mxu0
        %v3730 = vadd.f32 0.0, %v3729
        %v3731 = vpop.f32.mrf.mxu0
        %v3732 = vadd.f32 0.0, %v3731
        %3733 = vmatmul.bf16.gmra.mxu0 %v3654
        %v3734 = vpop.f32.mrf.mxu0
        %v3735 = vadd.f32 0.0, %v3734
        %v3736 = vpop.f32.mrf.mxu0
        %v3737 = vadd.f32 0.0, %v3736
        %3738 = vmatmul.bf16.gmra.mxu0 %v3657
        %v3739 = vpop.f32.mrf.mxu0
        %v3740 = vadd.f32 0.0, %v3739
        %v3741 = vpop.f32.mrf.mxu0
        %v3742 = vadd.f32 0.0, %v3741
        %3743 = vmatmul.bf16.gmra.mxu0 %v3660
        %v3744 = vpop.f32.mrf.mxu0
        %v3745 = vadd.f32 0.0, %v3744
        %v3746 = vpop.f32.mrf.mxu0
        %v3747 = vadd.f32 0.0, %v3746
        %3748 = vdwg.mxu0
        %v3749 = vadd.f32 %v3701, %v845
        %v3750 = vadd.f32 %v3703, %v845
        %v3751 = vadd.f32 %v3706, %v845
        %v3752 = vadd.f32 %v3708, %v845
        %v3753 = vadd.f32 %v3711, %v845
        %v3754 = vadd.f32 %v3713, %v845
        %v3755 = vadd.f32 %v3716, %v845
        %v3756 = vadd.f32 %v3718, %v845
        %v3757 = vrot.slane %v3672, 7
        %v3758 = vrot.slane %v3674, 7
        %v3759 = vrot.slane %v3677, 7
        %v3760 = vrot.slane %v3679, 7
        %v3761 = vrot.slane %v3682, 7
        %v3762 = vrot.slane %v3684, 7
        %v3763 = vrot.slane %v3687, 7
        %v3764 = vrot.slane %v3689, 7
        %v3765 = vsel %vm1076, %v3763, %v3764
        %v3766 = vsel %vm1076, %v3762, %v3763
        %v3767 = vsel %vm1076, %v3761, %v3762
        %v3768 = vsel %vm1076, %v3760, %v3761
        %v3769 = vsel %vm1076, %v3759, %v3760
        %v3770 = vsel %vm1076, %v3758, %v3759
        %v3771 = vsel %vm1076, %v3757, %v3758
        %v3772 = vsel %vm1076, %v3764, %v3757
        %v3773 = vld [vmem:[%s7] sm:$0xff]
        %v3774 = vld [vmem:[%s7 + $0x8] sm:$0xff]
        %v3775 = vld [vmem:[%s7 + $0x10] sm:$0xff]
        %v3776 = vld [vmem:[%s7 + $0x18] sm:$0xff]
        %v3777 = vld [vmem:[%s7 + $0x20] sm:$0xff]
        %v3778 = vld [vmem:[%s7 + $0x28] sm:$0xff]
        %v3779 = vld [vmem:[%s7 + $0x30] sm:$0xff]
        %v3780 = vld [vmem:[%s7 + $0x38] sm:$0xff]
        %v3781 = vmul.f32 %v3765, %v3773
        %v3782 = vmul.f32 %v3772, %v3774
        %v3783 = vmul.f32 %v3771, %v3775
        %v3784 = vmul.f32 %v3770, %v3776
        %v3785 = vmul.f32 %v3769, %v3777
        %v3786 = vmul.f32 %v3768, %v3778
        %v3787 = vmul.f32 %v3767, %v3779
        %v3788 = vmul.f32 %v3766, %v3780
        %v3789 = vadd.f32 %v3749, %v3781
        %v3790 = vadd.f32 %v3750, %v3782
        %v3791 = vadd.f32 %v3751, %v3783
        %v3792 = vadd.f32 %v3752, %v3784
        %v3793 = vadd.f32 %v3753, %v3785
        %v3794 = vadd.f32 %v3754, %v3786
        %v3795 = vadd.f32 %v3755, %v3787
        %v3796 = vadd.f32 %v3756, %v3788
        %3805 = vrot.lane.b32.xlu0 %v3672, 96
        %v3806 = vpop.permute.xlu0 %3805
        %3807 = vrot.lane.b32.xlu0 %v3674, 96
        %v3808 = vpop.permute.xlu0 %3807
        %3809 = vrot.lane.b32.xlu0 %v3677, 96
        %v3810 = vpop.permute.xlu0 %3809
        %3811 = vrot.lane.b32.xlu0 %v3679, 96
        %v3812 = vpop.permute.xlu0 %3811
        %3813 = vrot.lane.b32.xlu0 %v3682, 96
        %v3814 = vpop.permute.xlu0 %3813
        %3815 = vrot.lane.b32.xlu0 %v3684, 96
        %v3816 = vpop.permute.xlu0 %3815
        %3817 = vrot.lane.b32.xlu0 %v3687, 96
        %v3818 = vpop.permute.xlu0 %3817
        %3819 = vrot.lane.b32.xlu0 %v3689, 96
        %v3820 = vpop.permute.xlu0 %3819
        %v3829 = vld [vmem:[%s1141] sm:$0xff]
        %v3830 = vld [vmem:[%s1141 + $0x8] sm:$0xff]
        %v3831 = vld [vmem:[%s1141 + $0x10] sm:$0xff]
        %v3832 = vld [vmem:[%s1141 + $0x18] sm:$0xff]
        %v3833 = vld [vmem:[%s1141 + $0x20] sm:$0xff]
        %v3834 = vld [vmem:[%s1141 + $0x28] sm:$0xff]
        %v3835 = vld [vmem:[%s1141 + $0x30] sm:$0xff]
        %v3836 = vld [vmem:[%s1141 + $0x38] sm:$0xff]
        %v3837 = vmul.f32 %v3820, %v3829
        %v3838 = vmul.f32 %v3806, %v3830
        %v3839 = vmul.f32 %v3808, %v3831
        %v3840 = vmul.f32 %v3810, %v3832
        %v3841 = vmul.f32 %v3812, %v3833
        %v3842 = vmul.f32 %v3814, %v3834
        %v3843 = vmul.f32 %v3816, %v3835
        %v3844 = vmul.f32 %v3818, %v3836
        %v3845 = vadd.f32 %v3789, %v3837
        %v3846 = vadd.f32 %v3790, %v3838
        %v3847 = vadd.f32 %v3791, %v3839
        %v3848 = vadd.f32 %v3792, %v3840
        %v3849 = vadd.f32 %v3793, %v3841
        %v3850 = vadd.f32 %v3794, %v3842
        %v3851 = vadd.f32 %v3795, %v3843
        %v3852 = vadd.f32 %v3796, %v3844
        %3853 = vrot.lane.b32.xlu0 %v3672, 64
        %v3854 = vpop.permute.xlu0 %3853
        %3855 = vrot.lane.b32.xlu0 %v3674, 64
        %v3856 = vpop.permute.xlu0 %3855
        %3857 = vrot.lane.b32.xlu0 %v3677, 64
        %v3858 = vpop.permute.xlu0 %3857
        %3859 = vrot.lane.b32.xlu0 %v3679, 64
        %v3860 = vpop.permute.xlu0 %3859
        %3861 = vrot.lane.b32.xlu0 %v3682, 64
        %v3862 = vpop.permute.xlu0 %3861
        %3863 = vrot.lane.b32.xlu0 %v3684, 64
        %v3864 = vpop.permute.xlu0 %3863
        %3865 = vrot.lane.b32.xlu0 %v3687, 64
        %v3866 = vpop.permute.xlu0 %3865
        %3867 = vrot.lane.b32.xlu0 %v3689, 64
        %v3868 = vpop.permute.xlu0 %3867
        %v3877 = vrot.slane %v3854, 1
        %v3878 = vrot.slane %v3856, 1
        %v3879 = vrot.slane %v3858, 1
        %v3880 = vrot.slane %v3860, 1
        %v3881 = vrot.slane %v3862, 1
        %v3882 = vrot.slane %v3864, 1
        %v3883 = vrot.slane %v3866, 1
        %v3884 = vrot.slane %v3868, 1
        %v3885 = vsel %vm1198, %v3883, %v3884
        %v3886 = vsel %vm1198, %v3882, %v3883
        %v3887 = vsel %vm1198, %v3881, %v3882
        %v3888 = vsel %vm1198, %v3880, %v3881
        %v3889 = vsel %vm1198, %v3879, %v3880
        %v3890 = vsel %vm1198, %v3878, %v3879
        %v3891 = vsel %vm1198, %v3877, %v3878
        %v3892 = vsel %vm1198, %v3884, %v3877
        %v3893 = vld [vmem:[%s1207] sm:$0xff]
        %v3894 = vld [vmem:[%s1207 + $0x8] sm:$0xff]
        %v3895 = vld [vmem:[%s1207 + $0x10] sm:$0xff]
        %v3896 = vld [vmem:[%s1207 + $0x18] sm:$0xff]
        %v3897 = vld [vmem:[%s1207 + $0x20] sm:$0xff]
        %v3898 = vld [vmem:[%s1207 + $0x28] sm:$0xff]
        %v3899 = vld [vmem:[%s1207 + $0x30] sm:$0xff]
        %v3900 = vld [vmem:[%s1207 + $0x38] sm:$0xff]
        %v3901 = vmul.f32 %v3892, %v3893
        %v3902 = vmul.f32 %v3891, %v3894
        %v3903 = vmul.f32 %v3890, %v3895
        %v3904 = vmul.f32 %v3889, %v3896
        %v3905 = vmul.f32 %v3888, %v3897
        %v3906 = vmul.f32 %v3887, %v3898
        %v3907 = vmul.f32 %v3886, %v3899
        %v3908 = vmul.f32 %v3885, %v3900
        %v3909 = vadd.f32 %v3845, %v3901
        %v3910 = vadd.f32 %v3846, %v3902
        %v3911 = vadd.f32 %v3847, %v3903
        %v3912 = vadd.f32 %v3848, %v3904
        %v3913 = vadd.f32 %v3849, %v3905
        %v3914 = vadd.f32 %v3850, %v3906
        %v3915 = vadd.f32 %v3851, %v3907
        %v3916 = vadd.f32 %v3852, %v3908
        %3917 = vrot.lane.b32.xlu0 %v3672, 32
        %v3918 = vpop.permute.xlu0 %3917
        %3919 = vrot.lane.b32.xlu0 %v3674, 32
        %v3920 = vpop.permute.xlu0 %3919
        %3921 = vrot.lane.b32.xlu0 %v3677, 32
        %v3922 = vpop.permute.xlu0 %3921
        %3923 = vrot.lane.b32.xlu0 %v3679, 32
        %v3924 = vpop.permute.xlu0 %3923
        %3925 = vrot.lane.b32.xlu0 %v3682, 32
        %v3926 = vpop.permute.xlu0 %3925
        %3927 = vrot.lane.b32.xlu0 %v3684, 32
        %v3928 = vpop.permute.xlu0 %3927
        %3929 = vrot.lane.b32.xlu0 %v3687, 32
        %v3930 = vpop.permute.xlu0 %3929
        %3931 = vrot.lane.b32.xlu0 %v3689, 32
        %v3932 = vpop.permute.xlu0 %3931
        %v3941 = vrot.slane %v3918, 7
        %v3942 = vrot.slane %v3920, 7
        %v3943 = vrot.slane %v3922, 7
        %v3944 = vrot.slane %v3924, 7
        %v3945 = vrot.slane %v3926, 7
        %v3946 = vrot.slane %v3928, 7
        %v3947 = vrot.slane %v3930, 7
        %v3948 = vrot.slane %v3932, 7
        %v3949 = vsel %vm1076, %v3947, %v3948
        %v3950 = vsel %vm1076, %v3946, %v3947
        %v3951 = vsel %vm1076, %v3945, %v3946
        %v3952 = vsel %vm1076, %v3944, %v3945
        %v3953 = vsel %vm1076, %v3943, %v3944
        %v3954 = vsel %vm1076, %v3942, %v3943
        %v3955 = vsel %vm1076, %v3941, %v3942
        %v3956 = vsel %vm1076, %v3948, %v3941
        %v3957 = vld [vmem:[%s1272] sm:$0xff]
        %v3958 = vld [vmem:[%s1272 + $0x8] sm:$0xff]
        %v3959 = vld [vmem:[%s1272 + $0x10] sm:$0xff]
        %v3960 = vld [vmem:[%s1272 + $0x18] sm:$0xff]
        %v3961 = vld [vmem:[%s1272 + $0x20] sm:$0xff]
        %v3962 = vld [vmem:[%s1272 + $0x28] sm:$0xff]
        %v3963 = vld [vmem:[%s1272 + $0x30] sm:$0xff]
        %v3964 = vld [vmem:[%s1272 + $0x38] sm:$0xff]
        %v3965 = vmul.f32 %v3956, %v3957
        %v3966 = vmul.f32 %v3955, %v3958
        %v3967 = vmul.f32 %v3954, %v3959
        %v3968 = vmul.f32 %v3953, %v3960
        %v3969 = vmul.f32 %v3952, %v3961
        %v3970 = vmul.f32 %v3951, %v3962
        %v3971 = vmul.f32 %v3950, %v3963
        %v3972 = vmul.f32 %v3949, %v3964
        %v3973 = vadd.f32 %v3909, %v3965
        %v3974 = vadd.f32 %v3910, %v3966
        %v3975 = vadd.f32 %v3911, %v3967
        %v3976 = vadd.f32 %v3912, %v3968
        %v3977 = vadd.f32 %v3913, %v3969
        %v3978 = vadd.f32 %v3914, %v3970
        %v3979 = vadd.f32 %v3915, %v3971
        %v3980 = vadd.f32 %v3916, %v3972
        %3989 = vrot.lane.b32.xlu0 %v3701, 96
        %v3990 = vpop.permute.xlu0 %3989
        %3991 = vrot.lane.b32.xlu0 %v3703, 96
        %v3992 = vpop.permute.xlu0 %3991
        %3993 = vrot.lane.b32.xlu0 %v3706, 96
        %v3994 = vpop.permute.xlu0 %3993
        %3995 = vrot.lane.b32.xlu0 %v3708, 96
        %v3996 = vpop.permute.xlu0 %3995
        %3997 = vrot.lane.b32.xlu0 %v3711, 96
        %v3998 = vpop.permute.xlu0 %3997
        %3999 = vrot.lane.b32.xlu0 %v3713, 96
        %v4000 = vpop.permute.xlu0 %3999
        %4001 = vrot.lane.b32.xlu0 %v3716, 96
        %v4002 = vpop.permute.xlu0 %4001
        %4003 = vrot.lane.b32.xlu0 %v3718, 96
        %v4004 = vpop.permute.xlu0 %4003
        %v4013 = vrot.slane %v3990, 1
        %v4014 = vrot.slane %v3992, 1
        %v4015 = vrot.slane %v3994, 1
        %v4016 = vrot.slane %v3996, 1
        %v4017 = vrot.slane %v3998, 1
        %v4018 = vrot.slane %v4000, 1
        %v4019 = vrot.slane %v4002, 1
        %v4020 = vrot.slane %v4004, 1
        %v4021 = vsel %vm1198, %v4019, %v4020
        %v4022 = vsel %vm1198, %v4018, %v4019
        %v4023 = vsel %vm1198, %v4017, %v4018
        %v4024 = vsel %vm1198, %v4016, %v4017
        %v4025 = vsel %vm1198, %v4015, %v4016
        %v4026 = vsel %vm1198, %v4014, %v4015
        %v4027 = vsel %vm1198, %v4013, %v4014
        %v4028 = vsel %vm1198, %v4020, %v4013
        %v4029 = vld [vmem:[%s1345] sm:$0xff]
        %v4030 = vld [vmem:[%s1345 + $0x8] sm:$0xff]
        %v4031 = vld [vmem:[%s1345 + $0x10] sm:$0xff]
        %v4032 = vld [vmem:[%s1345 + $0x18] sm:$0xff]
        %v4033 = vld [vmem:[%s1345 + $0x20] sm:$0xff]
        %v4034 = vld [vmem:[%s1345 + $0x28] sm:$0xff]
        %v4035 = vld [vmem:[%s1345 + $0x30] sm:$0xff]
        %v4036 = vld [vmem:[%s1345 + $0x38] sm:$0xff]
        %v4037 = vmul.f32 %v4027, %v4029
        %v4038 = vmul.f32 %v4026, %v4030
        %v4039 = vmul.f32 %v4025, %v4031
        %v4040 = vmul.f32 %v4024, %v4032
        %v4041 = vmul.f32 %v4023, %v4033
        %v4042 = vmul.f32 %v4022, %v4034
        %v4043 = vmul.f32 %v4021, %v4035
        %v4044 = vmul.f32 %v4028, %v4036
        %v4045 = vadd.f32 %v3973, %v4037
        %v4046 = vadd.f32 %v3974, %v4038
        %v4047 = vadd.f32 %v3975, %v4039
        %v4048 = vadd.f32 %v3976, %v4040
        %v4049 = vadd.f32 %v3977, %v4041
        %v4050 = vadd.f32 %v3978, %v4042
        %v4051 = vadd.f32 %v3979, %v4043
        %v4052 = vadd.f32 %v3980, %v4044
        %4053 = vrot.lane.b32.xlu0 %v3701, 64
        %v4054 = vpop.permute.xlu0 %4053
        %4055 = vrot.lane.b32.xlu0 %v3703, 64
        %v4056 = vpop.permute.xlu0 %4055
        %4057 = vrot.lane.b32.xlu0 %v3706, 64
        %v4058 = vpop.permute.xlu0 %4057
        %4059 = vrot.lane.b32.xlu0 %v3708, 64
        %v4060 = vpop.permute.xlu0 %4059
        %4061 = vrot.lane.b32.xlu0 %v3711, 64
        %v4062 = vpop.permute.xlu0 %4061
        %4063 = vrot.lane.b32.xlu0 %v3713, 64
        %v4064 = vpop.permute.xlu0 %4063
        %4065 = vrot.lane.b32.xlu0 %v3716, 64
        %v4066 = vpop.permute.xlu0 %4065
        %4067 = vrot.lane.b32.xlu0 %v3718, 64
        %v4068 = vpop.permute.xlu0 %4067
        %v4077 = vrot.slane %v4054, 7
        %v4078 = vrot.slane %v4056, 7
        %v4079 = vrot.slane %v4058, 7
        %v4080 = vrot.slane %v4060, 7
        %v4081 = vrot.slane %v4062, 7
        %v4082 = vrot.slane %v4064, 7
        %v4083 = vrot.slane %v4066, 7
        %v4084 = vrot.slane %v4068, 7
        %v4085 = vsel %vm1076, %v4083, %v4084
        %v4086 = vsel %vm1076, %v4082, %v4083
        %v4087 = vsel %vm1076, %v4081, %v4082
        %v4088 = vsel %vm1076, %v4080, %v4081
        %v4089 = vsel %vm1076, %v4079, %v4080
        %v4090 = vsel %vm1076, %v4078, %v4079
        %v4091 = vsel %vm1076, %v4077, %v4078
        %v4092 = vsel %vm1076, %v4084, %v4077
        %v4093 = vld [vmem:[%s1410] sm:$0xff]
        %v4094 = vld [vmem:[%s1410 + $0x8] sm:$0xff]
        %v4095 = vld [vmem:[%s1410 + $0x10] sm:$0xff]
        %v4096 = vld [vmem:[%s1410 + $0x18] sm:$0xff]
        %v4097 = vld [vmem:[%s1410 + $0x20] sm:$0xff]
        %v4098 = vld [vmem:[%s1410 + $0x28] sm:$0xff]
        %v4099 = vld [vmem:[%s1410 + $0x30] sm:$0xff]
        %v4100 = vld [vmem:[%s1410 + $0x38] sm:$0xff]
        %v4101 = vmul.f32 %v4091, %v4093
        %v4102 = vmul.f32 %v4090, %v4094
        %v4103 = vmul.f32 %v4089, %v4095
        %v4104 = vmul.f32 %v4088, %v4096
        %v4105 = vmul.f32 %v4087, %v4097
        %v4106 = vmul.f32 %v4086, %v4098
        %v4107 = vmul.f32 %v4085, %v4099
        %v4108 = vmul.f32 %v4092, %v4100
        %v4109 = vadd.f32 %v4045, %v4101
        %v4110 = vadd.f32 %v4046, %v4102
        %v4111 = vadd.f32 %v4047, %v4103
        %v4112 = vadd.f32 %v4048, %v4104
        %v4113 = vadd.f32 %v4049, %v4105
        %v4114 = vadd.f32 %v4050, %v4106
        %v4115 = vadd.f32 %v4051, %v4107
        %v4116 = vadd.f32 %v4052, %v4108
        %4117 = vrot.lane.b32.xlu0 %v3701, 32
        %v4118 = vpop.permute.xlu0 %4117
        %4119 = vrot.lane.b32.xlu0 %v3703, 32
        %v4120 = vpop.permute.xlu0 %4119
        %4121 = vrot.lane.b32.xlu0 %v3706, 32
        %v4122 = vpop.permute.xlu0 %4121
        %4123 = vrot.lane.b32.xlu0 %v3708, 32
        %v4124 = vpop.permute.xlu0 %4123
        %4125 = vrot.lane.b32.xlu0 %v3711, 32
        %v4126 = vpop.permute.xlu0 %4125
        %4127 = vrot.lane.b32.xlu0 %v3713, 32
        %v4128 = vpop.permute.xlu0 %4127
        %4129 = vrot.lane.b32.xlu0 %v3716, 32
        %v4130 = vpop.permute.xlu0 %4129
        %4131 = vrot.lane.b32.xlu0 %v3718, 32
        %v4132 = vpop.permute.xlu0 %4131
        %v4141 = vld [vmem:[%s1459] sm:$0xff]
        %v4142 = vld [vmem:[%s1459 + $0x8] sm:$0xff]
        %v4143 = vld [vmem:[%s1459 + $0x10] sm:$0xff]
        %v4144 = vld [vmem:[%s1459 + $0x18] sm:$0xff]
        %v4145 = vld [vmem:[%s1459 + $0x20] sm:$0xff]
        %v4146 = vld [vmem:[%s1459 + $0x28] sm:$0xff]
        %v4147 = vld [vmem:[%s1459 + $0x30] sm:$0xff]
        %v4148 = vld [vmem:[%s1459 + $0x38] sm:$0xff]
        %v4149 = vmul.f32 %v4120, %v4141
        %v4150 = vmul.f32 %v4122, %v4142
        %v4151 = vmul.f32 %v4124, %v4143
        %v4152 = vmul.f32 %v4126, %v4144
        %v4153 = vmul.f32 %v4128, %v4145
        %v4154 = vmul.f32 %v4130, %v4146
        %v4155 = vmul.f32 %v4132, %v4147
        %v4156 = vmul.f32 %v4118, %v4148
        %v4157 = vadd.f32 %v4109, %v4149
        %v4158 = vadd.f32 %v4110, %v4150
        %v4159 = vadd.f32 %v4111, %v4151
        %v4160 = vadd.f32 %v4112, %v4152
        %v4161 = vadd.f32 %v4113, %v4153
        %v4162 = vadd.f32 %v4114, %v4154
        %v4163 = vadd.f32 %v4115, %v4155
        %v4164 = vadd.f32 %v4116, %v4156
        %v4165 = vrot.slane %v3730, 1
        %v4166 = vrot.slane %v3732, 1
        %v4167 = vrot.slane %v3735, 1
        %v4168 = vrot.slane %v3737, 1
        %v4169 = vrot.slane %v3740, 1
        %v4170 = vrot.slane %v3742, 1
        %v4171 = vrot.slane %v3745, 1
        %v4172 = vrot.slane %v3747, 1
        %v4173 = vsel %vm1198, %v4171, %v4172
        %v4174 = vsel %vm1198, %v4170, %v4171
        %v4175 = vsel %vm1198, %v4169, %v4170
        %v4176 = vsel %vm1198, %v4168, %v4169
        %v4177 = vsel %vm1198, %v4167, %v4168
        %v4178 = vsel %vm1198, %v4166, %v4167
        %v4179 = vsel %vm1198, %v4165, %v4166
        %v4180 = vsel %vm1198, %v4172, %v4165
        %v4181 = vld [vmem:[%s1500] sm:$0xff]
        %v4182 = vld [vmem:[%s1500 + $0x8] sm:$0xff]
        %v4183 = vld [vmem:[%s1500 + $0x10] sm:$0xff]
        %v4184 = vld [vmem:[%s1500 + $0x18] sm:$0xff]
        %v4185 = vld [vmem:[%s1500 + $0x20] sm:$0xff]
        %v4186 = vld [vmem:[%s1500 + $0x28] sm:$0xff]
        %v4187 = vld [vmem:[%s1500 + $0x30] sm:$0xff]
        %v4188 = vld [vmem:[%s1500 + $0x38] sm:$0xff]
        %v4189 = vmul.f32 %v4178, %v4181
        %v4190 = vmul.f32 %v4177, %v4182
        %v4191 = vmul.f32 %v4176, %v4183
        %v4192 = vmul.f32 %v4175, %v4184
        %v4193 = vmul.f32 %v4174, %v4185
        %v4194 = vmul.f32 %v4173, %v4186
        %v4195 = vmul.f32 %v4180, %v4187
        %v4196 = vmul.f32 %v4179, %v4188
        %v4197 = vadd.f32 %v4157, %v4189
        %v4198 = vadd.f32 %v4158, %v4190
        %v4199 = vadd.f32 %v4159, %v4191
        %v4200 = vadd.f32 %v4160, %v4192
        %v4201 = vadd.f32 %v4161, %v4193
        %v4202 = vadd.f32 %v4162, %v4194
        %v4203 = vadd.f32 %v4163, %v4195
        %v4204 = vadd.f32 %v4164, %v4196
        %v4205 = vld [vmem:[#allocation3] sm:$0xff]
        %v4206 = vld [vmem:[#allocation3 + $0x8] sm:$0xff]
        %v4207 = vld [vmem:[#allocation3 + $0x10] sm:$0xff]
        %v4208 = vld [vmem:[#allocation3 + $0x18] sm:$0xff]
        %v4209 = vld [vmem:[#allocation3 + $0x20] sm:$0xff]
        %v4210 = vld [vmem:[#allocation3 + $0x28] sm:$0xff]
        %v4211 = vld [vmem:[#allocation3 + $0x30] sm:$0xff]
        %v4212 = vld [vmem:[#allocation3 + $0x38] sm:$0xff]
        %v4213 = vadd.f32 %v4205, %v4197
        %v4214 = vadd.f32 %v4206, %v4198
        %v4215 = vadd.f32 %v4207, %v4199
        %v4216 = vadd.f32 %v4208, %v4200
        %v4217 = vadd.f32 %v4209, %v4201
        %v4218 = vadd.f32 %v4210, %v4202
        %v4219 = vadd.f32 %v4211, %v4203
        %v4220 = vadd.f32 %v4212, %v4204
        %vm4221 = vcmp.ge.f32.partialorder %v4213, 1.0
        %vm4222 = vcmp.ge.f32.partialorder %v4214, 1.0
        %vm4223 = vcmp.ge.f32.partialorder %v4215, 1.0
        %vm4224 = vcmp.ge.f32.partialorder %v4216, 1.0
        %vm4225 = vcmp.ge.f32.partialorder %v4217, 1.0
        %vm4226 = vcmp.ge.f32.partialorder %v4218, 1.0
        %vm4227 = vcmp.ge.f32.partialorder %v4219, 1.0
        %vm4228 = vcmp.ge.f32.partialorder %v4220, 1.0
        %v4229 = vsel %vm4221, 0.0, %v4213
        %v4230 = vsel %vm4222, 0.0, %v4214
        %v4231 = vsel %vm4223, 0.0, %v4215
        %v4232 = vsel %vm4224, 0.0, %v4216
        %v4233 = vsel %vm4225, 0.0, %v4217
        %v4234 = vsel %vm4226, 0.0, %v4218
        %v4235 = vsel %vm4227, 0.0, %v4219
        %v4236 = vsel %vm4228, 0.0, %v4220
        %4237 = vst.msk [vmem:[#allocation3] sm:$0xff] %vm810, %v4229
        %4238 = vst.msk [vmem:[#allocation3 + $0x8] sm:$0xff] %vm810, %v4230
        %4239 = vst.msk [vmem:[#allocation3 + $0x10] sm:$0xff] %vm810, %v4231
        %4240 = vst.msk [vmem:[#allocation3 + $0x18] sm:$0xff] %vm810, %v4232
        %4241 = vst.msk [vmem:[#allocation3 + $0x20] sm:$0xff] %vm810, %v4233
        %4242 = vst.msk [vmem:[#allocation3 + $0x28] sm:$0xff] %vm810, %v4234
        %4243 = vst.msk [vmem:[#allocation3 + $0x30] sm:$0xff] %vm810, %v4235
        %4244 = vst.msk [vmem:[#allocation3 + $0x38] sm:$0xff] %vm810, %v4236
        %v4245 = vsel %vm4221, 1, 0
        %v4246 = vsel %vm4222, 1, 0
        %v4247 = vsel %vm4223, 1, 0
        %v4248 = vsel %vm4224, 1, 0
        %v4249 = vsel %vm4225, 1, 0
        %v4250 = vsel %vm4226, 1, 0
        %v4251 = vsel %vm4227, 1, 0
        %v4252 = vsel %vm4228, 1, 0
        %v4253 = vcvt.s32.f32 %v4245
        %v4254 = vcvt.s32.f32 %v4246
        %v4255 = vcvt.s32.f32 %v4247
        %v4256 = vcvt.s32.f32 %v4248
        %v4257 = vcvt.s32.f32 %v4249
        %v4258 = vcvt.s32.f32 %v4250
        %v4259 = vcvt.s32.f32 %v4251
        %v4260 = vcvt.s32.f32 %v4252
        %v4261 = vpack.c.bf16 %v4254, %v4253
        %v4262 = vpack.c.bf16 %v4256, %v4255
        %v4263 = vpack.c.bf16 %v4258, %v4257
        %v4264 = vpack.c.bf16 %v4260, %v4259
        %v4265 = vld [vmem:[%s5] sm:$0xf]
        %v4266 = vld [vmem:[%s5 + $0x4] sm:$0xf]
        %v4267 = vld [vmem:[%s5 + $0x8] sm:$0xf]
        %v4268 = vld [vmem:[%s5 + $0xc] sm:$0xf]
        %v4273 = vunpack.c.l.b16 %v4265
        %v4274 = vunpack.c.l.b16 %v4266
        %v4275 = vunpack.c.l.b16 %v4267
        %v4276 = vunpack.c.l.b16 %v4268
        %v4277 = vpack.c.b16 %v4274, %v4273
        %v4278 = vpack.c.b16 %v4276, %v4275
        %v4282 = vsel %vm810, %v4261, 0
        %v4285 = vsel %vm810, %v4262, 0
        %v4288 = vsel %vm810, %v4263, 0
        %v4291 = vsel %vm810, %v4264, 0
        %4293 = vmatpush.bf16.msra.mxu0 0
        %4294 = vmatpush.bf16.msra.mxu0 0
        %4295 = vmatpush.bf16.msra.mxu0 0
        %4296 = vmatpush.bf16.msra.mxu0 0
        %4297 = vmatpush.bf16.msra.mxu0 0
        %4298 = vmatpush.bf16.msra.mxu0 0
        %4299 = vmatpush.bf16.msra.mxu0 %v4278
        %4300 = vmatpush.bf16.msra.mxu0 %v4277
        %4301 = vmatmul.bf16.gmra.mxu0 %v4282
        %v4302 = vpop.f32.mrf.mxu0
        %v4303 = vadd.f32 %v849, %v4302
        %v4304 = vpop.f32.mrf.mxu0
        %v4305 = vadd.f32 %v849, %v4304
        %4306 = vmatmul.bf16.gmra.mxu0 %v4285
        %v4307 = vpop.f32.mrf.mxu0
        %v4308 = vadd.f32 %v849, %v4307
        %v4309 = vpop.f32.mrf.mxu0
        %v4310 = vadd.f32 %v849, %v4309
        %4311 = vmatmul.bf16.gmra.mxu0 %v4288
        %v4312 = vpop.f32.mrf.mxu0
        %v4313 = vadd.f32 %v849, %v4312
        %v4314 = vpop.f32.mrf.mxu0
        %v4315 = vadd.f32 %v849, %v4314
        %4316 = vmatmul.bf16.gmra.mxu0 %v4291
        %v4317 = vpop.f32.mrf.mxu0
        %v4318 = vadd.f32 %v849, %v4317
        %v4319 = vpop.f32.mrf.mxu0
        %v4320 = vadd.f32 %v849, %v4319
        %4321 = vdwg.mxu0
        %v4322 = vld [vmem:[#allocation4] sm:$0xff]
        %v4323 = vld [vmem:[#allocation4 + $0x8] sm:$0xff]
        %v4324 = vld [vmem:[#allocation4 + $0x10] sm:$0xff]
        %v4325 = vld [vmem:[#allocation4 + $0x18] sm:$0xff]
        %v4326 = vld [vmem:[#allocation4 + $0x20] sm:$0xff]
        %v4327 = vld [vmem:[#allocation4 + $0x28] sm:$0xff]
        %v4328 = vld [vmem:[#allocation4 + $0x30] sm:$0xff]
        %v4329 = vld [vmem:[#allocation4 + $0x38] sm:$0xff]
        %v4330 = vadd.f32 %v4322, %v4303
        %v4331 = vadd.f32 %v4323, %v4305
        %v4332 = vadd.f32 %v4324, %v4308
        %v4333 = vadd.f32 %v4325, %v4310
        %v4334 = vadd.f32 %v4326, %v4313
        %v4335 = vadd.f32 %v4327, %v4315
        %v4336 = vadd.f32 %v4328, %v4318
        %v4337 = vadd.f32 %v4329, %v4320
        %vm4338 = vcmp.ge.f32.partialorder %v4330, 1.0
        %vm4339 = vcmp.ge.f32.partialorder %v4331, 1.0
        %vm4340 = vcmp.ge.f32.partialorder %v4332, 1.0
        %vm4341 = vcmp.ge.f32.partialorder %v4333, 1.0
        %vm4342 = vcmp.ge.f32.partialorder %v4334, 1.0
        %vm4343 = vcmp.ge.f32.partialorder %v4335, 1.0
        %vm4344 = vcmp.ge.f32.partialorder %v4336, 1.0
        %vm4345 = vcmp.ge.f32.partialorder %v4337, 1.0
        %v4346 = vsel %vm4338, 0.0, %v4330
        %v4347 = vsel %vm4339, 0.0, %v4331
        %v4348 = vsel %vm4340, 0.0, %v4332
        %v4349 = vsel %vm4341, 0.0, %v4333
        %v4350 = vsel %vm4342, 0.0, %v4334
        %v4351 = vsel %vm4343, 0.0, %v4335
        %v4352 = vsel %vm4344, 0.0, %v4336
        %v4353 = vsel %vm4345, 0.0, %v4337
        %4354 = vst [vmem:[#allocation4] sm:$0xff] %v4346
        %4355 = vst [vmem:[#allocation4 + $0x8] sm:$0xff] %v4347
        %4356 = vst [vmem:[#allocation4 + $0x10] sm:$0xff] %v4348
        %4357 = vst [vmem:[#allocation4 + $0x18] sm:$0xff] %v4349
        %4358 = vst [vmem:[#allocation4 + $0x20] sm:$0xff] %v4350
        %4359 = vst [vmem:[#allocation4 + $0x28] sm:$0xff] %v4351
        %4360 = vst [vmem:[#allocation4 + $0x30] sm:$0xff] %v4352
        %4361 = vst [vmem:[#allocation4 + $0x38] sm:$0xff] %v4353
        %s4362 = scalar_lea.vmem %s460, 96 [#allocation6]
        %v4363 = vld [vmem:[%s4362] sm:$0xf]
        %v4364 = vld [vmem:[%s4362 + $0x4] sm:$0xf]
        %v4365 = vld [vmem:[%s4362 + $0x8] sm:$0xf]
        %v4366 = vld [vmem:[%s4362 + $0xc] sm:$0xf]
        %v4367 = vld [vmem:[%s4362 + $0x10] sm:$0xf]
        %v4368 = vld [vmem:[%s4362 + $0x14] sm:$0xf]
        %v4369 = vld [vmem:[%s4362 + $0x18] sm:$0xf]
        %v4370 = vld [vmem:[%s4362 + $0x1c] sm:$0xf]
        %v4371 = vsel %vm4338, 1, 0
        %v4372 = vsel %vm4339, 1, 0
        %v4373 = vsel %vm4340, 1, 0
        %v4374 = vsel %vm4341, 1, 0
        %v4375 = vsel %vm4342, 1, 0
        %v4376 = vsel %vm4343, 1, 0
        %v4377 = vsel %vm4344, 1, 0
        %v4378 = vsel %vm4345, 1, 0
        %v4379 = vcvt.s32.f32 %v4371
        %v4380 = vcvt.s32.f32 %v4372
        %v4381 = vcvt.s32.f32 %v4373
        %v4382 = vcvt.s32.f32 %v4374
        %v4383 = vcvt.s32.f32 %v4375
        %v4384 = vcvt.s32.f32 %v4376
        %v4385 = vcvt.s32.f32 %v4377
        %v4386 = vcvt.s32.f32 %v4378
        %v4387 = vpack.c.bf16 %v4379, %v4379
        %v4388 = vpack.c.bf16 %v4380, %v4380
        %v4389 = vpack.c.bf16 %v4381, %v4381
        %v4390 = vpack.c.bf16 %v4382, %v4382
        %v4391 = vpack.c.bf16 %v4383, %v4383
        %v4392 = vpack.c.bf16 %v4384, %v4384
        %v4393 = vpack.c.bf16 %v4385, %v4385
        %v4394 = vpack.c.bf16 %v4386, %v4386
        %v4395 = vunpack.c.l.bf16 %v4363
        %v4396 = vunpack.c.l.bf16 %v4364
        %v4397 = vunpack.c.l.bf16 %v4365
        %v4398 = vunpack.c.l.bf16 %v4366
        %v4399 = vunpack.c.l.bf16 %v4367
        %v4400 = vunpack.c.l.bf16 %v4368
        %v4401 = vunpack.c.l.bf16 %v4369
        %v4402 = vunpack.c.l.bf16 %v4370
        %v4403 = vunpack.c.l.bf16 %v4387
        %v4404 = vunpack.c.l.bf16 %v4388
        %v4405 = vunpack.c.l.bf16 %v4389
        %v4406 = vunpack.c.l.bf16 %v4390
        %v4407 = vunpack.c.l.bf16 %v4391
        %v4408 = vunpack.c.l.bf16 %v4392
        %v4409 = vunpack.c.l.bf16 %v4393
        %v4410 = vunpack.c.l.bf16 %v4394
        %v4411 = vadd.f32 %v4395, %v4403
        %v4412 = vadd.f32 %v4396, %v4404
        %v4413 = vadd.f32 %v4397, %v4405
        %v4414 = vadd.f32 %v4398, %v4406
        %v4415 = vadd.f32 %v4399, %v4407
        %v4416 = vadd.f32 %v4400, %v4408
        %v4417 = vadd.f32 %v4401, %v4409
        %v4418 = vadd.f32 %v4402, %v4410
        %v4419 = vpack.c.bf16 %v4411, %v4411
        %v4420 = vpack.c.bf16 %v4412, %v4412
        %v4421 = vpack.c.bf16 %v4413, %v4413
        %v4422 = vpack.c.bf16 %v4414, %v4414
        %v4423 = vpack.c.bf16 %v4415, %v4415
        %v4424 = vpack.c.bf16 %v4416, %v4416
        %v4425 = vpack.c.bf16 %v4417, %v4417
        %v4426 = vpack.c.bf16 %v4418, %v4418
        %s4427 = scalar_lea.vmem %s490, 96 [#allocation7]
        %4428 = vst [vmem:[%s4427] sm:$0xf] %v4419
        %4429 = vst [vmem:[%s4427 + $0x4] sm:$0xf] %v4420
        %4430 = vst [vmem:[%s4427 + $0x8] sm:$0xf] %v4421
        %4431 = vst [vmem:[%s4427 + $0xc] sm:$0xf] %v4422
        %4432 = vst [vmem:[%s4427 + $0x10] sm:$0xf] %v4423
        %4433 = vst [vmem:[%s4427 + $0x14] sm:$0xf] %v4424
        %4434 = vst [vmem:[%s4427 + $0x18] sm:$0xf] %v4425
        %4435 = vst [vmem:[%s4427 + $0x1c] sm:$0xf] %v4426
        %s4436 = sand.u32 %s219, 1
        %s4437 = scalar_lea.sflag [#allocation8], %s4436
        %s4438 = sand.u32 %s219, 1
        %s4439 = smul.addr %s4438, 128
        %s4440 = scalar_lea.vmem [#allocation7], %s4439
        // Predicated region
        $region98: #{sew_bottleneck.1} parent=88 // pred_check
          %p4441 = pneg %p229
        $region99: #{sew_bottleneck.1} parent=88 // pred_check_branch
          %4443 = sbr.rel (%p4441) target = $region101
        $region100: #{sew_bottleneck.1} parent=88 // pred_region
          #allocation10 [shape = 'u32[6]{0}', space=smem, size = 0x18, scoped, tag = 'DMA stride descriptor']
          %s4444 = smul.u32 4, %s27
          %s4445 = smul.u32 8, %s26
          %4447 = vsyncadd %s4437, 0
          %s4448 = smul.addr %s4444, 16
          %s4449 = sadd.s32 %s4445, %s4448
          %s4450 = smul.addr %s4449, 4
          %s4451 = scalar_lea.hbm %s8, %s4450
          %s4453 = sshll.u32 1, 14
          %s4454 = sxor.u32 4294967295, %s4453
          %s4457 = sshll.u32 7, 18
          %s4458 = sxor.u32 4294967295, %s4457
          %s4459 = sand.u32 0, %s4458
          %s4461 = sor.u32 %s4459, 0
          %s4462 = sshll.u32 %s4440, 4
          %s4463 = int_to_ptr.vmem [resolvable:$true] %s4462
          %s4464 = sshll.u32 %s4451, 4
          %s4465 = int_to_ptr.hbm [resolvable:$true] %s4464
          %4471 = sst [smem:[#allocation10]] 512
          %s4472 = scalar_lea.smem [#allocation10], 1
          %4473 = sst [smem:[%s4472]] 1024
          %s4474 = scalar_lea.smem [#allocation10], 2
          %4475 = sst [smem:[%s4474]] 8
          %s4476 = scalar_lea.smem [#allocation10], 3
          %4477 = sst [smem:[%s4476]] 64
          %s4478 = scalar_lea.smem [#allocation10], 4
          %4479 = sst [smem:[%s4478]] 64
          %s4480 = scalar_lea.smem [#allocation10], 5
          %4481 = sst [smem:[%s4480]] 4
          %4483 = dma.general %s4463, 2048, %s4465, %s4437, [#allocation9], [#allocation10], %s4461, 0
        $region101: #{sew_bottleneck.1} parent=88 // pred_fallthru
          _
      $region89: #{sew_bottleneck.1} parent=5 // pred_fallthru
        _
      %p4484 = scmp.le.s32.totalorder 2, %s17
      // Predicated region
      $region102: #{sew_bottleneck.1} parent=5 // pred_check
        %p4485 = pneg %p4484
      $region103: #{sew_bottleneck.1} parent=5 // pred_check_branch
        %4487 = sbr.rel (%p4485) target = $region105
      $region104: #{sew_bottleneck.1} parent=5 // pred_region
        %s4488 = ssub.s32 %s17, 2
        // Predicated region
        $region106: #{sew_bottleneck.1} parent=104 // pred_check
          %p4489 = pneg %p235
        $region107: #{sew_bottleneck.1} parent=104 // pred_check_branch
          %4491 = sbr.rel (%p4489) target = $region109
        $region108: #{sew_bottleneck.1} parent=104 // pred_region
          %s4492 = sand.u32 %s220, 1
          %s4493 = scalar_lea.sflag [#allocation8], %s4492
          %s4494 = sand.u32 %s220, 1
          %s4495 = smul.addr %s4494, 128
          %s4496 = scalar_lea.vmem [#allocation7], %s4495
          %4498 = dma.done %s4493, 2048
        $region109: #{sew_bottleneck.1} parent=104 // pred_fallthru
          _
      $region105: #{sew_bottleneck.1} parent=5 // pred_fallthru
        _
    $region6: #{sew_bottleneck.1} parent=1 // loop_footer
      %s21 = sadd.s32 1, %s17
    $region7: #{sew_bottleneck.1} parent=1 // loop_footer_branch
      %16 = sbr.rel target = $region3
    $region8: #{sew_bottleneck.1} parent=1 // loop_exit
      _
    %4499 = vsyncpa [#allocation8], 1
    %s4500 = scalar_lea.sflag [#allocation8], 1
    %4501 = vsyncpa %s4500, 1

</llo_original>
